<compile_context>
chip_gen: v7x
topology: tpu7x:2x2x1
jax: 0.10.0
libtpu: 0.0.40
codegen_flags: <defaults>
</compile_context>

<pallas_src>
import functools

import jax
import jax.numpy as jnp
from jax.experimental import pallas as pl
from jax.experimental.pallas import tpu as pltpu

LN_EPS = 1e-5                         # nn.LayerNorm default eps
_SQRT_2_OVER_PI = 0.7978845608028654
_INV_SQRT2 = 0.7071067811865476


def _vmem_limit_bytes():
    # ~3/4 of physical VMEM (64 MiB on v7x, 128 MiB on v5e/v6e), capped.
    try:
        cap = int(pltpu.get_tpu_info().vmem_capacity_bytes)
    except Exception:                 # conservative fallback
        cap = 64 * 1024 * 1024
    return int(min(cap * 3 // 4, 96 * 1024 * 1024))


def _compiler_params(dimension_semantics):
    return pltpu.CompilerParams(dimension_semantics=dimension_semantics,
                                vmem_limit_bytes=_vmem_limit_bytes())


def _layernorm(x, w, b):
    mu = jnp.mean(x, axis=-1, keepdims=True)
    var = jnp.mean((x - mu) ** 2, axis=-1, keepdims=True)
    return (x - mu) * jax.lax.rsqrt(var + LN_EPS) * w + b


def _gelu_tanh(x):
    # tanh-approx GELU: transcendental goes to the EUP slot instead of a long
    # f32 erf polynomial on the VPU (biggest elementwise win on v5e).
    # TODO(synk): switch back to 0.5*x*(1+erf(x/sqrt(2))) if bit-exact nn.GELU
    # numerics are a hard requirement.
    return 0.5 * x * (1.0 + jnp.tanh(_SQRT_2_OVER_PI * (x + 0.044715 * x * x * x)))


# ---------------------------------------------------------------------------
# Fused encoder kernel: patch-embed prologue + all blocks + pred epilogue
# ---------------------------------------------------------------------------
def vit_encoder_kernel(patches_ref, pw_ref, pb_ref, cls_ref, pos_ref,
                       ln1w_ref, ln1b_ref, qkvw_ref, qkvb_ref,
                       projw_ref, projb_ref, ln2w_ref, ln2b_ref,
                       fc1w_ref, fc1b_ref, fc2w_ref, fc2b_ref,
                       normw_ref, normb_ref, predw_ref, predb_ref,
                       o_ref, x_sc, *, num_heads):
    layer = pl.program_id(1)
    n_layers = pl.num_programs(1)

    # ------- prologue (layer 0): patch embedding + pos embed + cls token ----
    @pl.when(layer == 0)
    def _():
        tok = jnp.dot(patches_ref[0], pw_ref[...],
                      preferred_element_type=jnp.float32)            # (L, D)
        x_sc[0:1, :] = cls_ref[...] + pos_ref[0:1, :]
        x_sc[1:, :] = tok + pb_ref[...] + pos_ref[1:, :]

    x = x_sc[...]                          # (S, D) f32 residual carry
    S, D = x.shape
    H = num_heads
    Dh = D // H

    # ------- attention branch: x + proj(MHA(LN1(x))) -------------------------
    h1 = _layernorm(x, ln1w_ref[0], ln1b_ref[0]).astype(jnp.bfloat16)
    qkv = (jnp.dot(h1, qkvw_ref[0], preferred_element_type=jnp.float32)
           + qkvb_ref[0])                                            # (S, 3D)

    # Head split: single reshape + leading-axis transpose per operand
    # (no per-head Python loops / masked scratch stores).  The 1/sqrt(Dh)
    # scale is folded into the q columns once, before the split.
    q = (qkv[:, :D] * (Dh ** -0.5)).reshape(S, H, Dh).astype(jnp.bfloat16)
    k = qkv[:, D:2 * D].reshape(S, H, Dh).astype(jnp.bfloat16)
    v = qkv[:, 2 * D:].reshape(S, H, Dh).astype(jnp.bfloat16)
    q = jnp.swapaxes(q, 0, 1)              # (H, S, Dh)
    k = jnp.swapaxes(k, 0, 1)
    v = jnp.swapaxes(v, 0, 1)

    s = jnp.einsum('hqd,hkd->hqk', q, k,
                   preferred_element_type=jnp.float32)               # (H, S, S)
    s = s - jnp.max(s, axis=-1, keepdims=True)
    p = jnp.exp(s)
    # approx reciprocal (EUP): attention rows sum to 1 only to ~1e-3 relative.
    p = p * pl.reciprocal(jnp.sum(p, axis=-1, keepdims=True), approx=True)
    ctx = jnp.einsum('hqk,hkd->hqd', p.astype(jnp.bfloat16), v,
                     preferred_element_type=jnp.float32)             # (H, S, Dh)
    ctx = jnp.swapaxes(ctx, 0, 1).reshape(S, D).astype(jnp.bfloat16)  # merge heads
    x = x + (jnp.dot(ctx, projw_ref[0], preferred_element_type=jnp.float32)
             + projb_ref[0])

    # ------- MLP branch: x + fc2(gelu(fc1(LN2(x)))) ---------------------------
    h2 = _layernorm(x, ln2w_ref[0], ln2b_ref[0]).astype(jnp.bfloat16)
    h2 = (jnp.dot(h2, fc1w_ref[0], preferred_element_type=jnp.float32)
          + fc1b_ref[0])
    h2 = _gelu_tanh(h2)
    h2 = (jnp.dot(h2.astype(jnp.bfloat16), fc2w_ref[0],
                  preferred_element_type=jnp.float32) + fc2b_ref[0])
    x = x + h2

    x_sc[...] = x                          # carry to next layer

    # ------- epilogue (last layer): final LN + encoder_pred (patch tokens) --
    @pl.when(layer == n_layers - 1)
    def _():
        hf = _layernorm(x[1:, :], normw_ref[...], normb_ref[...]).astype(jnp.bfloat16)
        o_ref[0] = (jnp.dot(hf, predw_ref[...], preferred_element_type=jnp.float32)
                    + predb_ref[...])


# ---------------------------------------------------------------------------
# Pallas wrapper
# ---------------------------------------------------------------------------
def vit_encoder_pallas(patches, params, num_heads):
    B, L, K = patches.shape
    blk = params["blocks"]
    depth = blk["qkv_w"].shape[0]
    D = params["patch_w"].shape[1]
    S = L + 1
    P = params["pred_w"].shape[1]
    P_pad = ((P + 127) // 128) * 128       # lane-dense (unmasked) output stores
    pred_w, pred_b = params["pred_w"], params["pred_b"]
    if P_pad != P:
        pred_w = jnp.pad(pred_w, ((0, 0), (0, P_pad - P)))
        pred_b = jnp.pad(pred_b, ((0, 0), (0, P_pad - P)))
    pos = params["pos_embed"][0]           # (S, D)
    cls = params["cls_token"][0]           # (1, D)

    def const_spec(a):
        nd = a.ndim
        return pl.BlockSpec(a.shape, lambda b, l: (0,) * nd)

    def layer_spec(a):
        return pl.BlockSpec((1,) + a.shape[1:], lambda b, l: (l, 0, 0))

    out = pl.pallas_call(
        functools.partial(vit_encoder_kernel, num_heads=num_heads),
        out_shape=jax.ShapeDtypeStruct((B, L, P_pad), jnp.float32),
        grid=(B, depth),
        in_specs=[
            pl.BlockSpec((1, L, K), lambda b, l: (b, 0, 0)),
            const_spec(params["patch_w"]), const_spec(params["patch_b"]),
            const_spec(cls), const_spec(pos),
            layer_spec(blk["ln1_w"]), layer_spec(blk["ln1_b"]),
            layer_spec(blk["qkv_w"]), layer_spec(blk["qkv_b"]),
            layer_spec(blk["proj_w"]), layer_spec(blk["proj_b"]),
            layer_spec(blk["ln2_w"]), layer_spec(blk["ln2_b"]),
            layer_spec(blk["fc1_w"]), layer_spec(blk["fc1_b"]),
            layer_spec(blk["fc2_w"]), layer_spec(blk["fc2_b"]),
            const_spec(params["norm_w"]), const_spec(params["norm_b"]),
            const_spec(pred_w), const_spec(pred_b),
        ],
        out_specs=pl.BlockSpec((1, L, P_pad), lambda b, l: (b, 0, 0)),
        scratch_shapes=[pltpu.VMEM((S, D), jnp.float32)],   # residual carry
        compiler_params=_compiler_params(("parallel", "arbitrary")),
    )(patches,
      params["patch_w"], params["patch_b"], cls, pos,
      blk["ln1_w"], blk["ln1_b"], blk["qkv_w"], blk["qkv_b"],
      blk["proj_w"], blk["proj_b"], blk["ln2_w"], blk["ln2_b"],
      blk["fc1_w"], blk["fc1_b"], blk["fc2_w"], blk["fc2_b"],
      params["norm_w"], params["norm_b"], pred_w, pred_b)
    return out[:, :, :P]


# ---------------------------------------------------------------------------
# Parameter init (deterministic synthetic; matmul weights stored in bf16,
# per-layer weights stacked along a leading depth axis for the fused kernel)
# ---------------------------------------------------------------------------
def init_vit_params(key, *, img_size, patch_size, in_chans, out_chans,
                    embed_dim, depth, num_heads, mlp_ratio):
    del num_heads  # head split happens inside the kernel
    hgrid = img_size // patch_size
    num_patches = hgrid * hgrid
    hidden = int(embed_dim * mlp_ratio)
    K = in_chans * patch_size * patch_size
    P = patch_size * patch_size * out_chans

    keys = jax.random.split(key, 8)
    bf = jnp.bfloat16
    nrm = lambda k, s, dt=jnp.float32: (0.02 * jax.random.normal(k, s)).astype(dt)

    return {
        # conv weight (D, C, p, p) flattened to (K, D) for patches @ W
        "patch_w": nrm(keys[0], (K, embed_dim), bf),
        "patch_b": jnp.zeros((1, embed_dim), jnp.float32),
        "cls_token": nrm(keys[1], (1, 1, embed_dim)),
        "pos_embed": nrm(keys[2], (1, num_patches + 1, embed_dim)),
        "norm_w": jnp.ones((1, embed_dim), jnp.float32),
        "norm_b": jnp.zeros((1, embed_dim), jnp.float32),
        "pred_w": nrm(keys[3], (embed_dim, P), bf),
        "pred_b": jnp.zeros((1, P), jnp.float32),
        "blocks": {
            "ln1_w": jnp.ones((depth, 1, embed_dim), jnp.float32),
            "ln1_b": jnp.zeros((depth, 1, embed_dim), jnp.float32),
            "qkv_w": nrm(keys[4], (depth, embed_dim, 3 * embed_dim), bf),
            "qkv_b": jnp.zeros((depth, 1, 3 * embed_dim), jnp.float32),
            "proj_w": nrm(keys[5], (depth, embed_dim, embed_dim), bf),
            "proj_b": jnp.zeros((depth, 1, embed_dim), jnp.float32),
            "ln2_w": jnp.ones((depth, 1, embed_dim), jnp.float32),
            "ln2_b": jnp.zeros((depth, 1, embed_dim), jnp.float32),
            "fc1_w": nrm(keys[6], (depth, embed_dim, hidden), bf),
            "fc1_b": jnp.zeros((depth, 1, hidden), jnp.float32),
            "fc2_w": nrm(keys[7], (depth, hidden, embed_dim), bf),
            "fc2_b": jnp.zeros((depth, 1, embed_dim), jnp.float32),
        },
    }


# ---------------------------------------------------------------------------
# Glue: patch extraction / unpatchify (pure layout, done in the XLA wrapper)
# ---------------------------------------------------------------------------
def extract_patches_for_embed(x, patch_size):
    # (B, C, H, W) NCHW -> (B, L, C*p*p), ordering (c, ph, pw) matching the
    # Conv2d(kernel=stride=p) patch-embedding-as-matmul weight flattening.
    B, C, H, W = x.shape
    p = patch_size
    h, w = H // p, W // p
    x = x.reshape(B, C, h, p, w, p)
    x = jnp.transpose(x, (0, 2, 4, 1, 3, 5))        # (B, h, w, C, p, p)
    return x.reshape(B, h * w, C * p * p)


def unpatchify(x, patch_size, out_chans, img_size):
    # (B, L, p*p*C) -> (B, C, H, W)   (einsum 'nhwpqc->nchpwq')
    B = x.shape[0]
    p = patch_size
    h = w = img_size // p
    x = x.reshape(B, h, w, p, p, out_chans)
    x = jnp.transpose(x, (0, 5, 1, 3, 2, 4))        # (B, C, h, p, w, p)
    return x.reshape(B, out_chans, h * p, w * p)


def vit_forward(params, x, *, patch_size, out_chans, num_heads, img_size):
    # im2col patch extraction in the wrapper; bf16 halves the HBM bytes read.
    patches = extract_patches_for_embed(x, patch_size).astype(jnp.bfloat16)
    pred = vit_encoder_pallas(patches, params, num_heads)       # (B, L, P)
    return unpatchify(pred, patch_size, out_chans, img_size)


# ---------------------------------------------------------------------------
# Pure-JAX reference (f32, exact-erf GELU) for a correctness sanity check
# ---------------------------------------------------------------------------
def vit_reference(params, x, *, patch_size, out_chans, num_heads, img_size):
    f32 = jnp.float32
    B = x.shape[0]
    D = params["pos_embed"].shape[-1]
    H = num_heads
    Dh = D // H

    def ln(v, w, b):
        mu = v.mean(-1, keepdims=True)
        var = ((v - mu) ** 2).mean(-1, keepdims=True)
        return (v - mu) * jax.lax.rsqrt(var + LN_EPS) * w + b

    patches = extract_patches_for_embed(x, patch_size)
    tok = (patches @ params["patch_w"].astype(f32) + params["patch_b"]
           + params["pos_embed"][:, 1:, :])
    cls = params["cls_token"] + params["pos_embed"][:, :1, :]
    tok = jnp.concatenate([jnp.broadcast_to(cls, (B, 1, D)), tok], axis=1)

    blk = params["blocks"]
    for l in range(blk["qkv_w"].shape[0]):
        h1 = ln(tok, blk["ln1_w"][l], blk["ln1_b"][l])
        qkv = h1 @ blk["qkv_w"][l].astype(f32) + blk["qkv_b"][l]
        q, k, v = qkv[..., :D], qkv[..., D:2 * D], qkv[..., 2 * D:]
        q = q.reshape(B, -1, H, Dh).transpose(0, 2, 1, 3) * (Dh ** -0.5)
        k = k.reshape(B, -1, H, Dh).transpose(0, 2, 1, 3)
        v = v.reshape(B, -1, H, Dh).transpose(0, 2, 1, 3)
        a = jax.nn.softmax(q @ k.transpose(0, 1, 3, 2), axis=-1)
        ctx = (a @ v).transpose(0, 2, 1, 3).reshape(B, -1, D)
        tok = tok + ctx @ blk["proj_w"][l].astype(f32) + blk["proj_b"][l]
        h2 = ln(tok, blk["ln2_w"][l], blk["ln2_b"][l])
        h2 = h2 @ blk["fc1_w"][l].astype(f32) + blk["fc1_b"][l]
        h2 = 0.5 * h2 * (1.0 + jax.lax.erf(h2 * _INV_SQRT2))   # exact nn.GELU
        tok = tok + h2 @ blk["fc2_w"][l].astype(f32) + blk["fc2_b"][l]

    pred = (ln(tok, params["norm_w"], params["norm_b"])
            @ params["pred_w"].astype(f32) + params["pred_b"])
    return unpatchify(pred[:, 1:, :], patch_size, out_chans, img_size)


# ---------------------------------------------------------------------------
if __name__ == "__main__":
    # Small, hardware-aligned demo config (D multiple of 128, Dh = 128).
    IMG_SIZE = 16
    PATCH = 4
    IN_CHANS = 3
    OUT_CHANS = 3
    EMBED_DIM = 256
    DEPTH = 2
    NUM_HEADS = 2
    MLP_RATIO = 4.0
    BATCH = 2

    key = jax.random.PRNGKey(0)
    k_x, k_p = jax.random.split(key)
    x = jax.random.normal(k_x, (BATCH, IN_CHANS, IMG_SIZE, IMG_SIZE), jnp.float32)

    params = init_vit_params(
        k_p, img_size=IMG_SIZE, patch_size=PATCH, in_chans=IN_CHANS,
        out_chans=OUT_CHANS, embed_dim=EMBED_DIM, depth=DEPTH,
        num_heads=NUM_HEADS, mlp_ratio=MLP_RATIO)

    fwd = jax.jit(functools.partial(
        vit_forward, patch_size=PATCH, out_chans=OUT_CHANS,
        num_heads=NUM_HEADS, img_size=IMG_SIZE))

    out = jax.block_until_ready(fwd(params, x))

    assert out.shape == (BATCH, OUT_CHANS, IMG_SIZE, IMG_SIZE), out.shape
    assert bool(jnp.all(jnp.isfinite(out)))

    ref = vit_reference(params, x, patch_size=PATCH, out_chans=OUT_CHANS,
                        num_heads=NUM_HEADS, img_size=IMG_SIZE)
    max_diff = float(jnp.max(jnp.abs(out - ref)))
    assert max_diff < 5e-2, f"kernel/reference mismatch: {max_diff}"

    print("KERNEL_OK")
</pallas_src>

<mosaic_0001>
module attributes {stable_mosaic.version = 11 : i64} {
  func.func @vit_encoder_kernel(%arg0: i32, %arg1: i32, %arg2: memref<1x16x48xbf16, #tpu.memory_space<vmem>>, %arg3: memref<48x256xbf16, #tpu.memory_space<vmem>>, %arg4: memref<1x256xf32, #tpu.memory_space<vmem>>, %arg5: memref<1x256xf32, #tpu.memory_space<vmem>>, %arg6: memref<17x256xf32, #tpu.memory_space<vmem>>, %arg7: memref<1x1x256xf32, #tpu.memory_space<vmem>>, %arg8: memref<1x1x256xf32, #tpu.memory_space<vmem>>, %arg9: memref<1x256x768xbf16, #tpu.memory_space<vmem>>, %arg10: memref<1x1x768xf32, #tpu.memory_space<vmem>>, %arg11: memref<1x256x256xbf16, #tpu.memory_space<vmem>>, %arg12: memref<1x1x256xf32, #tpu.memory_space<vmem>>, %arg13: memref<1x1x256xf32, #tpu.memory_space<vmem>>, %arg14: memref<1x1x256xf32, #tpu.memory_space<vmem>>, %arg15: memref<1x256x1024xbf16, #tpu.memory_space<vmem>>, %arg16: memref<1x1x1024xf32, #tpu.memory_space<vmem>>, %arg17: memref<1x1024x256xbf16, #tpu.memory_space<vmem>>, %arg18: memref<1x1x256xf32, #tpu.memory_space<vmem>>, %arg19: memref<1x256xf32, #tpu.memory_space<vmem>>, %arg20: memref<1x256xf32, #tpu.memory_space<vmem>>, %arg21: memref<256x128xbf16, #tpu.memory_space<vmem>>, %arg22: memref<1x128xf32, #tpu.memory_space<vmem>>, %arg23: memref<1x16x128xf32, #tpu.memory_space<vmem>>, %arg24: memref<17x256xf32, #tpu.memory_space<vmem>>) attributes {dimension_semantics = [#tpu.dimension_semantics<parallel>, #tpu.dimension_semantics<arbitrary>], iteration_bounds = array<i64: 2, 2>, scalar_prefetch = 0 : i64, scratch_operands = 1 : i64, tpu.core_type = #tpu.core_type<tc>, window_params = [{transform_indices = @transform_0, window_bounds = array<i64: 1, 16, 48>}, {pipeline_mode = #tpu.pipeline_mode<synchronous>, transform_indices = @transform_1, window_bounds = array<i64: 48, 256>}, {pipeline_mode = #tpu.pipeline_mode<synchronous>, transform_indices = @transform_2, window_bounds = array<i64: 1, 256>}, {pipeline_mode = #tpu.pipeline_mode<synchronous>, transform_indices = @transform_3, window_bounds = array<i64: 1, 256>}, {pipeline_mode = #tpu.pipeline_mode<synchronous>, transform_indices = @transform_4, window_bounds = array<i64: 17, 256>}, {transform_indices = @transform_5, window_bounds = array<i64: 1, 1, 256>}, {transform_indices = @transform_6, window_bounds = array<i64: 1, 1, 256>}, {transform_indices = @transform_7, window_bounds = array<i64: 1, 256, 768>}, {transform_indices = @transform_8, window_bounds = array<i64: 1, 1, 768>}, {transform_indices = @transform_9, window_bounds = array<i64: 1, 256, 256>}, {transform_indices = @transform_10, window_bounds = array<i64: 1, 1, 256>}, {transform_indices = @transform_11, window_bounds = array<i64: 1, 1, 256>}, {transform_indices = @transform_12, window_bounds = array<i64: 1, 1, 256>}, {transform_indices = @transform_13, window_bounds = array<i64: 1, 256, 1024>}, {transform_indices = @transform_14, window_bounds = array<i64: 1, 1, 1024>}, {transform_indices = @transform_15, window_bounds = array<i64: 1, 1024, 256>}, {transform_indices = @transform_16, window_bounds = array<i64: 1, 1, 256>}, {pipeline_mode = #tpu.pipeline_mode<synchronous>, transform_indices = @transform_17, window_bounds = array<i64: 1, 256>}, {pipeline_mode = #tpu.pipeline_mode<synchronous>, transform_indices = @transform_18, window_bounds = array<i64: 1, 256>}, {pipeline_mode = #tpu.pipeline_mode<synchronous>, transform_indices = @transform_19, window_bounds = array<i64: 256, 128>}, {pipeline_mode = #tpu.pipeline_mode<synchronous>, transform_indices = @transform_20, window_bounds = array<i64: 1, 128>}, {transform_indices = @transform_21, window_bounds = array<i64: 1, 16, 128>}]} {
    %c0_i32 = arith.constant 0 : i32
    %0 = arith.cmpi eq, %arg1, %c0_i32 : i32
    %1 = arith.extui %0 : i1 to i32
    %c0_i32_0 = arith.constant 0 : i32
    %2 = arith.cmpi ne, %1, %c0_i32_0 : i32
    scf.if %2 {
      %c0_63 = arith.constant 0 : index
      %c0_64 = arith.constant 0 : index
      %c0_65 = arith.constant 0 : index
      %136 = vector.load %arg2[%c0_63, %c0_64, %c0_65] : memref<1x16x48xbf16, #tpu.memory_space<vmem>>, vector<1x16x48xbf16>
      %137 = vector.shape_cast %136 : vector<1x16x48xbf16> to vector<16x48xbf16>
      %c0_66 = arith.constant 0 : index
      %c0_67 = arith.constant 0 : index
      %138 = vector.load %arg3[%c0_66, %c0_67] : memref<48x256xbf16, #tpu.memory_space<vmem>>, vector<48x256xbf16>
      %cst_68 = arith.constant dense<0.000000e+00> : vector<16x256xf32>
      %139 = tpu.matmul %137, %138, %cst_68 {dimension_numbers = #tpu.dot_dimension_numbers<[1], [0], [0], [1], [0, 0, 1, 1], [], []>} : vector<16x48xbf16>, vector<48x256xbf16>, vector<16x256xf32> -> vector<16x256xf32>
      %c0_69 = arith.constant 0 : index
      %c0_70 = arith.constant 0 : index
      %140 = vector.load %arg5[%c0_69, %c0_70] : memref<1x256xf32, #tpu.memory_space<vmem>>, vector<1x256xf32>
      %c0_71 = arith.constant 0 : index
      %c0_72 = arith.constant 0 : index
      %141 = vector.load %arg6[%c0_71, %c0_72] : memref<17x256xf32, #tpu.memory_space<vmem>>, vector<1x256xf32>
      %142 = arith.addf %140, %141 : vector<1x256xf32>
      %c0_73 = arith.constant 0 : index
      %c0_74 = arith.constant 0 : index
      %143 = vector.load %arg24[%c0_73, %c0_74] : memref<17x256xf32, #tpu.memory_space<vmem>>, vector<1x256xf32>
      tpu.vector_store %arg24[%c0_73, %c0_74], %142 {strides = array<i32>} : memref<17x256xf32, #tpu.memory_space<vmem>>, vector<1x256xf32>,
      %c0_75 = arith.constant 0 : index
      %c0_76 = arith.constant 0 : index
      %144 = vector.load %arg4[%c0_75, %c0_76] : memref<1x256xf32, #tpu.memory_space<vmem>>, vector<1x256xf32>
      %145 = vector.broadcast %144 : vector<1x256xf32> to vector<16x256xf32>
      %146 = arith.addf %139, %145 : vector<16x256xf32>
      %c1 = arith.constant 1 : index
      %c0_77 = arith.constant 0 : index
      %147 = vector.load %arg6[%c1, %c0_77] : memref<17x256xf32, #tpu.memory_space<vmem>>, vector<16x256xf32>
      %148 = arith.addf %146, %147 : vector<16x256xf32>
      %c1_78 = arith.constant 1 : index
      %c0_79 = arith.constant 0 : index
      %149 = vector.load %arg24[%c1_78, %c0_79] : memref<17x256xf32, #tpu.memory_space<vmem>>, vector<16x256xf32>
      tpu.vector_store %arg24[%c1_78, %c0_79], %148 {strides = array<i32>} : memref<17x256xf32, #tpu.memory_space<vmem>>, vector<16x256xf32>,
    } else {
    }
    %c0 = arith.constant 0 : index
    %c0_1 = arith.constant 0 : index
    %3 = vector.load %arg24[%c0, %c0_1] : memref<17x256xf32, #tpu.memory_space<vmem>>, vector<17x256xf32>
    %c0_2 = arith.constant 0 : index
    %c0_3 = arith.constant 0 : index
    %c0_4 = arith.constant 0 : index
    %4 = vector.load %arg7[%c0_2, %c0_3, %c0_4] : memref<1x1x256xf32, #tpu.memory_space<vmem>>, vector<1x1x256xf32>
    %5 = vector.shape_cast %4 : vector<1x1x256xf32> to vector<1x256xf32>
    %c0_5 = arith.constant 0 : index
    %c0_6 = arith.constant 0 : index
    %c0_7 = arith.constant 0 : index
    %6 = vector.load %arg8[%c0_5, %c0_6, %c0_7] : memref<1x1x256xf32, #tpu.memory_space<vmem>>, vector<1x1x256xf32>
    %7 = vector.shape_cast %6 : vector<1x1x256xf32> to vector<1x256xf32>
    %cst = arith.constant dense<0.000000e+00> : vector<17xf32>
    %8 = vector.multi_reduction <add>, %3, %cst [1] : vector<17x256xf32> to vector<17xf32>
    %9 = vector.shape_cast %8 : vector<17xf32> to vector<17x1xf32>
    %cst_8 = arith.constant 2.560000e+02 : f32
    %10 = vector.broadcast %cst_8 : f32 to vector<17x1xf32>
    %11 = arith.divf %9, %10 : vector<17x1xf32>
    %12 = vector.broadcast %11 : vector<17x1xf32> to vector<17x256xf32>
    %13 = arith.subf %3, %12 : vector<17x256xf32>
    %14 = arith.mulf %13, %13 : vector<17x256xf32>
    %cst_9 = arith.constant dense<0.000000e+00> : vector<17xf32>
    %15 = vector.multi_reduction <add>, %14, %cst_9 [1] : vector<17x256xf32> to vector<17xf32>
    %16 = vector.shape_cast %15 : vector<17xf32> to vector<17x1xf32>
    %cst_10 = arith.constant 2.560000e+02 : f32
    %17 = vector.broadcast %cst_10 : f32 to vector<17x1xf32>
    %18 = arith.divf %16, %17 : vector<17x1xf32>
    %19 = vector.broadcast %11 : vector<17x1xf32> to vector<17x256xf32>
    %20 = arith.subf %3, %19 : vector<17x256xf32>
    %cst_11 = arith.constant 9.99999974E-6 : f32
    %21 = vector.broadcast %cst_11 : f32 to vector<17x1xf32>
    %22 = arith.addf %18, %21 : vector<17x1xf32>
    %23 = math.rsqrt %22 : vector<17x1xf32>
    %24 = vector.broadcast %23 : vector<17x1xf32> to vector<17x256xf32>
    %25 = arith.mulf %20, %24 : vector<17x256xf32>
    %26 = vector.broadcast %5 : vector<1x256xf32> to vector<17x256xf32>
    %27 = arith.mulf %25, %26 : vector<17x256xf32>
    %28 = vector.broadcast %7 : vector<1x256xf32> to vector<17x256xf32>
    %29 = arith.addf %27, %28 : vector<17x256xf32>
    %30 = arith.truncf %29 : vector<17x256xf32> to vector<17x256xbf16>
    %c0_12 = arith.constant 0 : index
    %c0_13 = arith.constant 0 : index
    %c0_14 = arith.constant 0 : index
    %31 = vector.load %arg9[%c0_12, %c0_13, %c0_14] : memref<1x256x768xbf16, #tpu.memory_space<vmem>>, vector<1x256x768xbf16>
    %32 = vector.shape_cast %31 : vector<1x256x768xbf16> to vector<256x768xbf16>
    %cst_15 = arith.constant dense<0.000000e+00> : vector<17x768xf32>
    %33 = tpu.matmul %30, %32, %cst_15 {dimension_numbers = #tpu.dot_dimension_numbers<[1], [0], [0], [1], [0, 0, 1, 1], [], []>} : vector<17x256xbf16>, vector<256x768xbf16>, vector<17x768xf32> -> vector<17x768xf32>
    %c0_16 = arith.constant 0 : index
    %c0_17 = arith.constant 0 : index
    %c0_18 = arith.constant 0 : index
    %34 = vector.load %arg10[%c0_16, %c0_17, %c0_18] : memref<1x1x768xf32, #tpu.memory_space<vmem>>, vector<1x1x768xf32>
    %35 = vector.shape_cast %34 : vector<1x1x768xf32> to vector<1x768xf32>
    %36 = vector.broadcast %35 : vector<1x768xf32> to vector<17x768xf32>
    %37 = arith.addf %33, %36 : vector<17x768xf32>
    %38 = vector.extract_strided_slice %37 {offsets = [0, 0], sizes = [17, 256], strides = [1, 1]} : vector<17x768xf32> to vector<17x256xf32>
    %cst_19 = arith.constant 0.0883883461 : f32
    %39 = vector.broadcast %cst_19 : f32 to vector<17x256xf32>
    %40 = arith.mulf %38, %39 : vector<17x256xf32>
    %41 = vector.shape_cast %40 : vector<17x256xf32> to vector<17x2x128xf32>
    %42 = arith.truncf %41 : vector<17x2x128xf32> to vector<17x2x128xbf16>
    %43 = vector.extract_strided_slice %37 {offsets = [0, 256], sizes = [17, 256], strides = [1, 1]} : vector<17x768xf32> to vector<17x256xf32>
    %44 = vector.shape_cast %43 : vector<17x256xf32> to vector<17x2x128xf32>
    %45 = arith.truncf %44 : vector<17x2x128xf32> to vector<17x2x128xbf16>
    %46 = vector.extract_strided_slice %37 {offsets = [0, 512], sizes = [17, 256], strides = [1, 1]} : vector<17x768xf32> to vector<17x256xf32>
    %47 = vector.shape_cast %46 : vector<17x256xf32> to vector<17x2x128xf32>
    %48 = arith.truncf %47 : vector<17x2x128xf32> to vector<17x2x128xbf16>
    %49 = tpu.transpose %42, [1, 0, 2] : vector<17x2x128xbf16> -> vector<2x17x128xbf16>
    %50 = tpu.transpose %45, [1, 0, 2] : vector<17x2x128xbf16> -> vector<2x17x128xbf16>
    %51 = tpu.transpose %48, [1, 0, 2] : vector<17x2x128xbf16> -> vector<2x17x128xbf16>
    "tpu.trace_start"() <{level = 10 : i32, message = "hqd,hkd->hqk"}> : () -> ()
    %cst_20 = arith.constant dense<0.000000e+00> : vector<2x17x17xf32>
    %52 = tpu.matmul %49, %50, %cst_20 {dimension_numbers = #tpu.dot_dimension_numbers<[2], [2], [1], [1], [0, 0, 0, 1, 1, 1], [0], [0]>} : vector<2x17x128xbf16>, vector<2x17x128xbf16>, vector<2x17x17xf32> -> vector<2x17x17xf32>
    "tpu.trace_stop"() : () -> ()
    %cst_21 = arith.constant dense<0xFF800000> : vector<2x17xf32>
    %53 = vector.multi_reduction <maximumf>, %52, %cst_21 [2] : vector<2x17x17xf32> to vector<2x17xf32>
    %54 = vector.shape_cast %53 : vector<2x17xf32> to vector<2x17x1xf32>
    %55 = vector.broadcast %54 : vector<2x17x1xf32> to vector<2x17x17xf32>
    %56 = arith.subf %52, %55 : vector<2x17x17xf32>
    %57 = math.exp %56 : vector<2x17x17xf32>
    %cst_22 = arith.constant dense<0.000000e+00> : vector<2x17xf32>
    %58 = vector.multi_reduction <add>, %57, %cst_22 [2] : vector<2x17x17xf32> to vector<2x17xf32>
    %59 = vector.shape_cast %58 : vector<2x17xf32> to vector<2x17x1xf32>
    %60 = tpu.reciprocal %59 {approx = true} : vector<2x17x1xf32> -> vector<2x17x1xf32>
    %61 = vector.broadcast %60 : vector<2x17x1xf32> to vector<2x17x17xf32>
    %62 = arith.mulf %57, %61 : vector<2x17x17xf32>
    %63 = arith.truncf %62 : vector<2x17x17xf32> to vector<2x17x17xbf16>
    "tpu.trace_start"() <{level = 10 : i32, message = "hqk,hkd->hqd"}> : () -> ()
    %cst_23 = arith.constant dense<0.000000e+00> : vector<2x17x128xf32>
    %64 = tpu.matmul %63, %51, %cst_23 {dimension_numbers = #tpu.dot_dimension_numbers<[2], [1], [1], [2], [0, 0, 0, 1, 1, 2], [0], [0]>} : vector<2x17x17xbf16>, vector<2x17x128xbf16>, vector<2x17x128xf32> -> vector<2x17x128xf32>
    "tpu.trace_stop"() : () -> ()
    %65 = tpu.transpose %64, [1, 0, 2] : vector<2x17x128xf32> -> vector<17x2x128xf32>
    %66 = vector.shape_cast %65 : vector<17x2x128xf32> to vector<17x256xf32>
    %67 = arith.truncf %66 : vector<17x256xf32> to vector<17x256xbf16>
    %c0_24 = arith.constant 0 : index
    %c0_25 = arith.constant 0 : index
    %c0_26 = arith.constant 0 : index
    %68 = vector.load %arg11[%c0_24, %c0_25, %c0_26] : memref<1x256x256xbf16, #tpu.memory_space<vmem>>, vector<1x256x256xbf16>
    %69 = vector.shape_cast %68 : vector<1x256x256xbf16> to vector<256x256xbf16>
    %cst_27 = arith.constant dense<0.000000e+00> : vector<17x256xf32>
    %70 = tpu.matmul %67, %69, %cst_27 {dimension_numbers = #tpu.dot_dimension_numbers<[1], [0], [0], [1], [0, 0, 1, 1], [], []>} : vector<17x256xbf16>, vector<256x256xbf16>, vector<17x256xf32> -> vector<17x256xf32>
    %c0_28 = arith.constant 0 : index
    %c0_29 = arith.constant 0 : index
    %c0_30 = arith.constant 0 : index
    %71 = vector.load %arg12[%c0_28, %c0_29, %c0_30] : memref<1x1x256xf32, #tpu.memory_space<vmem>>, vector<1x1x256xf32>
    %72 = vector.shape_cast %71 : vector<1x1x256xf32> to vector<1x256xf32>
    %73 = vector.broadcast %72 : vector<1x256xf32> to vector<17x256xf32>
    %74 = arith.addf %70, %73 : vector<17x256xf32>
    %75 = arith.addf %3, %74 : vector<17x256xf32>
    %c0_31 = arith.constant 0 : index
    %c0_32 = arith.constant 0 : index
    %c0_33 = arith.constant 0 : index
    %76 = vector.load %arg13[%c0_31, %c0_32, %c0_33] : memref<1x1x256xf32, #tpu.memory_space<vmem>>, vector<1x1x256xf32>
    %77 = vector.shape_cast %76 : vector<1x1x256xf32> to vector<1x256xf32>
    %c0_34 = arith.constant 0 : index
    %c0_35 = arith.constant 0 : index
    %c0_36 = arith.constant 0 : index
    %78 = vector.load %arg14[%c0_34, %c0_35, %c0_36] : memref<1x1x256xf32, #tpu.memory_space<vmem>>, vector<1x1x256xf32>
    %79 = vector.shape_cast %78 : vector<1x1x256xf32> to vector<1x256xf32>
    %cst_37 = arith.constant dense<0.000000e+00> : vector<17xf32>
    %80 = vector.multi_reduction <add>, %75, %cst_37 [1] : vector<17x256xf32> to vector<17xf32>
    %81 = vector.shape_cast %80 : vector<17xf32> to vector<17x1xf32>
    %cst_38 = arith.constant 2.560000e+02 : f32
    %82 = vector.broadcast %cst_38 : f32 to vector<17x1xf32>
    %83 = arith.divf %81, %82 : vector<17x1xf32>
    %84 = vector.broadcast %83 : vector<17x1xf32> to vector<17x256xf32>
    %85 = arith.subf %75, %84 : vector<17x256xf32>
    %86 = arith.mulf %85, %85 : vector<17x256xf32>
    %cst_39 = arith.constant dense<0.000000e+00> : vector<17xf32>
    %87 = vector.multi_reduction <add>, %86, %cst_39 [1] : vector<17x256xf32> to vector<17xf32>
    %88 = vector.shape_cast %87 : vector<17xf32> to vector<17x1xf32>
    %cst_40 = arith.constant 2.560000e+02 : f32
    %89 = vector.broadcast %cst_40 : f32 to vector<17x1xf32>
    %90 = arith.divf %88, %89 : vector<17x1xf32>
    %91 = vector.broadcast %83 : vector<17x1xf32> to vector<17x256xf32>
    %92 = arith.subf %75, %91 : vector<17x256xf32>
    %cst_41 = arith.constant 9.99999974E-6 : f32
    %93 = vector.broadcast %cst_41 : f32 to vector<17x1xf32>
    %94 = arith.addf %90, %93 : vector<17x1xf32>
    %95 = math.rsqrt %94 : vector<17x1xf32>
    %96 = vector.broadcast %95 : vector<17x1xf32> to vector<17x256xf32>
    %97 = arith.mulf %92, %96 : vector<17x256xf32>
    %98 = vector.broadcast %77 : vector<1x256xf32> to vector<17x256xf32>
    %99 = arith.mulf %97, %98 : vector<17x256xf32>
    %100 = vector.broadcast %79 : vector<1x256xf32> to vector<17x256xf32>
    %101 = arith.addf %99, %100 : vector<17x256xf32>
    %102 = arith.truncf %101 : vector<17x256xf32> to vector<17x256xbf16>
    %c0_42 = arith.constant 0 : index
    %c0_43 = arith.constant 0 : index
    %c0_44 = arith.constant 0 : index
    %103 = vector.load %arg15[%c0_42, %c0_43, %c0_44] : memref<1x256x1024xbf16, #tpu.memory_space<vmem>>, vector<1x256x1024xbf16>
    %104 = vector.shape_cast %103 : vector<1x256x1024xbf16> to vector<256x1024xbf16>
    %cst_45 = arith.constant dense<0.000000e+00> : vector<17x1024xf32>
    %105 = tpu.matmul %102, %104, %cst_45 {dimension_numbers = #tpu.dot_dimension_numbers<[1], [0], [0], [1], [0, 0, 1, 1], [], []>} : vector<17x256xbf16>, vector<256x1024xbf16>, vector<17x1024xf32> -> vector<17x1024xf32>
    %c0_46 = arith.constant 0 : index
    %c0_47 = arith.constant 0 : index
    %c0_48 = arith.constant 0 : index
    %106 = vector.load %arg16[%c0_46, %c0_47, %c0_48] : memref<1x1x1024xf32, #tpu.memory_space<vmem>>, vector<1x1x1024xf32>
    %107 = vector.shape_cast %106 : vector<1x1x1024xf32> to vector<1x1024xf32>
    %108 = vector.broadcast %107 : vector<1x1024xf32> to vector<17x1024xf32>
    %109 = arith.addf %105, %108 : vector<17x1024xf32>
    %cst_49 = arith.constant 5.000000e-01 : f32
    %110 = vector.broadcast %cst_49 : f32 to vector<17x1024xf32>
    %111 = arith.mulf %110, %109 : vector<17x1024xf32>
    %cst_50 = arith.constant 4.471500e-02 : f32
    %112 = vector.broadcast %cst_50 : f32 to vector<17x1024xf32>
    %113 = arith.mulf %112, %109 : vector<17x1024xf32>
    %114 = arith.mulf %113, %109 : vector<17x1024xf32>
    %115 = arith.mulf %114, %109 : vector<17x1024xf32>
    %116 = arith.addf %109, %115 : vector<17x1024xf32>
    %cst_51 = arith.constant 0.797884583 : f32
    %117 = vector.broadcast %cst_51 : f32 to vector<17x1024xf32>
    %118 = arith.mulf %117, %116 : vector<17x1024xf32>
    %119 = math.tanh %118 : vector<17x1024xf32>
    %cst_52 = arith.constant 1.000000e+00 : f32
    %120 = vector.broadcast %cst_52 : f32 to vector<17x1024xf32>
    %121 = arith.addf %120, %119 : vector<17x1024xf32>
    %122 = arith.mulf %111, %121 : vector<17x1024xf32>
    %123 = arith.truncf %122 : vector<17x1024xf32> to vector<17x1024xbf16>
    %c0_53 = arith.constant 0 : index
    %c0_54 = arith.constant 0 : index
    %c0_55 = arith.constant 0 : index
    %124 = vector.load %arg17[%c0_53, %c0_54, %c0_55] : memref<1x1024x256xbf16, #tpu.memory_space<vmem>>, vector<1x1024x256xbf16>
    %125 = vector.shape_cast %124 : vector<1x1024x256xbf16> to vector<1024x256xbf16>
    %cst_56 = arith.constant dense<0.000000e+00> : vector<17x256xf32>
    %126 = tpu.matmul %123, %125, %cst_56 {dimension_numbers = #tpu.dot_dimension_numbers<[1], [0], [0], [1], [0, 0, 1, 1], [], []>} : vector<17x1024xbf16>, vector<1024x256xbf16>, vector<17x256xf32> -> vector<17x256xf32>
    %c0_57 = arith.constant 0 : index
    %c0_58 = arith.constant 0 : index
    %c0_59 = arith.constant 0 : index
    %127 = vector.load %arg18[%c0_57, %c0_58, %c0_59] : memref<1x1x256xf32, #tpu.memory_space<vmem>>, vector<1x1x256xf32>
    %128 = vector.shape_cast %127 : vector<1x1x256xf32> to vector<1x256xf32>
    %129 = vector.broadcast %128 : vector<1x256xf32> to vector<17x256xf32>
    %130 = arith.addf %126, %129 : vector<17x256xf32>
    %131 = arith.addf %75, %130 : vector<17x256xf32>
    %c0_60 = arith.constant 0 : index
    %c0_61 = arith.constant 0 : index
    %132 = vector.load %arg24[%c0_60, %c0_61] : memref<17x256xf32, #tpu.memory_space<vmem>>, vector<17x256xf32>
    tpu.vector_store %arg24[%c0_60, %c0_61], %131 {strides = array<i32>} : memref<17x256xf32, #tpu.memory_space<vmem>>, vector<17x256xf32>,
    %c1_i32 = arith.constant 1 : i32
    %133 = arith.cmpi eq, %arg1, %c1_i32 : i32
    %134 = arith.extui %133 : i1 to i32
    %c0_i32_62 = arith.constant 0 : i32
    %135 = arith.cmpi ne, %134, %c0_i32_62 : i32
    scf.if %135 {
      %136 = vector.extract_strided_slice %131 {offsets = [1, 0], sizes = [16, 256], strides = [1, 1]} : vector<17x256xf32> to vector<16x256xf32>
      %c0_63 = arith.constant 0 : index
      %c0_64 = arith.constant 0 : index
      %137 = vector.load %arg19[%c0_63, %c0_64] : memref<1x256xf32, #tpu.memory_space<vmem>>, vector<1x256xf32>
      %c0_65 = arith.constant 0 : index
      %c0_66 = arith.constant 0 : index
      %138 = vector.load %arg20[%c0_65, %c0_66] : memref<1x256xf32, #tpu.memory_space<vmem>>, vector<1x256xf32>
      %cst_67 = arith.constant dense<0.000000e+00> : vector<16xf32>
      %139 = vector.multi_reduction <add>, %136, %cst_67 [1] : vector<16x256xf32> to vector<16xf32>
      %140 = vector.shape_cast %139 : vector<16xf32> to vector<16x1xf32>
      %cst_68 = arith.constant 2.560000e+02 : f32
      %141 = vector.broadcast %cst_68 : f32 to vector<16x1xf32>
      %142 = arith.divf %140, %141 : vector<16x1xf32>
      %143 = vector.broadcast %142 : vector<16x1xf32> to vector<16x256xf32>
      %144 = arith.subf %136, %143 : vector<16x256xf32>
      %145 = arith.mulf %144, %144 : vector<16x256xf32>
      %cst_69 = arith.constant dense<0.000000e+00> : vector<16xf32>
      %146 = vector.multi_reduction <add>, %145, %cst_69 [1] : vector<16x256xf32> to vector<16xf32>
      %147 = vector.shape_cast %146 : vector<16xf32> to vector<16x1xf32>
      %cst_70 = arith.constant 2.560000e+02 : f32
      %148 = vector.broadcast %cst_70 : f32 to vector<16x1xf32>
      %149 = arith.divf %147, %148 : vector<16x1xf32>
      %150 = vector.broadcast %142 : vector<16x1xf32> to vector<16x256xf32>
      %151 = arith.subf %136, %150 : vector<16x256xf32>
      %cst_71 = arith.constant 9.99999974E-6 : f32
      %152 = vector.broadcast %cst_71 : f32 to vector<16x1xf32>
      %153 = arith.addf %149, %152 : vector<16x1xf32>
      %154 = math.rsqrt %153 : vector<16x1xf32>
      %155 = vector.broadcast %154 : vector<16x1xf32> to vector<16x256xf32>
      %156 = arith.mulf %151, %155 : vector<16x256xf32>
      %157 = vector.broadcast %137 : vector<1x256xf32> to vector<16x256xf32>
      %158 = arith.mulf %156, %157 : vector<16x256xf32>
      %159 = vector.broadcast %138 : vector<1x256xf32> to vector<16x256xf32>
      %160 = arith.addf %158, %159 : vector<16x256xf32>
      %161 = arith.truncf %160 : vector<16x256xf32> to vector<16x256xbf16>
      %c0_72 = arith.constant 0 : index
      %c0_73 = arith.constant 0 : index
      %162 = vector.load %arg21[%c0_72, %c0_73] : memref<256x128xbf16, #tpu.memory_space<vmem>>, vector<256x128xbf16>
      %cst_74 = arith.constant dense<0.000000e+00> : vector<16x128xf32>
      %163 = tpu.matmul %161, %162, %cst_74 {dimension_numbers = #tpu.dot_dimension_numbers<[1], [0], [0], [1], [0, 0, 1, 1], [], []>} : vector<16x256xbf16>, vector<256x128xbf16>, vector<16x128xf32> -> vector<16x128xf32>
      %c0_75 = arith.constant 0 : index
      %c0_76 = arith.constant 0 : index
      %164 = vector.load %arg22[%c0_75, %c0_76] : memref<1x128xf32, #tpu.memory_space<vmem>>, vector<1x128xf32>
      %165 = vector.broadcast %164 : vector<1x128xf32> to vector<16x128xf32>
      %166 = arith.addf %163, %165 : vector<16x128xf32>
      %c0_77 = arith.constant 0 : index
      %c0_78 = arith.constant 0 : index
      %c0_79 = arith.constant 0 : index
      %167 = vector.load %arg23[%c0_77, %c0_78, %c0_79] : memref<1x16x128xf32, #tpu.memory_space<vmem>>, vector<1x16x128xf32>
      %168 = vector.shape_cast %167 : vector<1x16x128xf32> to vector<16x128xf32>
      %169 = vector.shape_cast %166 : vector<16x128xf32> to vector<1x16x128xf32>
      tpu.vector_store %arg23[%c0_77, %c0_78, %c0_79], %169 {strides = array<i32>} : memref<1x16x128xf32, #tpu.memory_space<vmem>>, vector<1x16x128xf32>,
    } else {
    }
    return
  }
  func.func @transform_0(%arg0: i32, %arg1: i32) -> (i32, i32, i32) {
    %c0_i32 = arith.constant 0 : i32
    %c0_i32_0 = arith.constant 0 : i32
    %c0_i32_1 = arith.constant 0 : i32
    return %arg0, %c0_i32, %c0_i32_0 : i32, i32, i32
  }
  func.func @transform_1(%arg0: i32, %arg1: i32) -> (i32, i32) {
    %c0_i32 = arith.constant 0 : i32
    %c0_i32_0 = arith.constant 0 : i32
    %c0_i32_1 = arith.constant 0 : i32
    return %c0_i32, %c0_i32_0 : i32, i32
  }
  func.func @transform_2(%arg0: i32, %arg1: i32) -> (i32, i32) {
    %c0_i32 = arith.constant 0 : i32
    %c0_i32_0 = arith.constant 0 : i32
    %c0_i32_1 = arith.constant 0 : i32
    return %c0_i32, %c0_i32_0 : i32, i32
  }
  func.func @transform_3(%arg0: i32, %arg1: i32) -> (i32, i32) {
    %c0_i32 = arith.constant 0 : i32
    %c0_i32_0 = arith.constant 0 : i32
    %c0_i32_1 = arith.constant 0 : i32
    return %c0_i32, %c0_i32_0 : i32, i32
  }
  func.func @transform_4(%arg0: i32, %arg1: i32) -> (i32, i32) {
    %c0_i32 = arith.constant 0 : i32
    %c0_i32_0 = arith.constant 0 : i32
    %c0_i32_1 = arith.constant 0 : i32
    return %c0_i32, %c0_i32_0 : i32, i32
  }
  func.func @transform_5(%arg0: i32, %arg1: i32) -> (i32, i32, i32) {
    %c0_i32 = arith.constant 0 : i32
    %c0_i32_0 = arith.constant 0 : i32
    %c0_i32_1 = arith.constant 0 : i32
    return %arg1, %c0_i32, %c0_i32_0 : i32, i32, i32
  }
  func.func @transform_6(%arg0: i32, %arg1: i32) -> (i32, i32, i32) {
    %c0_i32 = arith.constant 0 : i32
    %c0_i32_0 = arith.constant 0 : i32
    %c0_i32_1 = arith.constant 0 : i32
    return %arg1, %c0_i32, %c0_i32_0 : i32, i32, i32
  }
  func.func @transform_7(%arg0: i32, %arg1: i32) -> (i32, i32, i32) {
    %c0_i32 = arith.constant 0 : i32
    %c0_i32_0 = arith.constant 0 : i32
    %c0_i32_1 = arith.constant 0 : i32
    return %arg1, %c0_i32, %c0_i32_0 : i32, i32, i32
  }
  func.func @transform_8(%arg0: i32, %arg1: i32) -> (i32, i32, i32) {
    %c0_i32 = arith.constant 0 : i32
    %c0_i32_0 = arith.constant 0 : i32
    %c0_i32_1 = arith.constant 0 : i32
    return %arg1, %c0_i32, %c0_i32_0 : i32, i32, i32
  }
  func.func @transform_9(%arg0: i32, %arg1: i32) -> (i32, i32, i32) {
    %c0_i32 = arith.constant 0 : i32
    %c0_i32_0 = arith.constant 0 : i32
    %c0_i32_1 = arith.constant 0 : i32
    return %arg1, %c0_i32, %c0_i32_0 : i32, i32, i32
  }
  func.func @transform_10(%arg0: i32, %arg1: i32) -> (i32, i32, i32) {
    %c0_i32 = arith.constant 0 : i32
    %c0_i32_0 = arith.constant 0 : i32
    %c0_i32_1 = arith.constant 0 : i32
    return %arg1, %c0_i32, %c0_i32_0 : i32, i32, i32
  }
  func.func @transform_11(%arg0: i32, %arg1: i32) -> (i32, i32, i32) {
    %c0_i32 = arith.constant 0 : i32
    %c0_i32_0 = arith.constant 0 : i32
    %c0_i32_1 = arith.constant 0 : i32
    return %arg1, %c0_i32, %c0_i32_0 : i32, i32, i32
  }
  func.func @transform_12(%arg0: i32, %arg1: i32) -> (i32, i32, i32) {
    %c0_i32 = arith.constant 0 : i32
    %c0_i32_0 = arith.constant 0 : i32
    %c0_i32_1 = arith.constant 0 : i32
    return %arg1, %c0_i32, %c0_i32_0 : i32, i32, i32
  }
  func.func @transform_13(%arg0: i32, %arg1: i32) -> (i32, i32, i32) {
    %c0_i32 = arith.constant 0 : i32
    %c0_i32_0 = arith.constant 0 : i32
    %c0_i32_1 = arith.constant 0 : i32
    return %arg1, %c0_i32, %c0_i32_0 : i32, i32, i32
  }
  func.func @transform_14(%arg0: i32, %arg1: i32) -> (i32, i32, i32) {
    %c0_i32 = arith.constant 0 : i32
    %c0_i32_0 = arith.constant 0 : i32
    %c0_i32_1 = arith.constant 0 : i32
    return %arg1, %c0_i32, %c0_i32_0 : i32, i32, i32
  }
  func.func @transform_15(%arg0: i32, %arg1: i32) -> (i32, i32, i32) {
    %c0_i32 = arith.constant 0 : i32
    %c0_i32_0 = arith.constant 0 : i32
    %c0_i32_1 = arith.constant 0 : i32
    return %arg1, %c0_i32, %c0_i32_0 : i32, i32, i32
  }
  func.func @transform_16(%arg0: i32, %arg1: i32) -> (i32, i32, i32) {
    %c0_i32 = arith.constant 0 : i32
    %c0_i32_0 = arith.constant 0 : i32
    %c0_i32_1 = arith.constant 0 : i32
    return %arg1, %c0_i32, %c0_i32_0 : i32, i32, i32
  }
  func.func @transform_17(%arg0: i32, %arg1: i32) -> (i32, i32) {
    %c0_i32 = arith.constant 0 : i32
    %c0_i32_0 = arith.constant 0 : i32
    %c0_i32_1 = arith.constant 0 : i32
    return %c0_i32, %c0_i32_0 : i32, i32
  }
  func.func @transform_18(%arg0: i32, %arg1: i32) -> (i32, i32) {
    %c0_i32 = arith.constant 0 : i32
    %c0_i32_0 = arith.constant 0 : i32
    %c0_i32_1 = arith.constant 0 : i32
    return %c0_i32, %c0_i32_0 : i32, i32
  }
  func.func @transform_19(%arg0: i32, %arg1: i32) -> (i32, i32) {
    %c0_i32 = arith.constant 0 : i32
    %c0_i32_0 = arith.constant 0 : i32
    %c0_i32_1 = arith.constant 0 : i32
    return %c0_i32, %c0_i32_0 : i32, i32
  }
  func.func @transform_20(%arg0: i32, %arg1: i32) -> (i32, i32) {
    %c0_i32 = arith.constant 0 : i32
    %c0_i32_0 = arith.constant 0 : i32
    %c0_i32_1 = arith.constant 0 : i32
    return %c0_i32, %c0_i32_0 : i32, i32
  }
  func.func @transform_21(%arg0: i32, %arg1: i32) -> (i32, i32, i32) {
    %c0_i32 = arith.constant 0 : i32
    %c0_i32_0 = arith.constant 0 : i32
    %c0_i32_1 = arith.constant 0 : i32
    return %arg0, %c0_i32, %c0_i32_0 : i32, i32, i32
  }
}

</mosaic_0001>

<llo_original>
// kernel: vit_forward.1
$region0: #{vit_forward.1}
  #allocation0 [shape = 'u32[]', space=smem, size = 0x4, offset = 0x4, fixed_abs, tag = 'smem constant byte address 0x4 - core index']
  #allocation1 [shape = 'u32[144,128]{1,0:T(1,128)}', space=vmem, size = 0x12000, scoped, tag = 'internal scratch']
  #allocation2 [shape = 'f32[17,256]{1,0:T(8,128)}', space=vmem, size = 0x6000, scoped, tag = 'scratch operand']
  %s0 = inlined_call_operand.vmem [shape: bf16[2,16,48], index: 0, kind: input, shape index: {}]
  %s1 = inlined_call_operand.hbm [shape: bf16[48,256], index: 1, kind: input, shape index: {}]
  %s2 = inlined_call_operand.vmem [shape: f32[1,256], index: 2, kind: input, shape index: {}]
  %s3 = inlined_call_operand.hbm [shape: f32[1,256], index: 3, kind: input, shape index: {}]
  %s4 = inlined_call_operand.vmem [shape: f32[17,256], index: 4, kind: input, shape index: {}]
  %s5 = inlined_call_operand.vmem [shape: f32[2,1,256], index: 5, kind: input, shape index: {}]
  %s6 = inlined_call_operand.hbm [shape: f32[2,1,256], index: 6, kind: input, shape index: {}]
  %s7 = inlined_call_operand.vmem [shape: bf16[2,256,768], index: 7, kind: input, shape index: {}]
  %s8 = inlined_call_operand.hbm [shape: f32[2,1,768], index: 8, kind: input, shape index: {}]
  %s9 = inlined_call_operand.hbm [shape: bf16[2,256,256], index: 9, kind: input, shape index: {}]
  %s10 = inlined_call_operand.hbm [shape: f32[2,1,256], index: 10, kind: input, shape index: {}]
  %s11 = inlined_call_operand.hbm [shape: f32[2,1,256], index: 11, kind: input, shape index: {}]
  %s12 = inlined_call_operand.hbm [shape: f32[2,1,256], index: 12, kind: input, shape index: {}]
  %s13 = inlined_call_operand.hbm [shape: bf16[2,256,1024], index: 13, kind: input, shape index: {}]
  %s14 = inlined_call_operand.hbm [shape: f32[2,1,1024], index: 14, kind: input, shape index: {}]
  %s15 = inlined_call_operand.hbm [shape: bf16[2,1024,256], index: 15, kind: input, shape index: {}]
  %s16 = inlined_call_operand.hbm [shape: f32[2,1,256], index: 16, kind: input, shape index: {}]
  %s17 = inlined_call_operand.vmem [shape: f32[1,256], index: 17, kind: input, shape index: {}]
  %s18 = inlined_call_operand.vmem [shape: f32[1,256], index: 18, kind: input, shape index: {}]
  %s19 = inlined_call_operand.vmem [shape: bf16[256,128], index: 19, kind: input, shape index: {}]
  %s20 = inlined_call_operand.vmem [shape: f32[1,128], index: 20, kind: input, shape index: {}]
  %s21 = inlined_call_operand.vmem [shape: f32[2,16,128], index: 21, kind: output, shape index: {}]
  %s22 = sld [smem:[#allocation0]]
  $region173: #{vit_forward.1} parent=0
    _
  %s24 = ssub.s32 1, %s22
  %s25 = scalar_select 0, %s24, %s22
  $region1: #{vit_forward.1} parent=0
    #allocation3 [shape = 'u8[24576]{0}', space=vmem, size = 0x6000, scoped, tag = 'input window, operand 1, single buffered']
    #allocation4 [shape = 's32[2]{0}', space=sflag, size = 0x8, scoped, tag = 'scoped memory for vit_forward.1']
    #allocation5 [shape = 'u8[1024]{0}', space=vmem, size = 0x400, scoped, tag = 'input window, operand 3, single buffered']
    #allocation6 [shape = 's32[1]{0}', space=sflag, size = 0x4, scoped, tag = 'scoped memory for vit_forward.1']
    #allocation7 [shape = 'u8[2048]{0}', space=vmem, size = 0x800, scoped, tag = 'input window, operand 6']
    #allocation8 [shape = 'u8[6144]{0}', space=vmem, size = 0x1800, scoped, tag = 'input window, operand 8']
    #allocation9 [shape = 'u8[262144]{0}', space=vmem, size = 0x40000, scoped, tag = 'input window, operand 9']
    #allocation10 [shape = 'u8[2048]{0}', space=vmem, size = 0x800, scoped, tag = 'input window, operand 10']
    #allocation11 [shape = 'u8[2048]{0}', space=vmem, size = 0x800, scoped, tag = 'input window, operand 11']
    #allocation12 [shape = 'u8[2048]{0}', space=vmem, size = 0x800, scoped, tag = 'input window, operand 12']
    #allocation13 [shape = 'u8[1048576]{0}', space=vmem, size = 0x100000, scoped, tag = 'input window, operand 13']
    #allocation14 [shape = 'u8[8192]{0}', space=vmem, size = 0x2000, scoped, tag = 'input window, operand 14']
    #allocation15 [shape = 'u8[1048576]{0}', space=vmem, size = 0x100000, scoped, tag = 'input window, operand 15']
    #allocation16 [shape = 'u8[2048]{0}', space=vmem, size = 0x800, scoped, tag = 'input window, operand 16']
    %26 = vsyncpa [#allocation4], 0
    %27 = vsyncpa [#allocation6], 0
    loop: start=0, step=1, limit=6
    $region2: #{vit_forward.1} parent=1 // loop_pre_header
      _
    $region3: #{vit_forward.1} parent=1 // loop_header
      %s29 = sphi 0, %s33
      %p30 = scmp.ge.s32.totalorder %s29, 6
      %s36 = sphi 0, %s48
      %s37 = sphi 0, %s44
      %s38 = sphi 0, %s36
      %s39 = sphi 0, %s37
      %s40 = sphi 0, %s38
      %s41 = sphi 0, %s39
      %s51 = sphi 0, %s53
      %s54 = sphi 0, %s51
      %s55 = sphi 0, %s54
      %s71 = sphi 0, %s55
      %s75 = sphi 0, %s75
      %s77 = sphi 0, %s75
      %s78 = sphi 0, %s77
      %s92 = sphi 0, %s78
      %s96 = sphi 0, %s96
      %s98 = sphi 0, %s96
      %s99 = sphi 0, %s98
      %s113 = sphi 0, %s99
      %s117 = sphi 0, %s117
      %s119 = sphi 0, %s117
      %s120 = sphi 0, %s119
      %s134 = sphi 0, %s120
      %s138 = sphi 0, %s138
      %s140 = sphi 0, %s138
      %s141 = sphi 0, %s140
      %s155 = sphi 0, %s141
      %s161 = sphi 0, %s163
      %s164 = sphi 0, %s161
      %s165 = sphi 0, %s164
      %s181 = sphi 0, %s165
      %s187 = sphi 0, %s189
      %s190 = sphi 0, %s187
      %s191 = sphi 0, %s190
      %s207 = sphi 0, %s191
      %s213 = sphi 0, %s215
      %s216 = sphi 0, %s213
      %s217 = sphi 0, %s216
      %s233 = sphi 0, %s217
      %s239 = sphi 0, %s241
      %s242 = sphi 0, %s239
      %s243 = sphi 0, %s242
      %s259 = sphi 0, %s243
      %s265 = sphi 0, %s267
      %s268 = sphi 0, %s265
      %s269 = sphi 0, %s268
      %s285 = sphi 0, %s269
      %s291 = sphi 0, %s293
      %s294 = sphi 0, %s291
      %s295 = sphi 0, %s294
      %s311 = sphi 0, %s295
      %s317 = sphi 0, %s319
      %s320 = sphi 0, %s317
      %s321 = sphi 0, %s320
      %s337 = sphi 0, %s321
      %s343 = sphi 0, %s345
      %s346 = sphi 0, %s343
      %s347 = sphi 0, %s346
      %s363 = sphi 0, %s347
      %s369 = sphi 0, %s371
      %s372 = sphi 0, %s369
      %s373 = sphi 0, %s372
      %s389 = sphi 0, %s373
      %s395 = sphi 0, %s397
      %s398 = sphi 0, %s395
      %s399 = sphi 0, %s398
      %s415 = sphi 0, %s399
      %s421 = sphi 0, %s423
      %s424 = sphi 0, %s421
      %s425 = sphi 0, %s424
      %s441 = sphi 0, %s425
      %s447 = sphi 0, %s449
      %s450 = sphi 0, %s447
      %s451 = sphi 0, %s450
      %s467 = sphi 0, %s451
      %s471 = sphi 0, %s471
      %s473 = sphi 0, %s471
      %s474 = sphi 0, %s473
      %s488 = sphi 0, %s474
      %s492 = sphi 0, %s492
      %s494 = sphi 0, %s492
      %s495 = sphi 0, %s494
      %s509 = sphi 0, %s495
      %s513 = sphi 0, %s513
      %s515 = sphi 0, %s513
      %s516 = sphi 0, %s515
      %s530 = sphi 0, %s516
      %s534 = sphi 0, %s534
      %s536 = sphi 0, %s534
      %s537 = sphi 0, %s536
      %s551 = sphi 0, %s537
      %s557 = sphi 0, %s559
      %s560 = sphi 0, %s557
      %s561 = sphi 0, %s560
      %s577 = sphi 0, %s561
    $region4: #{vit_forward.1} parent=1 // loop_header_branch
      %32 = sbr.rel (%p30) target = $region8
    $region5: #{vit_forward.1} parent=1 // loop_body
      %s34 = ssub.s32 %s29, 1
      %s35 = ssub.s32 %s29, 2
      %s42 = sadd.s32 1, %s37
      %p43 = scmp.ge.s32.totalorder %s42, 2
      %s44 = scalar_select %p43, 0, %s42
      %s45 = sadd.s32 1, %s36
      %s46 = scalar_select %p43, %s45, %s36
      %p47 = scmp.ge.s32.totalorder %s46, 2
      %s48 = scalar_select %p47, 0, %s46
      %s49 = ssub.s32 %s36, %s48
      %p50 = scmp.eq.s32.totalorder %s49, 0
      %s52 = sadd.s32 %s51, 1
      %s53 = scalar_select %p50, %s51, %s52
      %p56 = pneg %p50
      %p57 = scmp.eq.s32.totalorder %s29, 3
      %p58 = por %p56, %p57
      %p59 = scmp.ne.s32.totalorder %s51, %s54
      %p60 = scmp.eq.s32.totalorder %s29, 0
      %p61 = por %p59, %p60
      %p62 = scmp.ne.s32.totalorder %s51, %s54
      %p63 = scmp.eq.s32.totalorder %s34, 3
      %p64 = por %p62, %p63
      %p65 = scmp.ne.s32.totalorder %s54, %s55
      %p66 = scmp.eq.s32.totalorder %s34, 0
      %p67 = por %p65, %p66
      %p68 = scmp.ne.s32.totalorder %s54, %s55
      %p69 = scmp.eq.s32.totalorder %s35, 3
      %p70 = por %p68, %p69
      %p72 = scmp.ne.s32.totalorder %s55, %s71
      %p73 = scmp.eq.s32.totalorder %s35, 0
      %p74 = por %p72, %p73
      %s76 = sadd.s32 %s75, 1
      %p79 = scmp.eq.s32.totalorder %s29, 3
      %p80 = scmp.ne.s32.totalorder %s75, %s77
      %p81 = scmp.eq.s32.totalorder %s29, 0
      %p82 = por %p80, %p81
      %p83 = scmp.ne.s32.totalorder %s75, %s77
      %p84 = scmp.eq.s32.totalorder %s34, 3
      %p85 = por %p83, %p84
      %p86 = scmp.ne.s32.totalorder %s77, %s78
      %p87 = scmp.eq.s32.totalorder %s34, 0
      %p88 = por %p86, %p87
      %p89 = scmp.ne.s32.totalorder %s77, %s78
      %p90 = scmp.eq.s32.totalorder %s35, 3
      %p91 = por %p89, %p90
      %p93 = scmp.ne.s32.totalorder %s78, %s92
      %p94 = scmp.eq.s32.totalorder %s35, 0
      %p95 = por %p93, %p94
      %s97 = sadd.s32 %s96, 1
      %p100 = scmp.eq.s32.totalorder %s29, 3
      %p101 = scmp.ne.s32.totalorder %s96, %s98
      %p102 = scmp.eq.s32.totalorder %s29, 0
      %p103 = por %p101, %p102
      %p104 = scmp.ne.s32.totalorder %s96, %s98
      %p105 = scmp.eq.s32.totalorder %s34, 3
      %p106 = por %p104, %p105
      %p107 = scmp.ne.s32.totalorder %s98, %s99
      %p108 = scmp.eq.s32.totalorder %s34, 0
      %p109 = por %p107, %p108
      %p110 = scmp.ne.s32.totalorder %s98, %s99
      %p111 = scmp.eq.s32.totalorder %s35, 3
      %p112 = por %p110, %p111
      %p114 = scmp.ne.s32.totalorder %s99, %s113
      %p115 = scmp.eq.s32.totalorder %s35, 0
      %p116 = por %p114, %p115
      %s118 = sadd.s32 %s117, 1
      %p121 = scmp.eq.s32.totalorder %s29, 3
      %p122 = scmp.ne.s32.totalorder %s117, %s119
      %p123 = scmp.eq.s32.totalorder %s29, 0
      %p124 = por %p122, %p123
      %p125 = scmp.ne.s32.totalorder %s117, %s119
      %p126 = scmp.eq.s32.totalorder %s34, 3
      %p127 = por %p125, %p126
      %p128 = scmp.ne.s32.totalorder %s119, %s120
      %p129 = scmp.eq.s32.totalorder %s34, 0
      %p130 = por %p128, %p129
      %p131 = scmp.ne.s32.totalorder %s119, %s120
      %p132 = scmp.eq.s32.totalorder %s35, 3
      %p133 = por %p131, %p132
      %p135 = scmp.ne.s32.totalorder %s120, %s134
      %p136 = scmp.eq.s32.totalorder %s35, 0
      %p137 = por %p135, %p136
      %s139 = sadd.s32 %s138, 1
      %p142 = scmp.eq.s32.totalorder %s29, 3
      %p143 = scmp.ne.s32.totalorder %s138, %s140
      %p144 = scmp.eq.s32.totalorder %s29, 0
      %p145 = por %p143, %p144
      %p146 = scmp.ne.s32.totalorder %s138, %s140
      %p147 = scmp.eq.s32.totalorder %s34, 3
      %p148 = por %p146, %p147
      %p149 = scmp.ne.s32.totalorder %s140, %s141
      %p150 = scmp.eq.s32.totalorder %s34, 0
      %p151 = por %p149, %p150
      %p152 = scmp.ne.s32.totalorder %s140, %s141
      %p153 = scmp.eq.s32.totalorder %s35, 3
      %p154 = por %p152, %p153
      %p156 = scmp.ne.s32.totalorder %s141, %s155
      %p157 = scmp.eq.s32.totalorder %s35, 0
      %p158 = por %p156, %p157
      %s159 = ssub.s32 %s37, %s44
      %p160 = scmp.eq.s32.totalorder %s159, 0
      %s162 = sadd.s32 %s161, 1
      %s163 = scalar_select %p160, %s161, %s162
      %p166 = pneg %p160
      %p167 = scmp.eq.s32.totalorder %s29, 3
      %p168 = por %p166, %p167
      %p169 = scmp.ne.s32.totalorder %s161, %s164
      %p170 = scmp.eq.s32.totalorder %s29, 0
      %p171 = por %p169, %p170
      %p172 = scmp.ne.s32.totalorder %s161, %s164
      %p173 = scmp.eq.s32.totalorder %s34, 3
      %p174 = por %p172, %p173
      %p175 = scmp.ne.s32.totalorder %s164, %s165
      %p176 = scmp.eq.s32.totalorder %s34, 0
      %p177 = por %p175, %p176
      %p178 = scmp.ne.s32.totalorder %s164, %s165
      %p179 = scmp.eq.s32.totalorder %s35, 3
      %p180 = por %p178, %p179
      %p182 = scmp.ne.s32.totalorder %s165, %s181
      %p183 = scmp.eq.s32.totalorder %s35, 0
      %p184 = por %p182, %p183
      %s185 = ssub.s32 %s37, %s44
      %p186 = scmp.eq.s32.totalorder %s185, 0
      %s188 = sadd.s32 %s187, 1
      %s189 = scalar_select %p186, %s187, %s188
      %p192 = pneg %p186
      %p193 = scmp.eq.s32.totalorder %s29, 3
      %p194 = por %p192, %p193
      %p195 = scmp.ne.s32.totalorder %s187, %s190
      %p196 = scmp.eq.s32.totalorder %s29, 0
      %p197 = por %p195, %p196
      %p198 = scmp.ne.s32.totalorder %s187, %s190
      %p199 = scmp.eq.s32.totalorder %s34, 3
      %p200 = por %p198, %p199
      %p201 = scmp.ne.s32.totalorder %s190, %s191
      %p202 = scmp.eq.s32.totalorder %s34, 0
      %p203 = por %p201, %p202
      %p204 = scmp.ne.s32.totalorder %s190, %s191
      %p205 = scmp.eq.s32.totalorder %s35, 3
      %p206 = por %p204, %p205
      %p208 = scmp.ne.s32.totalorder %s191, %s207
      %p209 = scmp.eq.s32.totalorder %s35, 0
      %p210 = por %p208, %p209
      %s211 = ssub.s32 %s37, %s44
      %p212 = scmp.eq.s32.totalorder %s211, 0
      %s214 = sadd.s32 %s213, 1
      %s215 = scalar_select %p212, %s213, %s214
      %p218 = pneg %p212
      %p219 = scmp.eq.s32.totalorder %s29, 3
      %p220 = por %p218, %p219
      %p221 = scmp.ne.s32.totalorder %s213, %s216
      %p222 = scmp.eq.s32.totalorder %s29, 0
      %p223 = por %p221, %p222
      %p224 = scmp.ne.s32.totalorder %s213, %s216
      %p225 = scmp.eq.s32.totalorder %s34, 3
      %p226 = por %p224, %p225
      %p227 = scmp.ne.s32.totalorder %s216, %s217
      %p228 = scmp.eq.s32.totalorder %s34, 0
      %p229 = por %p227, %p228
      %p230 = scmp.ne.s32.totalorder %s216, %s217
      %p231 = scmp.eq.s32.totalorder %s35, 3
      %p232 = por %p230, %p231
      %p234 = scmp.ne.s32.totalorder %s217, %s233
      %p235 = scmp.eq.s32.totalorder %s35, 0
      %p236 = por %p234, %p235
      %s237 = ssub.s32 %s37, %s44
      %p238 = scmp.eq.s32.totalorder %s237, 0
      %s240 = sadd.s32 %s239, 1
      %s241 = scalar_select %p238, %s239, %s240
      %p244 = pneg %p238
      %p245 = scmp.eq.s32.totalorder %s29, 3
      %p246 = por %p244, %p245
      %p247 = scmp.ne.s32.totalorder %s239, %s242
      %p248 = scmp.eq.s32.totalorder %s29, 0
      %p249 = por %p247, %p248
      %p250 = scmp.ne.s32.totalorder %s239, %s242
      %p251 = scmp.eq.s32.totalorder %s34, 3
      %p252 = por %p250, %p251
      %p253 = scmp.ne.s32.totalorder %s242, %s243
      %p254 = scmp.eq.s32.totalorder %s34, 0
      %p255 = por %p253, %p254
      %p256 = scmp.ne.s32.totalorder %s242, %s243
      %p257 = scmp.eq.s32.totalorder %s35, 3
      %p258 = por %p256, %p257
      %p260 = scmp.ne.s32.totalorder %s243, %s259
      %p261 = scmp.eq.s32.totalorder %s35, 0
      %p262 = por %p260, %p261
      %s263 = ssub.s32 %s37, %s44
      %p264 = scmp.eq.s32.totalorder %s263, 0
      %s266 = sadd.s32 %s265, 1
      %s267 = scalar_select %p264, %s265, %s266
      %p270 = pneg %p264
      %p271 = scmp.eq.s32.totalorder %s29, 3
      %p272 = por %p270, %p271
      %p273 = scmp.ne.s32.totalorder %s265, %s268
      %p274 = scmp.eq.s32.totalorder %s29, 0
      %p275 = por %p273, %p274
      %p276 = scmp.ne.s32.totalorder %s265, %s268
      %p277 = scmp.eq.s32.totalorder %s34, 3
      %p278 = por %p276, %p277
      %p279 = scmp.ne.s32.totalorder %s268, %s269
      %p280 = scmp.eq.s32.totalorder %s34, 0
      %p281 = por %p279, %p280
      %p282 = scmp.ne.s32.totalorder %s268, %s269
      %p283 = scmp.eq.s32.totalorder %s35, 3
      %p284 = por %p282, %p283
      %p286 = scmp.ne.s32.totalorder %s269, %s285
      %p287 = scmp.eq.s32.totalorder %s35, 0
      %p288 = por %p286, %p287
      %s289 = ssub.s32 %s37, %s44
      %p290 = scmp.eq.s32.totalorder %s289, 0
      %s292 = sadd.s32 %s291, 1
      %s293 = scalar_select %p290, %s291, %s292
      %p296 = pneg %p290
      %p297 = scmp.eq.s32.totalorder %s29, 3
      %p298 = por %p296, %p297
      %p299 = scmp.ne.s32.totalorder %s291, %s294
      %p300 = scmp.eq.s32.totalorder %s29, 0
      %p301 = por %p299, %p300
      %p302 = scmp.ne.s32.totalorder %s291, %s294
      %p303 = scmp.eq.s32.totalorder %s34, 3
      %p304 = por %p302, %p303
      %p305 = scmp.ne.s32.totalorder %s294, %s295
      %p306 = scmp.eq.s32.totalorder %s34, 0
      %p307 = por %p305, %p306
      %p308 = scmp.ne.s32.totalorder %s294, %s295
      %p309 = scmp.eq.s32.totalorder %s35, 3
      %p310 = por %p308, %p309
      %p312 = scmp.ne.s32.totalorder %s295, %s311
      %p313 = scmp.eq.s32.totalorder %s35, 0
      %p314 = por %p312, %p313
      %s315 = ssub.s32 %s37, %s44
      %p316 = scmp.eq.s32.totalorder %s315, 0
      %s318 = sadd.s32 %s317, 1
      %s319 = scalar_select %p316, %s317, %s318
      %p322 = pneg %p316
      %p323 = scmp.eq.s32.totalorder %s29, 3
      %p324 = por %p322, %p323
      %p325 = scmp.ne.s32.totalorder %s317, %s320
      %p326 = scmp.eq.s32.totalorder %s29, 0
      %p327 = por %p325, %p326
      %p328 = scmp.ne.s32.totalorder %s317, %s320
      %p329 = scmp.eq.s32.totalorder %s34, 3
      %p330 = por %p328, %p329
      %p331 = scmp.ne.s32.totalorder %s320, %s321
      %p332 = scmp.eq.s32.totalorder %s34, 0
      %p333 = por %p331, %p332
      %p334 = scmp.ne.s32.totalorder %s320, %s321
      %p335 = scmp.eq.s32.totalorder %s35, 3
      %p336 = por %p334, %p335
      %p338 = scmp.ne.s32.totalorder %s321, %s337
      %p339 = scmp.eq.s32.totalorder %s35, 0
      %p340 = por %p338, %p339
      %s341 = ssub.s32 %s37, %s44
      %p342 = scmp.eq.s32.totalorder %s341, 0
      %s344 = sadd.s32 %s343, 1
      %s345 = scalar_select %p342, %s343, %s344
      %p348 = pneg %p342
      %p349 = scmp.eq.s32.totalorder %s29, 3
      %p350 = por %p348, %p349
      %p351 = scmp.ne.s32.totalorder %s343, %s346
      %p352 = scmp.eq.s32.totalorder %s29, 0
      %p353 = por %p351, %p352
      %p354 = scmp.ne.s32.totalorder %s343, %s346
      %p355 = scmp.eq.s32.totalorder %s34, 3
      %p356 = por %p354, %p355
      %p357 = scmp.ne.s32.totalorder %s346, %s347
      %p358 = scmp.eq.s32.totalorder %s34, 0
      %p359 = por %p357, %p358
      %p360 = scmp.ne.s32.totalorder %s346, %s347
      %p361 = scmp.eq.s32.totalorder %s35, 3
      %p362 = por %p360, %p361
      %p364 = scmp.ne.s32.totalorder %s347, %s363
      %p365 = scmp.eq.s32.totalorder %s35, 0
      %p366 = por %p364, %p365
      %s367 = ssub.s32 %s37, %s44
      %p368 = scmp.eq.s32.totalorder %s367, 0
      %s370 = sadd.s32 %s369, 1
      %s371 = scalar_select %p368, %s369, %s370
      %p374 = pneg %p368
      %p375 = scmp.eq.s32.totalorder %s29, 3
      %p376 = por %p374, %p375
      %p377 = scmp.ne.s32.totalorder %s369, %s372
      %p378 = scmp.eq.s32.totalorder %s29, 0
      %p379 = por %p377, %p378
      %p380 = scmp.ne.s32.totalorder %s369, %s372
      %p381 = scmp.eq.s32.totalorder %s34, 3
      %p382 = por %p380, %p381
      %p383 = scmp.ne.s32.totalorder %s372, %s373
      %p384 = scmp.eq.s32.totalorder %s34, 0
      %p385 = por %p383, %p384
      %p386 = scmp.ne.s32.totalorder %s372, %s373
      %p387 = scmp.eq.s32.totalorder %s35, 3
      %p388 = por %p386, %p387
      %p390 = scmp.ne.s32.totalorder %s373, %s389
      %p391 = scmp.eq.s32.totalorder %s35, 0
      %p392 = por %p390, %p391
      %s393 = ssub.s32 %s37, %s44
      %p394 = scmp.eq.s32.totalorder %s393, 0
      %s396 = sadd.s32 %s395, 1
      %s397 = scalar_select %p394, %s395, %s396
      %p400 = pneg %p394
      %p401 = scmp.eq.s32.totalorder %s29, 3
      %p402 = por %p400, %p401
      %p403 = scmp.ne.s32.totalorder %s395, %s398
      %p404 = scmp.eq.s32.totalorder %s29, 0
      %p405 = por %p403, %p404
      %p406 = scmp.ne.s32.totalorder %s395, %s398
      %p407 = scmp.eq.s32.totalorder %s34, 3
      %p408 = por %p406, %p407
      %p409 = scmp.ne.s32.totalorder %s398, %s399
      %p410 = scmp.eq.s32.totalorder %s34, 0
      %p411 = por %p409, %p410
      %p412 = scmp.ne.s32.totalorder %s398, %s399
      %p413 = scmp.eq.s32.totalorder %s35, 3
      %p414 = por %p412, %p413
      %p416 = scmp.ne.s32.totalorder %s399, %s415
      %p417 = scmp.eq.s32.totalorder %s35, 0
      %p418 = por %p416, %p417
      %s419 = ssub.s32 %s37, %s44
      %p420 = scmp.eq.s32.totalorder %s419, 0
      %s422 = sadd.s32 %s421, 1
      %s423 = scalar_select %p420, %s421, %s422
      %p426 = pneg %p420
      %p427 = scmp.eq.s32.totalorder %s29, 3
      %p428 = por %p426, %p427
      %p429 = scmp.ne.s32.totalorder %s421, %s424
      %p430 = scmp.eq.s32.totalorder %s29, 0
      %p431 = por %p429, %p430
      %p432 = scmp.ne.s32.totalorder %s421, %s424
      %p433 = scmp.eq.s32.totalorder %s34, 3
      %p434 = por %p432, %p433
      %p435 = scmp.ne.s32.totalorder %s424, %s425
      %p436 = scmp.eq.s32.totalorder %s34, 0
      %p437 = por %p435, %p436
      %p438 = scmp.ne.s32.totalorder %s424, %s425
      %p439 = scmp.eq.s32.totalorder %s35, 3
      %p440 = por %p438, %p439
      %p442 = scmp.ne.s32.totalorder %s425, %s441
      %p443 = scmp.eq.s32.totalorder %s35, 0
      %p444 = por %p442, %p443
      %s445 = ssub.s32 %s37, %s44
      %p446 = scmp.eq.s32.totalorder %s445, 0
      %s448 = sadd.s32 %s447, 1
      %s449 = scalar_select %p446, %s447, %s448
      %p452 = pneg %p446
      %p453 = scmp.eq.s32.totalorder %s29, 3
      %p454 = por %p452, %p453
      %p455 = scmp.ne.s32.totalorder %s447, %s450
      %p456 = scmp.eq.s32.totalorder %s29, 0
      %p457 = por %p455, %p456
      %p458 = scmp.ne.s32.totalorder %s447, %s450
      %p459 = scmp.eq.s32.totalorder %s34, 3
      %p460 = por %p458, %p459
      %p461 = scmp.ne.s32.totalorder %s450, %s451
      %p462 = scmp.eq.s32.totalorder %s34, 0
      %p463 = por %p461, %p462
      %p464 = scmp.ne.s32.totalorder %s450, %s451
      %p465 = scmp.eq.s32.totalorder %s35, 3
      %p466 = por %p464, %p465
      %p468 = scmp.ne.s32.totalorder %s451, %s467
      %p469 = scmp.eq.s32.totalorder %s35, 0
      %p470 = por %p468, %p469
      %s472 = sadd.s32 %s471, 1
      %p475 = scmp.eq.s32.totalorder %s29, 3
      %p476 = scmp.ne.s32.totalorder %s471, %s473
      %p477 = scmp.eq.s32.totalorder %s29, 0
      %p478 = por %p476, %p477
      %p479 = scmp.ne.s32.totalorder %s471, %s473
      %p480 = scmp.eq.s32.totalorder %s34, 3
      %p481 = por %p479, %p480
      %p482 = scmp.ne.s32.totalorder %s473, %s474
      %p483 = scmp.eq.s32.totalorder %s34, 0
      %p484 = por %p482, %p483
      %p485 = scmp.ne.s32.totalorder %s473, %s474
      %p486 = scmp.eq.s32.totalorder %s35, 3
      %p487 = por %p485, %p486
      %p489 = scmp.ne.s32.totalorder %s474, %s488
      %p490 = scmp.eq.s32.totalorder %s35, 0
      %p491 = por %p489, %p490
      %s493 = sadd.s32 %s492, 1
      %p496 = scmp.eq.s32.totalorder %s29, 3
      %p497 = scmp.ne.s32.totalorder %s492, %s494
      %p498 = scmp.eq.s32.totalorder %s29, 0
      %p499 = por %p497, %p498
      %p500 = scmp.ne.s32.totalorder %s492, %s494
      %p501 = scmp.eq.s32.totalorder %s34, 3
      %p502 = por %p500, %p501
      %p503 = scmp.ne.s32.totalorder %s494, %s495
      %p504 = scmp.eq.s32.totalorder %s34, 0
      %p505 = por %p503, %p504
      %p506 = scmp.ne.s32.totalorder %s494, %s495
      %p507 = scmp.eq.s32.totalorder %s35, 3
      %p508 = por %p506, %p507
      %p510 = scmp.ne.s32.totalorder %s495, %s509
      %p511 = scmp.eq.s32.totalorder %s35, 0
      %p512 = por %p510, %p511
      %s514 = sadd.s32 %s513, 1
      %p517 = scmp.eq.s32.totalorder %s29, 3
      %p518 = scmp.ne.s32.totalorder %s513, %s515
      %p519 = scmp.eq.s32.totalorder %s29, 0
      %p520 = por %p518, %p519
      %p521 = scmp.ne.s32.totalorder %s513, %s515
      %p522 = scmp.eq.s32.totalorder %s34, 3
      %p523 = por %p521, %p522
      %p524 = scmp.ne.s32.totalorder %s515, %s516
      %p525 = scmp.eq.s32.totalorder %s34, 0
      %p526 = por %p524, %p525
      %p527 = scmp.ne.s32.totalorder %s515, %s516
      %p528 = scmp.eq.s32.totalorder %s35, 3
      %p529 = por %p527, %p528
      %p531 = scmp.ne.s32.totalorder %s516, %s530
      %p532 = scmp.eq.s32.totalorder %s35, 0
      %p533 = por %p531, %p532
      %s535 = sadd.s32 %s534, 1
      %p538 = scmp.eq.s32.totalorder %s29, 3
      %p539 = scmp.ne.s32.totalorder %s534, %s536
      %p540 = scmp.eq.s32.totalorder %s29, 0
      %p541 = por %p539, %p540
      %p542 = scmp.ne.s32.totalorder %s534, %s536
      %p543 = scmp.eq.s32.totalorder %s34, 3
      %p544 = por %p542, %p543
      %p545 = scmp.ne.s32.totalorder %s536, %s537
      %p546 = scmp.eq.s32.totalorder %s34, 0
      %p547 = por %p545, %p546
      %p548 = scmp.ne.s32.totalorder %s536, %s537
      %p549 = scmp.eq.s32.totalorder %s35, 3
      %p550 = por %p548, %p549
      %p552 = scmp.ne.s32.totalorder %s537, %s551
      %p553 = scmp.eq.s32.totalorder %s35, 0
      %p554 = por %p552, %p553
      %s555 = ssub.s32 %s36, %s48
      %p556 = scmp.eq.s32.totalorder %s555, 0
      %s558 = sadd.s32 %s557, 1
      %s559 = scalar_select %p556, %s557, %s558
      %p562 = pneg %p556
      %p563 = scmp.eq.s32.totalorder %s29, 3
      %p564 = por %p562, %p563
      %p565 = scmp.ne.s32.totalorder %s557, %s560
      %p566 = scmp.eq.s32.totalorder %s29, 0
      %p567 = por %p565, %p566
      %p568 = scmp.ne.s32.totalorder %s557, %s560
      %p569 = scmp.eq.s32.totalorder %s34, 3
      %p570 = por %p568, %p569
      %p571 = scmp.ne.s32.totalorder %s560, %s561
      %p572 = scmp.eq.s32.totalorder %s34, 0
      %p573 = por %p571, %p572
      %p574 = scmp.ne.s32.totalorder %s560, %s561
      %p575 = scmp.eq.s32.totalorder %s35, 3
      %p576 = por %p574, %p575
      %p578 = scmp.ne.s32.totalorder %s561, %s577
      %p579 = scmp.eq.s32.totalorder %s35, 0
      %p580 = por %p578, %p579
      %p581 = scmp.le.s32.totalorder 1, %s29
      %p582 = scmp.lt.s32.totalorder %s29, 5
      %p583 = pnand %p581, %p582
      %p584 = pneg %p583
      // Predicated region
      $region9: #{vit_forward.1} parent=5 // pred_check
        _
      $region10: #{vit_forward.1} parent=5 // pred_check_branch
        %586 = sbr.rel (%p583) target = $region12
      $region11: #{vit_forward.1} parent=5 // pred_region
        %s587 = ssub.s32 %s29, 1
        // Predicated region
        $region13: #{vit_forward.1} parent=11 // pred_check
          %p588 = pneg %p88
        $region14: #{vit_forward.1} parent=11 // pred_check_branch
          %590 = sbr.rel (%p588) target = $region16
        $region15: #{vit_forward.1} parent=11 // pred_region
          %s592 = ssub.s32 768, 768
          %593 = vsyncadd [#allocation4], %s592
          %s594 = sshll.u32 [#allocation3], 4
          %s595 = int_to_ptr.vmem [resolvable:$true] %s594
          %600 = dma.hbm_to_vmem [thread:$0]  %s1, 768, %s595, [#allocation4], 128, 128, 8
        $region16: #{vit_forward.1} parent=11 // pred_fallthru
          _
        // Predicated region
        $region17: #{vit_forward.1} parent=11 // pred_check
          %p601 = pneg %p109
        $region18: #{vit_forward.1} parent=11 // pred_check_branch
          %603 = sbr.rel (%p601) target = $region20
        $region19: #{vit_forward.1} parent=11 // pred_region
          _
        $region20: #{vit_forward.1} parent=11 // pred_fallthru
          _
        // Predicated region
        $region21: #{vit_forward.1} parent=11 // pred_check
          %p604 = pneg %p130
        $region22: #{vit_forward.1} parent=11 // pred_check_branch
          %606 = sbr.rel (%p604) target = $region24
        $region23: #{vit_forward.1} parent=11 // pred_region
          %s608 = ssub.s32 32, 32
          %609 = vsyncadd [#allocation6], %s608
          %s611 = sshll.u32 [#allocation5], 4
          %s612 = int_to_ptr.vmem [resolvable:$true] %s611
          %614 = dma.hbm_to_vmem [thread:$0]  %s3, 32, %s612, [#allocation6]
        $region24: #{vit_forward.1} parent=11 // pred_fallthru
          _
        // Predicated region
        $region25: #{vit_forward.1} parent=11 // pred_check
          %p615 = pneg %p151
        $region26: #{vit_forward.1} parent=11 // pred_check_branch
          %617 = sbr.rel (%p615) target = $region28
        $region27: #{vit_forward.1} parent=11 // pred_region
          _
        $region28: #{vit_forward.1} parent=11 // pred_fallthru
          _
        // Predicated region
        $region29: #{vit_forward.1} parent=11 // pred_check
          %p618 = pneg %p484
        $region30: #{vit_forward.1} parent=11 // pred_check_branch
          %620 = sbr.rel (%p618) target = $region32
        $region31: #{vit_forward.1} parent=11 // pred_region
          _
        $region32: #{vit_forward.1} parent=11 // pred_fallthru
          _
        // Predicated region
        $region33: #{vit_forward.1} parent=11 // pred_check
          %p621 = pneg %p505
        $region34: #{vit_forward.1} parent=11 // pred_check_branch
          %623 = sbr.rel (%p621) target = $region36
        $region35: #{vit_forward.1} parent=11 // pred_region
          _
        $region36: #{vit_forward.1} parent=11 // pred_fallthru
          _
        // Predicated region
        $region37: #{vit_forward.1} parent=11 // pred_check
          %p624 = pneg %p526
        $region38: #{vit_forward.1} parent=11 // pred_check_branch
          %626 = sbr.rel (%p624) target = $region40
        $region39: #{vit_forward.1} parent=11 // pred_region
          _
        $region40: #{vit_forward.1} parent=11 // pred_fallthru
          _
        // Predicated region
        $region41: #{vit_forward.1} parent=11 // pred_check
          %p627 = pneg %p547
        $region42: #{vit_forward.1} parent=11 // pred_check_branch
          %629 = sbr.rel (%p627) target = $region44
        $region43: #{vit_forward.1} parent=11 // pred_region
          _
        $region44: #{vit_forward.1} parent=11 // pred_fallthru
          _
      $region12: #{vit_forward.1} parent=5 // pred_fallthru
        _
      %p630 = scmp.lt.s32.totalorder %s29, 4
      // Predicated region
      $region45: #{vit_forward.1} parent=5 // pred_check
        %p631 = pneg %p630
      $region46: #{vit_forward.1} parent=5 // pred_check_branch
        %633 = sbr.rel (%p631) target = $region48
      $region47: #{vit_forward.1} parent=5 // pred_region
        // Predicated region
        $region49: #{vit_forward.1} parent=47 // pred_check
          %p634 = pneg %p61
        $region50: #{vit_forward.1} parent=47 // pred_check_branch
          %636 = sbr.rel (%p634) target = $region52
        $region51: #{vit_forward.1} parent=47 // pred_region
          %p637 = scmp.lt.s32.totalorder %s36, 1
          %s638 = scalar_select %p637, %s36, 1
          %s639 = smul.addr %s638, 2
          %s640 = smul.addr %s639, 4
          %s641 = scalar_lea.vmem %s0, %s640
        $region52: #{vit_forward.1} parent=47 // pred_fallthru
          _
        // Predicated region
        $region53: #{vit_forward.1} parent=47 // pred_check
          %p642 = pneg %p171
        $region54: #{vit_forward.1} parent=47 // pred_check_branch
          %644 = sbr.rel (%p642) target = $region56
        $region55: #{vit_forward.1} parent=47 // pred_region
          %p645 = scmp.lt.s32.totalorder %s37, 1
          %s646 = scalar_select %p645, %s37, 1
          %s647 = smul.addr %s646, 2
          %s648 = scalar_lea.vmem %s5, %s647
        $region56: #{vit_forward.1} parent=47 // pred_fallthru
          _
        // Predicated region
        $region57: #{vit_forward.1} parent=47 // pred_check
          %p649 = pneg %p197
        $region58: #{vit_forward.1} parent=47 // pred_check_branch
          %651 = sbr.rel (%p649) target = $region60
        $region59: #{vit_forward.1} parent=47 // pred_region
          %s652 = sand.u32 %s29, 1
          %s653 = scalar_lea.sflag [#allocation4], %s652
          %s654 = sand.u32 %s187, 1
          %s655 = smul.addr %s654, 2
          %s656 = scalar_lea.vmem [#allocation7], %s655
          %s658 = ssub.s32 32, 32
          %659 = vsyncadd %s653, %s658
          %s660 = smul.addr %s37, 2
          %s661 = smul.addr %s660, 16
          %s662 = scalar_lea.hbm %s6, %s661
          %s664 = sshll.u32 %s656, 4
          %s665 = int_to_ptr.vmem [resolvable:$true] %s664
          %667 = dma.hbm_to_vmem [thread:$0]  %s662, 32, %s665, %s653
        $region60: #{vit_forward.1} parent=47 // pred_fallthru
          _
        // Predicated region
        $region61: #{vit_forward.1} parent=47 // pred_check
          %p668 = pneg %p223
        $region62: #{vit_forward.1} parent=47 // pred_check_branch
          %670 = sbr.rel (%p668) target = $region64
        $region63: #{vit_forward.1} parent=47 // pred_region
          %p671 = scmp.lt.s32.totalorder %s37, 1
          %s672 = scalar_select %p671, %s37, 1
          %s673 = smul.addr %s672, 192
          %s674 = smul.addr %s673, 4
          %s675 = scalar_lea.vmem %s7, %s674
        $region64: #{vit_forward.1} parent=47 // pred_fallthru
          _
        // Predicated region
        $region65: #{vit_forward.1} parent=47 // pred_check
          %p676 = pneg %p249
        $region66: #{vit_forward.1} parent=47 // pred_check_branch
          %678 = sbr.rel (%p676) target = $region68
        $region67: #{vit_forward.1} parent=47 // pred_region
          %s679 = sand.u32 %s29, 1
          %s680 = scalar_lea.sflag [#allocation4], %s679
          %s681 = sand.u32 %s239, 1
          %s682 = smul.addr %s681, 6
          %s683 = scalar_lea.vmem [#allocation8], %s682
          %s685 = ssub.s32 96, 96
          %686 = vsyncadd %s680, %s685
          %s687 = smul.addr %s37, 6
          %s688 = smul.addr %s687, 16
          %s689 = scalar_lea.hbm %s8, %s688
          %s691 = sshll.u32 %s683, 4
          %s692 = int_to_ptr.vmem [resolvable:$true] %s691
          %694 = dma.hbm_to_vmem [thread:$0]  %s689, 96, %s692, %s680
        $region68: #{vit_forward.1} parent=47 // pred_fallthru
          _
        // Predicated region
        $region69: #{vit_forward.1} parent=47 // pred_check
          %p695 = pneg %p275
        $region70: #{vit_forward.1} parent=47 // pred_check_branch
          %697 = sbr.rel (%p695) target = $region72
        $region71: #{vit_forward.1} parent=47 // pred_region
          %s698 = sand.u32 %s29, 1
          %s699 = scalar_lea.sflag [#allocation4], %s698
          %s700 = sand.u32 %s265, 1
          %s701 = smul.addr %s700, 256
          %s702 = scalar_lea.vmem [#allocation9], %s701
          %s704 = ssub.s32 4096, 4096
          %705 = vsyncadd %s699, %s704
          %s706 = smul.addr %s37, 64
          %s707 = smul.addr %s706, 64
          %s708 = scalar_lea.hbm %s9, %s707
          %s709 = sshll.u32 %s702, 4
          %s710 = int_to_ptr.vmem [resolvable:$true] %s709
          %715 = dma.hbm_to_vmem [thread:$0]  %s708, 4096, %s710, %s699, 128, 128, 8
        $region72: #{vit_forward.1} parent=47 // pred_fallthru
          _
        // Predicated region
        $region73: #{vit_forward.1} parent=47 // pred_check
          %p716 = pneg %p301
        $region74: #{vit_forward.1} parent=47 // pred_check_branch
          %718 = sbr.rel (%p716) target = $region76
        $region75: #{vit_forward.1} parent=47 // pred_region
          %s719 = sand.u32 %s29, 1
          %s720 = scalar_lea.sflag [#allocation4], %s719
          %s721 = sand.u32 %s291, 1
          %s722 = smul.addr %s721, 2
          %s723 = scalar_lea.vmem [#allocation10], %s722
          %s725 = ssub.s32 32, 32
          %726 = vsyncadd %s720, %s725
          %s727 = smul.addr %s37, 2
          %s728 = smul.addr %s727, 16
          %s729 = scalar_lea.hbm %s10, %s728
          %s731 = sshll.u32 %s723, 4
          %s732 = int_to_ptr.vmem [resolvable:$true] %s731
          %734 = dma.hbm_to_vmem [thread:$0]  %s729, 32, %s732, %s720
        $region76: #{vit_forward.1} parent=47 // pred_fallthru
          _
        // Predicated region
        $region77: #{vit_forward.1} parent=47 // pred_check
          %p735 = pneg %p327
        $region78: #{vit_forward.1} parent=47 // pred_check_branch
          %737 = sbr.rel (%p735) target = $region80
        $region79: #{vit_forward.1} parent=47 // pred_region
          %s738 = sand.u32 %s29, 1
          %s739 = scalar_lea.sflag [#allocation4], %s738
          %s740 = sand.u32 %s317, 1
          %s741 = smul.addr %s740, 2
          %s742 = scalar_lea.vmem [#allocation11], %s741
          %s744 = ssub.s32 32, 32
          %745 = vsyncadd %s739, %s744
          %s746 = smul.addr %s37, 2
          %s747 = smul.addr %s746, 16
          %s748 = scalar_lea.hbm %s11, %s747
          %s750 = sshll.u32 %s742, 4
          %s751 = int_to_ptr.vmem [resolvable:$true] %s750
          %753 = dma.hbm_to_vmem [thread:$0]  %s748, 32, %s751, %s739
        $region80: #{vit_forward.1} parent=47 // pred_fallthru
          _
        // Predicated region
        $region81: #{vit_forward.1} parent=47 // pred_check
          %p754 = pneg %p353
        $region82: #{vit_forward.1} parent=47 // pred_check_branch
          %756 = sbr.rel (%p754) target = $region84
        $region83: #{vit_forward.1} parent=47 // pred_region
          %s757 = sand.u32 %s29, 1
          %s758 = scalar_lea.sflag [#allocation4], %s757
          %s759 = sand.u32 %s343, 1
          %s760 = smul.addr %s759, 2
          %s761 = scalar_lea.vmem [#allocation12], %s760
          %s763 = ssub.s32 32, 32
          %764 = vsyncadd %s758, %s763
          %s765 = smul.addr %s37, 2
          %s766 = smul.addr %s765, 16
          %s767 = scalar_lea.hbm %s12, %s766
          %s769 = sshll.u32 %s761, 4
          %s770 = int_to_ptr.vmem [resolvable:$true] %s769
          %772 = dma.hbm_to_vmem [thread:$0]  %s767, 32, %s770, %s758
        $region84: #{vit_forward.1} parent=47 // pred_fallthru
          _
        // Predicated region
        $region85: #{vit_forward.1} parent=47 // pred_check
          %p773 = pneg %p379
        $region86: #{vit_forward.1} parent=47 // pred_check_branch
          %775 = sbr.rel (%p773) target = $region88
        $region87: #{vit_forward.1} parent=47 // pred_region
          %s776 = sand.u32 %s29, 1
          %s777 = scalar_lea.sflag [#allocation4], %s776
          %s778 = sand.u32 %s369, 1
          %s779 = smul.addr %s778, 1024
          %s780 = scalar_lea.vmem [#allocation13], %s779
          %s782 = ssub.s32 16384, 16384
          %783 = vsyncadd %s777, %s782
          %s784 = smul.addr %s37, 256
          %s785 = smul.addr %s784, 64
          %s786 = scalar_lea.hbm %s13, %s785
          %s787 = sshll.u32 %s780, 4
          %s788 = int_to_ptr.vmem [resolvable:$true] %s787
          %793 = dma.hbm_to_vmem [thread:$0]  %s786, 16384, %s788, %s777, 512, 512, 32
        $region88: #{vit_forward.1} parent=47 // pred_fallthru
          _
        // Predicated region
        $region89: #{vit_forward.1} parent=47 // pred_check
          %p794 = pneg %p405
        $region90: #{vit_forward.1} parent=47 // pred_check_branch
          %796 = sbr.rel (%p794) target = $region92
        $region91: #{vit_forward.1} parent=47 // pred_region
          %s797 = sand.u32 %s29, 1
          %s798 = scalar_lea.sflag [#allocation4], %s797
          %s799 = sand.u32 %s395, 1
          %s800 = smul.addr %s799, 8
          %s801 = scalar_lea.vmem [#allocation14], %s800
          %s803 = ssub.s32 128, 128
          %804 = vsyncadd %s798, %s803
          %s805 = smul.addr %s37, 8
          %s806 = smul.addr %s805, 16
          %s807 = scalar_lea.hbm %s14, %s806
          %s809 = sshll.u32 %s801, 4
          %s810 = int_to_ptr.vmem [resolvable:$true] %s809
          %812 = dma.hbm_to_vmem [thread:$0]  %s807, 128, %s810, %s798
        $region92: #{vit_forward.1} parent=47 // pred_fallthru
          _
        // Predicated region
        $region93: #{vit_forward.1} parent=47 // pred_check
          %p813 = pneg %p431
        $region94: #{vit_forward.1} parent=47 // pred_check_branch
          %815 = sbr.rel (%p813) target = $region96
        $region95: #{vit_forward.1} parent=47 // pred_region
          %s816 = sand.u32 %s29, 1
          %s817 = scalar_lea.sflag [#allocation4], %s816
          %s818 = sand.u32 %s421, 1
          %s819 = smul.addr %s818, 1024
          %s820 = scalar_lea.vmem [#allocation15], %s819
          %s822 = ssub.s32 16384, 16384
          %823 = vsyncadd %s817, %s822
          %s824 = smul.addr %s37, 256
          %s825 = smul.addr %s824, 64
          %s826 = scalar_lea.hbm %s15, %s825
          %s827 = sshll.u32 %s820, 4
          %s828 = int_to_ptr.vmem [resolvable:$true] %s827
          %833 = dma.hbm_to_vmem [thread:$0]  %s826, 16384, %s828, %s817, 128, 128, 8
        $region96: #{vit_forward.1} parent=47 // pred_fallthru
          _
        // Predicated region
        $region97: #{vit_forward.1} parent=47 // pred_check
          %p834 = pneg %p457
        $region98: #{vit_forward.1} parent=47 // pred_check_branch
          %836 = sbr.rel (%p834) target = $region100
        $region99: #{vit_forward.1} parent=47 // pred_region
          %s837 = sand.u32 %s29, 1
          %s838 = scalar_lea.sflag [#allocation4], %s837
          %s839 = sand.u32 %s447, 1
          %s840 = smul.addr %s839, 2
          %s841 = scalar_lea.vmem [#allocation16], %s840
          %s843 = ssub.s32 32, 32
          %844 = vsyncadd %s838, %s843
          %s845 = smul.addr %s37, 2
          %s846 = smul.addr %s845, 16
          %s847 = scalar_lea.hbm %s16, %s846
          %s849 = sshll.u32 %s841, 4
          %s850 = int_to_ptr.vmem [resolvable:$true] %s849
          %852 = dma.hbm_to_vmem [thread:$0]  %s847, 32, %s850, %s838
        $region100: #{vit_forward.1} parent=47 // pred_fallthru
          _
      $region48: #{vit_forward.1} parent=5 // pred_fallthru
        _
      %p853 = scmp.le.s32.totalorder 1, %s29
      %p854 = scmp.lt.s32.totalorder %s29, 5
      %p855 = pnand %p853, %p854
      %p856 = pneg %p855
      // Predicated region
      $region101: #{vit_forward.1} parent=5 // pred_check
        _
      $region102: #{vit_forward.1} parent=5 // pred_check_branch
        %858 = sbr.rel (%p855) target = $region104
      $region103: #{vit_forward.1} parent=5 // pred_region
        %s859 = ssub.s32 %s29, 1
        // Predicated region
        $region105: #{vit_forward.1} parent=103 // pred_check
          %p860 = pneg %p88
        $region106: #{vit_forward.1} parent=103 // pred_check_branch
          %862 = sbr.rel (%p860) target = $region108
        $region107: #{vit_forward.1} parent=103 // pred_region
          %863 = dma.done [#allocation4], 768
        $region108: #{vit_forward.1} parent=103 // pred_fallthru
          _
        // Predicated region
        $region109: #{vit_forward.1} parent=103 // pred_check
          %p864 = pneg %p130
        $region110: #{vit_forward.1} parent=103 // pred_check_branch
          %866 = sbr.rel (%p864) target = $region112
        $region111: #{vit_forward.1} parent=103 // pred_region
          %867 = dma.done [#allocation6], 32
        $region112: #{vit_forward.1} parent=103 // pred_fallthru
          _
        %s868 = sand.u32 %s34, 1
        %s869 = scalar_lea.sflag [#allocation4], %s868
        %s870 = sand.u32 %s190, 1
        %s871 = smul.addr %s870, 2
        %s872 = scalar_lea.vmem [#allocation7], %s871
        // Predicated region
        $region113: #{vit_forward.1} parent=103 // pred_check
          %p873 = pneg %p203
        $region114: #{vit_forward.1} parent=103 // pred_check_branch
          %875 = sbr.rel (%p873) target = $region116
        $region115: #{vit_forward.1} parent=103 // pred_region
          %876 = dma.done %s869, 32
        $region116: #{vit_forward.1} parent=103 // pred_fallthru
          _
        %s877 = sand.u32 %s34, 1
        %s878 = scalar_lea.sflag [#allocation4], %s877
        %s879 = sand.u32 %s242, 1
        %s880 = smul.addr %s879, 6
        %s881 = scalar_lea.vmem [#allocation8], %s880
        // Predicated region
        $region117: #{vit_forward.1} parent=103 // pred_check
          %p882 = pneg %p255
        $region118: #{vit_forward.1} parent=103 // pred_check_branch
          %884 = sbr.rel (%p882) target = $region120
        $region119: #{vit_forward.1} parent=103 // pred_region
          %885 = dma.done %s878, 96
        $region120: #{vit_forward.1} parent=103 // pred_fallthru
          _
        %s886 = sand.u32 %s34, 1
        %s887 = scalar_lea.sflag [#allocation4], %s886
        %s888 = sand.u32 %s268, 1
        %s889 = smul.addr %s888, 256
        %s890 = scalar_lea.vmem [#allocation9], %s889
        // Predicated region
        $region121: #{vit_forward.1} parent=103 // pred_check
          %p891 = pneg %p281
        $region122: #{vit_forward.1} parent=103 // pred_check_branch
          %893 = sbr.rel (%p891) target = $region124
        $region123: #{vit_forward.1} parent=103 // pred_region
          %894 = dma.done %s887, 4096
        $region124: #{vit_forward.1} parent=103 // pred_fallthru
          _
        %s895 = sand.u32 %s34, 1
        %s896 = scalar_lea.sflag [#allocation4], %s895
        %s897 = sand.u32 %s294, 1
        %s898 = smul.addr %s897, 2
        %s899 = scalar_lea.vmem [#allocation10], %s898
        // Predicated region
        $region125: #{vit_forward.1} parent=103 // pred_check
          %p900 = pneg %p307
        $region126: #{vit_forward.1} parent=103 // pred_check_branch
          %902 = sbr.rel (%p900) target = $region128
        $region127: #{vit_forward.1} parent=103 // pred_region
          %903 = dma.done %s896, 32
        $region128: #{vit_forward.1} parent=103 // pred_fallthru
          _
        %s904 = sand.u32 %s34, 1
        %s905 = scalar_lea.sflag [#allocation4], %s904
        %s906 = sand.u32 %s320, 1
        %s907 = smul.addr %s906, 2
        %s908 = scalar_lea.vmem [#allocation11], %s907
        // Predicated region
        $region129: #{vit_forward.1} parent=103 // pred_check
          %p909 = pneg %p333
        $region130: #{vit_forward.1} parent=103 // pred_check_branch
          %911 = sbr.rel (%p909) target = $region132
        $region131: #{vit_forward.1} parent=103 // pred_region
          %912 = dma.done %s905, 32
        $region132: #{vit_forward.1} parent=103 // pred_fallthru
          _
        %s913 = sand.u32 %s34, 1
        %s914 = scalar_lea.sflag [#allocation4], %s913
        %s915 = sand.u32 %s346, 1
        %s916 = smul.addr %s915, 2
        %s917 = scalar_lea.vmem [#allocation12], %s916
        // Predicated region
        $region133: #{vit_forward.1} parent=103 // pred_check
          %p918 = pneg %p359
        $region134: #{vit_forward.1} parent=103 // pred_check_branch
          %920 = sbr.rel (%p918) target = $region136
        $region135: #{vit_forward.1} parent=103 // pred_region
          %921 = dma.done %s914, 32
        $region136: #{vit_forward.1} parent=103 // pred_fallthru
          _
        %s922 = sand.u32 %s34, 1
        %s923 = scalar_lea.sflag [#allocation4], %s922
        %s924 = sand.u32 %s372, 1
        %s925 = smul.addr %s924, 1024
        %s926 = scalar_lea.vmem [#allocation13], %s925
        // Predicated region
        $region137: #{vit_forward.1} parent=103 // pred_check
          %p927 = pneg %p385
        $region138: #{vit_forward.1} parent=103 // pred_check_branch
          %929 = sbr.rel (%p927) target = $region140
        $region139: #{vit_forward.1} parent=103 // pred_region
          %930 = dma.done %s923, 16384
        $region140: #{vit_forward.1} parent=103 // pred_fallthru
          _
        %s931 = sand.u32 %s34, 1
        %s932 = scalar_lea.sflag [#allocation4], %s931
        %s933 = sand.u32 %s398, 1
        %s934 = smul.addr %s933, 8
        %s935 = scalar_lea.vmem [#allocation14], %s934
        // Predicated region
        $region141: #{vit_forward.1} parent=103 // pred_check
          %p936 = pneg %p411
        $region142: #{vit_forward.1} parent=103 // pred_check_branch
          %938 = sbr.rel (%p936) target = $region144
        $region143: #{vit_forward.1} parent=103 // pred_region
          %939 = dma.done %s932, 128
        $region144: #{vit_forward.1} parent=103 // pred_fallthru
          _
        %s940 = sand.u32 %s34, 1
        %s941 = scalar_lea.sflag [#allocation4], %s940
        %s942 = sand.u32 %s424, 1
        %s943 = smul.addr %s942, 1024
        %s944 = scalar_lea.vmem [#allocation15], %s943
        // Predicated region
        $region145: #{vit_forward.1} parent=103 // pred_check
          %p945 = pneg %p437
        $region146: #{vit_forward.1} parent=103 // pred_check_branch
          %947 = sbr.rel (%p945) target = $region148
        $region147: #{vit_forward.1} parent=103 // pred_region
          %948 = dma.done %s941, 16384
        $region148: #{vit_forward.1} parent=103 // pred_fallthru
          _
        %s949 = sand.u32 %s34, 1
        %s950 = scalar_lea.sflag [#allocation4], %s949
        %s951 = sand.u32 %s450, 1
        %s952 = smul.addr %s951, 2
        %s953 = scalar_lea.vmem [#allocation16], %s952
        // Predicated region
        $region149: #{vit_forward.1} parent=103 // pred_check
          %p954 = pneg %p463
        $region150: #{vit_forward.1} parent=103 // pred_check_branch
          %956 = sbr.rel (%p954) target = $region152
        $region151: #{vit_forward.1} parent=103 // pred_region
          %957 = dma.done %s950, 32
        $region152: #{vit_forward.1} parent=103 // pred_fallthru
          _
        %p958 = scmp.lt.s32.totalorder %s38, 1
        %s959 = scalar_select %p958, %s38, 1
        %s960 = smul.addr %s959, 2
        %s961 = smul.addr %s960, 4
        %s962 = scalar_lea.vmem %s0, %s961
        %p963 = pneg %p67
        %p964 = pneg %p64
        %p965 = pneg %p88
        %p966 = pneg %p85
        %p967 = pneg %p109
        %p968 = pneg %p106
        %p969 = pneg %p130
        %p970 = pneg %p127
        %p971 = pneg %p151
        %p972 = pneg %p148
        %p973 = scmp.lt.s32.totalorder %s39, 1
        %s974 = scalar_select %p973, %s39, 1
        %s975 = smul.addr %s974, 2
        %s976 = scalar_lea.vmem %s5, %s975
        %p977 = pneg %p177
        %p978 = pneg %p174
        %s979 = sand.u32 %s34, 1
        %s980 = scalar_lea.sflag [#allocation4], %s979
        %s981 = sand.u32 %s190, 1
        %s982 = smul.addr %s981, 2
        %s983 = scalar_lea.vmem [#allocation7], %s982
        %p984 = pneg %p203
        %p985 = pneg %p200
        %p986 = scmp.lt.s32.totalorder %s39, 1
        %s987 = scalar_select %p986, %s39, 1
        %s988 = smul.addr %s987, 192
        %s989 = smul.addr %s988, 4
        %s990 = scalar_lea.vmem %s7, %s989
        %p991 = pneg %p229
        %p992 = pneg %p226
        %s993 = sand.u32 %s34, 1
        %s994 = scalar_lea.sflag [#allocation4], %s993
        %s995 = sand.u32 %s242, 1
        %s996 = smul.addr %s995, 6
        %s997 = scalar_lea.vmem [#allocation8], %s996
        %p998 = pneg %p255
        %p999 = pneg %p252
        %s1000 = sand.u32 %s34, 1
        %s1001 = scalar_lea.sflag [#allocation4], %s1000
        %s1002 = sand.u32 %s268, 1
        %s1003 = smul.addr %s1002, 256
        %s1004 = scalar_lea.vmem [#allocation9], %s1003
        %p1005 = pneg %p281
        %p1006 = pneg %p278
        %s1007 = sand.u32 %s34, 1
        %s1008 = scalar_lea.sflag [#allocation4], %s1007
        %s1009 = sand.u32 %s294, 1
        %s1010 = smul.addr %s1009, 2
        %s1011 = scalar_lea.vmem [#allocation10], %s1010
        %p1012 = pneg %p307
        %p1013 = pneg %p304
        %s1014 = sand.u32 %s34, 1
        %s1015 = scalar_lea.sflag [#allocation4], %s1014
        %s1016 = sand.u32 %s320, 1
        %s1017 = smul.addr %s1016, 2
        %s1018 = scalar_lea.vmem [#allocation11], %s1017
        %p1019 = pneg %p333
        %p1020 = pneg %p330
        %s1021 = sand.u32 %s34, 1
        %s1022 = scalar_lea.sflag [#allocation4], %s1021
        %s1023 = sand.u32 %s346, 1
        %s1024 = smul.addr %s1023, 2
        %s1025 = scalar_lea.vmem [#allocation12], %s1024
        %p1026 = pneg %p359
        %p1027 = pneg %p356
        %s1028 = sand.u32 %s34, 1
        %s1029 = scalar_lea.sflag [#allocation4], %s1028
        %s1030 = sand.u32 %s372, 1
        %s1031 = smul.addr %s1030, 1024
        %s1032 = scalar_lea.vmem [#allocation13], %s1031
        %p1033 = pneg %p385
        %p1034 = pneg %p382
        %s1035 = sand.u32 %s34, 1
        %s1036 = scalar_lea.sflag [#allocation4], %s1035
        %s1037 = sand.u32 %s398, 1
        %s1038 = smul.addr %s1037, 8
        %s1039 = scalar_lea.vmem [#allocation14], %s1038
        %p1040 = pneg %p411
        %p1041 = pneg %p408
        %s1042 = sand.u32 %s34, 1
        %s1043 = scalar_lea.sflag [#allocation4], %s1042
        %s1044 = sand.u32 %s424, 1
        %s1045 = smul.addr %s1044, 1024
        %s1046 = scalar_lea.vmem [#allocation15], %s1045
        %p1047 = pneg %p437
        %p1048 = pneg %p434
        %s1049 = sand.u32 %s34, 1
        %s1050 = scalar_lea.sflag [#allocation4], %s1049
        %s1051 = sand.u32 %s450, 1
        %s1052 = smul.addr %s1051, 2
        %s1053 = scalar_lea.vmem [#allocation16], %s1052
        %p1054 = pneg %p463
        %p1055 = pneg %p460
        %p1056 = pneg %p484
        %p1057 = pneg %p481
        %p1058 = pneg %p505
        %p1059 = pneg %p502
        %p1060 = pneg %p526
        %p1061 = pneg %p523
        %p1062 = pneg %p547
        %p1063 = pneg %p544
        %p1064 = pneg %p573
        %p1065 = pneg %p570
        %p1066 = scmp.lt.s32.totalorder %s38, 1
        %s1067 = scalar_select %p1066, %s38, 1
        %s1068 = smul.addr %s1067, 2
        %s1069 = smul.addr %s1068, 8
        %s1070 = scalar_lea.vmem %s21, %s1069
        %p1071 = scmp.lt.s32.totalorder %s38, 1
        %s1072 = scalar_select %p1071, %s38, 1
        %s1073 = smul.addr %s1072, 2
        %s1074 = smul.addr %s1073, 4
        %s1075 = scalar_lea.vmem %s0, %s1074
        %p1076 = scmp.lt.s32.totalorder %s39, 1
        %s1077 = scalar_select %p1076, %s39, 1
        %s1078 = smul.addr %s1077, 2
        %s1079 = scalar_lea.vmem %s5, %s1078
        %p1080 = scmp.lt.s32.totalorder %s39, 1
        %s1081 = scalar_select %p1080, %s39, 1
        %s1082 = smul.addr %s1081, 192
        %s1083 = smul.addr %s1082, 4
        %s1084 = scalar_lea.vmem %s7, %s1083
        %p1085 = scmp.lt.s32.totalorder %s38, 1
        %s1086 = scalar_select %p1085, %s38, 1
        %s1087 = smul.addr %s1086, 2
        %s1088 = smul.addr %s1087, 8
        %s1089 = scalar_lea.vmem %s21, %s1088
        %p1091 = scmp.eq.s32.totalorder %s39, 0
        // Predicated region
        $region153: #{vit_forward.1} parent=103 // pred_check
          %p1092 = pneg %p1091
        $region154: #{vit_forward.1} parent=103 // pred_check_branch
          %1094 = sbr.rel (%p1092) target = $region156
        $region155: #{vit_forward.1} parent=103 // pred_region
          %v1095 = vld [vmem:[%s1075] sm:$0xf]
          %v1096 = vld [vmem:[%s1075 + $0x4] sm:$0xf]
          %v1097 = vld [vmem:[#allocation3] sm:$0xff]
          %v1098 = vld [vmem:[#allocation3 + $0x8] sm:$0xff]
          %v1099 = vld [vmem:[#allocation3 + $0x10] sm:$0xff]
          %v1100 = vld [vmem:[#allocation3 + $0x18] sm:$0xff]
          %v1101 = vld [vmem:[#allocation3 + $0x20] sm:$0xff]
          %v1102 = vld [vmem:[#allocation3 + $0x28] sm:$0xff]
          %v1103 = vld [vmem:[#allocation5] sm:$0x3]
          %v1104 = vld [vmem:[%s4] ss:$8 sm:$0x3]
          %v1105 = vadd.f32 %v1103, %v1104
          %v1106 = vlaneseq
          %vm1107 = vcmp.ge.s32.totalorder %v1106, 0
          %vm1108 = vcmp.lt.s32.totalorder %v1106, 256
          %vm1109 = vmand %vm1107, %vm1108
          %1110 = vst.msk [vmem:[#allocation2] ss:$8 sm:$0x3] %vm1109, %v1105
          %1111 = vst.msk [vmem:[#allocation2] ss:$8 sm:$0x0] %vm1109, %v1105
          %v1112 = vld [vmem:[%s2] sm:$0x3]
          %v1114 = vlaneseq
          %v1115 = vshrl.u32 %v1114, 7
          %v1116 = vsub.s32 0, %v1115
          %v1117 = vrot.slane %v1112, %v1116
          %v1118 = vlaneseq
          %v1119 = vshrl.u32 %v1118, 7
          %v1120 = vsub.s32 1, %v1119
          %v1121 = vrot.slane %v1112, %v1120
          %v1126 = vunpack.c.l.b16 %v1095
          %v1127 = vunpack.c.l.b16 %v1096
          %v1128 = vpack.c.b16 %v1127, %v1126
          %v1135 = vunpack.c.l.b16 %v1097
          %v1136 = vunpack.c.h.b16 %v1097
          %v1137 = vunpack.c.l.b16 %v1098
          %v1138 = vunpack.c.h.b16 %v1098
          %v1139 = vunpack.c.l.b16 %v1099
          %v1140 = vunpack.c.h.b16 %v1099
          %v1141 = vunpack.c.l.b16 %v1100
          %v1142 = vunpack.c.h.b16 %v1100
          %v1143 = vunpack.c.l.b16 %v1101
          %v1144 = vunpack.c.h.b16 %v1101
          %v1145 = vunpack.c.l.b16 %v1102
          %v1146 = vunpack.c.h.b16 %v1102
          %v1147 = vpack.c.b16 %v1137, %v1135
          %v1148 = vpack.c.b16 %v1138, %v1136
          %v1149 = vpack.c.b16 %v1141, %v1139
          %v1150 = vpack.c.b16 %v1142, %v1140
          %v1151 = vpack.c.b16 %v1145, %v1143
          %v1152 = vpack.c.b16 %v1146, %v1144
          %vm1159 = vcmask 392192
          %v1161 = vsel %vm1159, %v1128, 0
          %1163 = vmatprep.subr.bf16.mxu0 %v1148
          %1164 = vmatpush1.bf16.msra.mxu0 %v1147
          %1165 = vmatprep.subr.bf16.mxu0 %v1150
          %1166 = vmatpush1.bf16.msra.mxu0 %v1149
          %1167 = vmatprep.subr.bf16.mxu0 %v1152
          %1168 = vmatpush1.bf16.msra.mxu0 %v1151
          %1169 = vmatprep.subr.bf16.mxu0 0
          %1170 = vmatpush1.bf16.msra.mxu0 0
          %1171 = vmatprep.subr.bf16.mxu0 0
          %1172 = vmatpush1.bf16.msra.mxu0 0
          %1173 = vmatprep.subr.bf16.mxu0 0
          %1174 = vmatpush1.bf16.msra.mxu0 0
          %1175 = vmatprep.subr.bf16.mxu0 0
          %1176 = vmatpush1.bf16.msra.mxu0 0
          %1177 = vmatprep.subr.bf16.mxu0 0
          %1178 = vmatpush1.bf16.msra.mxu0 0
          %1179 = vmatprep.subr.bf16.mxu0 0
          %1180 = vmatpush1.bf16.msra.mxu0 0
          %1181 = vmatprep.subr.bf16.mxu0 0
          %1182 = vmatpush1.bf16.msra.mxu0 0
          %1183 = vmatprep.subr.bf16.mxu0 0
          %1184 = vmatpush1.bf16.msra.mxu0 0
          %1185 = vmatprep.subr.bf16.mxu0 0
          %1186 = vmatpush1.bf16.msra.mxu0 0
          %1187 = vmatprep.subr.bf16.mxu0 0
          %1188 = vmatpush1.bf16.msra.mxu0 0
          %1189 = vmatprep.subr.bf16.mxu0 0
          %1190 = vmatpush1.bf16.msra.mxu0 0
          %1191 = vmatprep.subr.bf16.mxu0 0
          %1192 = vmatpush1.bf16.msra.mxu0 0
          %1193 = vmatprep.subr.bf16.mxu0 0
          %1194 = vmatpush1.bf16.msra.mxu0 0
          %1195 = vmatprep.mubr.bf16.mxu0 0
          %1196 = vmatmul.mubr.bf16.gmra.mrb[0].mxu0 %v1161
          %v1197 = vpop.f32.mrb[0].mxu0
          %v1198 = vadd.f32 %v1117, %v1197
          %v1199 = vpop.f32.mrb[0].mxu0
          %v1200 = vadd.f32 %v1121, %v1199
          %v1201 = vpop.f32.mrb[0].mxu0
          %v1202 = vadd.f32 %v1117, %v1201
          %v1203 = vpop.f32.mrb[0].mxu0
          %v1204 = vadd.f32 %v1121, %v1203
          %1205 = vdwg.mxu0
          %v1206 = vld [vmem:[%s4] sm:$0xfe]
          %v1207 = vld [vmem:[%s4 + $0x8] sm:$0xfe]
          %v1208 = vld [vmem:[%s4 + $0x10] sm:$0xff]
          %v1209 = vld [vmem:[%s4 + $0x18] sm:$0xff]
          %v1210 = vld [vmem:[%s4 + $0x20] sm:$0x1]
          %v1211 = vld [vmem:[%s4 + $0x28] sm:$0x1]
          %vm1218 = vcmask 1046528
          %v1219 = vrot.slane %v1206, 1
          %v1220 = vrot.slane %v1208, 1
          %v1221 = vsel %vm1218, %v1219, %v1220
          %v1222 = vrot.slane %v1207, 1
          %v1223 = vrot.slane %v1209, 1
          %v1224 = vsel %vm1218, %v1222, %v1223
          %v1225 = vrot.slane %v1210, 1
          %v1226 = vsel %vm1218, %v1220, %v1225
          %v1227 = vrot.slane %v1211, 1
          %v1228 = vsel %vm1218, %v1223, %v1227
          %v1233 = vadd.f32 %v1198, %v1221
          %v1234 = vadd.f32 %v1200, %v1224
          %v1235 = vadd.f32 %v1202, %v1226
          %v1236 = vadd.f32 %v1204, %v1228
          %vm1241 = vcmask 1040384
          %v1242 = vrot.slane %v1233, 7
          %v1243 = vrot.slane %v1234, 7
          %v1244 = vrot.slane %v1235, 7
          %v1245 = vsel %vm1241, %v1242, %v1244
          %v1246 = vrot.slane %v1236, 7
          %v1247 = vsel %vm1241, %v1243, %v1246
          %1254 = vst [vmem:[#allocation2] sm:$0xfe] %v1242
          %1255 = vst [vmem:[#allocation2 + $0x8] sm:$0xfe] %v1243
          %1256 = vst [vmem:[#allocation2 + $0x10] sm:$0xff] %v1245
          %1257 = vst [vmem:[#allocation2 + $0x18] sm:$0xff] %v1247
          %1258 = vst [vmem:[#allocation2 + $0x20] sm:$0x1] %v1244
          %1259 = vst [vmem:[#allocation2 + $0x28] sm:$0x1] %v1246
        $region156: #{vit_forward.1} parent=103 // pred_fallthru
          _
        %v1260 = vld [vmem:[#allocation2] sm:$0xff]
        %v1261 = vld [vmem:[#allocation2 + $0x8] sm:$0xff]
        %v1262 = vld [vmem:[#allocation2 + $0x10] sm:$0xff]
        %v1263 = vld [vmem:[#allocation2 + $0x18] sm:$0xff]
        %v1264 = vld [vmem:[#allocation2 + $0x20] sm:$0x1]
        %v1265 = vld [vmem:[#allocation2 + $0x28] sm:$0x1]
        %v1266 = vld [vmem:[%s1079] sm:$0x3]
        %v1267 = vld [vmem:[%s872] sm:$0x3]
        %v1268 = vadd.f32 %v1260, %v1261
        %1269 = vadd.xlane.f32.xlu0 %v1268
        %v1270 = vpop.xlane.xlu0 %1269
        %v1271 = vadd.f32 %v1262, %v1263
        %1272 = vadd.xlane.f32.xlu0 %v1271
        %v1273 = vpop.xlane.xlu0 %1272
        %vm1274 = vcmask 1040384
        %v1275 = vsel %vm1274, %v1264, 0.0
        %v1276 = vsel %vm1274, %v1265, 0.0
        %v1277 = vadd.f32 %v1275, %v1276
        %1278 = vadd.xlane.f32.xlu0 %v1277
        %v1279 = vpop.xlane.xlu0 %1278
        %v1280 = vrcp.pop 256.0
        %v1281 = vmul.f32 %v1270, %v1280
        %v1282 = vmul.f32 %v1273, %v1280
        %v1283 = vmul.f32 %v1279, %v1280
        %v1284 = vsub.f32 %v1260, %v1281
        %v1285 = vsub.f32 %v1261, %v1281
        %v1286 = vsub.f32 %v1262, %v1282
        %v1287 = vsub.f32 %v1263, %v1282
        %v1288 = vsub.f32 %v1264, %v1283
        %v1289 = vsub.f32 %v1265, %v1283
        %v1290 = vmul.f32 %v1284, %v1284
        %v1291 = vmul.f32 %v1285, %v1285
        %v1292 = vmul.f32 %v1286, %v1286
        %v1293 = vmul.f32 %v1287, %v1287
        %v1294 = vmul.f32 %v1288, %v1288
        %v1295 = vmul.f32 %v1289, %v1289
        %v1296 = vadd.f32 %v1290, %v1291
        %1297 = vadd.xlane.f32.xlu0 %v1296
        %v1298 = vpop.xlane.xlu0 %1297
        %v1299 = vadd.f32 %v1292, %v1293
        %1300 = vadd.xlane.f32.xlu0 %v1299
        %v1301 = vpop.xlane.xlu0 %1300
        %v1302 = vsel %vm1274, %v1294, 0.0
        %v1303 = vsel %vm1274, %v1295, 0.0
        %v1304 = vadd.f32 %v1302, %v1303
        %1305 = vadd.xlane.f32.xlu0 %v1304
        %v1306 = vpop.xlane.xlu0 %1305
        %v1307 = vmul.f32 %v1298, %v1280
        %v1308 = vmul.f32 %v1301, %v1280
        %v1309 = vmul.f32 %v1306, %v1280
        %v1310 = vadd.f32 %v1307, 1e-05
        %v1311 = vadd.f32 %v1308, 1e-05
        %v1312 = vadd.f32 %v1309, 1e-05
        %v1313 = vrsqrt.pop %v1310
        %v1314 = vrsqrt.pop %v1311
        %v1315 = vrsqrt.pop %v1312
        %v1316 = vmul.f32 %v1284, %v1313
        %v1317 = vmul.f32 %v1285, %v1313
        %v1318 = vmul.f32 %v1286, %v1314
        %v1319 = vmul.f32 %v1287, %v1314
        %v1320 = vmul.f32 %v1288, %v1315
        %v1321 = vmul.f32 %v1289, %v1315
        %v1323 = vlaneseq
        %v1324 = vshrl.u32 %v1323, 7
        %v1325 = vsub.s32 0, %v1324
        %v1326 = vrot.slane %v1266, %v1325
        %v1327 = vlaneseq
        %v1328 = vshrl.u32 %v1327, 7
        %v1329 = vsub.s32 1, %v1328
        %v1330 = vrot.slane %v1266, %v1329
        %v1333 = vmul.f32 %v1316, %v1326
        %v1334 = vmul.f32 %v1317, %v1330
        %v1335 = vmul.f32 %v1318, %v1326
        %v1336 = vmul.f32 %v1319, %v1330
        %v1337 = vmul.f32 %v1320, %v1326
        %v1338 = vmul.f32 %v1321, %v1330
        %v1340 = vlaneseq
        %v1341 = vshrl.u32 %v1340, 7
        %v1342 = vsub.s32 0, %v1341
        %v1343 = vrot.slane %v1267, %v1342
        %v1344 = vlaneseq
        %v1345 = vshrl.u32 %v1344, 7
        %v1346 = vsub.s32 1, %v1345
        %v1347 = vrot.slane %v1267, %v1346
        %v1350 = vadd.f32 %v1333, %v1343
        %v1351 = vadd.f32 %v1334, %v1347
        %v1352 = vadd.f32 %v1335, %v1343
        %v1353 = vadd.f32 %v1336, %v1347
        %v1354 = vadd.f32 %v1337, %v1343
        %v1355 = vadd.f32 %v1338, %v1347
        %v1356 = vpack.c.bf16 %v1352, %v1350
        %v1357 = vpack.c.bf16 %v1353, %v1351
        %v1358 = vpack.c.bf16 %v1354, %v1354
        %v1359 = vpack.c.bf16 %v1355, %v1355
        %v1360 = vld [vmem:[%s1084] sm:$0xff]
        %v1361 = vld [vmem:[%s1084 + $0x8] sm:$0xff]
        %v1362 = vld [vmem:[%s1084 + $0x10] sm:$0xff]
        %v1363 = vld [vmem:[%s1084 + $0x18] sm:$0xff]
        %v1364 = vld [vmem:[%s1084 + $0x20] sm:$0xff]
        %v1365 = vld [vmem:[%s1084 + $0x28] sm:$0xff]
        %v1366 = vld [vmem:[%s1084 + $0x30] sm:$0xff]
        %v1367 = vld [vmem:[%s1084 + $0x38] sm:$0xff]
        %v1368 = vld [vmem:[%s1084 + $0x40] sm:$0xff]
        %v1369 = vld [vmem:[%s1084 + $0x48] sm:$0xff]
        %v1370 = vld [vmem:[%s1084 + $0x50] sm:$0xff]
        %v1371 = vld [vmem:[%s1084 + $0x58] sm:$0xff]
        %v1372 = vld [vmem:[%s1084 + $0x60] sm:$0xff]
        %v1373 = vld [vmem:[%s1084 + $0x68] sm:$0xff]
        %v1374 = vld [vmem:[%s1084 + $0x70] sm:$0xff]
        %v1375 = vld [vmem:[%s1084 + $0x78] sm:$0xff]
        %v1376 = vld [vmem:[%s1084 + $0x80] sm:$0xff]
        %v1377 = vld [vmem:[%s1084 + $0x88] sm:$0xff]
        %v1378 = vld [vmem:[%s1084 + $0x90] sm:$0xff]
        %v1379 = vld [vmem:[%s1084 + $0x98] sm:$0xff]
        %v1380 = vld [vmem:[%s1084 + $0xa0] sm:$0xff]
        %v1381 = vld [vmem:[%s1084 + $0xa8] sm:$0xff]
        %v1382 = vld [vmem:[%s1084 + $0xb0] sm:$0xff]
        %v1383 = vld [vmem:[%s1084 + $0xb8] sm:$0xff]
        %v1384 = vld [vmem:[%s1084 + $0xc0] sm:$0xff]
        %v1385 = vld [vmem:[%s1084 + $0xc8] sm:$0xff]
        %v1386 = vld [vmem:[%s1084 + $0xd0] sm:$0xff]
        %v1387 = vld [vmem:[%s1084 + $0xd8] sm:$0xff]
        %v1388 = vld [vmem:[%s1084 + $0xe0] sm:$0xff]
        %v1389 = vld [vmem:[%s1084 + $0xe8] sm:$0xff]
        %v1390 = vld [vmem:[%s1084 + $0xf0] sm:$0xff]
        %v1391 = vld [vmem:[%s1084 + $0xf8] sm:$0xff]
        %v1392 = vld [vmem:[%s1084 + $0x100] sm:$0xff]
        %v1393 = vld [vmem:[%s1084 + $0x108] sm:$0xff]
        %v1394 = vld [vmem:[%s1084 + $0x110] sm:$0xff]
        %v1395 = vld [vmem:[%s1084 + $0x118] sm:$0xff]
        %v1396 = vld [vmem:[%s1084 + $0x120] sm:$0xff]
        %v1397 = vld [vmem:[%s1084 + $0x128] sm:$0xff]
        %v1398 = vld [vmem:[%s1084 + $0x130] sm:$0xff]
        %v1399 = vld [vmem:[%s1084 + $0x138] sm:$0xff]
        %v1400 = vld [vmem:[%s1084 + $0x140] sm:$0xff]
        %v1401 = vld [vmem:[%s1084 + $0x148] sm:$0xff]
        %v1402 = vld [vmem:[%s1084 + $0x150] sm:$0xff]
        %v1403 = vld [vmem:[%s1084 + $0x158] sm:$0xff]
        %v1404 = vld [vmem:[%s1084 + $0x160] sm:$0xff]
        %v1405 = vld [vmem:[%s1084 + $0x168] sm:$0xff]
        %v1406 = vld [vmem:[%s1084 + $0x170] sm:$0xff]
        %v1407 = vld [vmem:[%s1084 + $0x178] sm:$0xff]
        %v1408 = vld [vmem:[%s1084 + $0x180] sm:$0xff]
        %v1409 = vld [vmem:[%s1084 + $0x188] sm:$0xff]
        %v1410 = vld [vmem:[%s1084 + $0x190] sm:$0xff]
        %v1411 = vld [vmem:[%s1084 + $0x198] sm:$0xff]
        %v1412 = vld [vmem:[%s1084 + $0x1a0] sm:$0xff]
        %v1413 = vld [vmem:[%s1084 + $0x1a8] sm:$0xff]
        %v1414 = vld [vmem:[%s1084 + $0x1b0] sm:$0xff]
        %v1415 = vld [vmem:[%s1084 + $0x1b8] sm:$0xff]
        %v1416 = vld [vmem:[%s1084 + $0x1c0] sm:$0xff]
        %v1417 = vld [vmem:[%s1084 + $0x1c8] sm:$0xff]
        %v1418 = vld [vmem:[%s1084 + $0x1d0] sm:$0xff]
        %v1419 = vld [vmem:[%s1084 + $0x1d8] sm:$0xff]
        %v1420 = vld [vmem:[%s1084 + $0x1e0] sm:$0xff]
        %v1421 = vld [vmem:[%s1084 + $0x1e8] sm:$0xff]
        %v1422 = vld [vmem:[%s1084 + $0x1f0] sm:$0xff]
        %v1423 = vld [vmem:[%s1084 + $0x1f8] sm:$0xff]
        %v1424 = vld [vmem:[%s1084 + $0x200] sm:$0xff]
        %v1425 = vld [vmem:[%s1084 + $0x208] sm:$0xff]
        %v1426 = vld [vmem:[%s1084 + $0x210] sm:$0xff]
        %v1427 = vld [vmem:[%s1084 + $0x218] sm:$0xff]
        %v1428 = vld [vmem:[%s1084 + $0x220] sm:$0xff]
        %v1429 = vld [vmem:[%s1084 + $0x228] sm:$0xff]
        %v1430 = vld [vmem:[%s1084 + $0x230] sm:$0xff]
        %v1431 = vld [vmem:[%s1084 + $0x238] sm:$0xff]
        %v1432 = vld [vmem:[%s1084 + $0x240] sm:$0xff]
        %v1433 = vld [vmem:[%s1084 + $0x248] sm:$0xff]
        %v1434 = vld [vmem:[%s1084 + $0x250] sm:$0xff]
        %v1435 = vld [vmem:[%s1084 + $0x258] sm:$0xff]
        %v1436 = vld [vmem:[%s1084 + $0x260] sm:$0xff]
        %v1437 = vld [vmem:[%s1084 + $0x268] sm:$0xff]
        %v1438 = vld [vmem:[%s1084 + $0x270] sm:$0xff]
        %v1439 = vld [vmem:[%s1084 + $0x278] sm:$0xff]
        %v1440 = vld [vmem:[%s1084 + $0x280] sm:$0xff]
        %v1441 = vld [vmem:[%s1084 + $0x288] sm:$0xff]
        %v1442 = vld [vmem:[%s1084 + $0x290] sm:$0xff]
        %v1443 = vld [vmem:[%s1084 + $0x298] sm:$0xff]
        %v1444 = vld [vmem:[%s1084 + $0x2a0] sm:$0xff]
        %v1445 = vld [vmem:[%s1084 + $0x2a8] sm:$0xff]
        %v1446 = vld [vmem:[%s1084 + $0x2b0] sm:$0xff]
        %v1447 = vld [vmem:[%s1084 + $0x2b8] sm:$0xff]
        %v1448 = vld [vmem:[%s1084 + $0x2c0] sm:$0xff]
        %v1449 = vld [vmem:[%s1084 + $0x2c8] sm:$0xff]
        %v1450 = vld [vmem:[%s1084 + $0x2d0] sm:$0xff]
        %v1451 = vld [vmem:[%s1084 + $0x2d8] sm:$0xff]
        %v1452 = vld [vmem:[%s1084 + $0x2e0] sm:$0xff]
        %v1453 = vld [vmem:[%s1084 + $0x2e8] sm:$0xff]
        %v1454 = vld [vmem:[%s1084 + $0x2f0] sm:$0xff]
        %v1455 = vld [vmem:[%s1084 + $0x2f8] sm:$0xff]
        %v1456 = vld [vmem:[%s881] sm:$0x3f]
        %v1458 = vlaneseq
        %v1459 = vshrl.u32 %v1458, 7
        %v1460 = vsub.s32 0, %v1459
        %v1461 = vrot.slane %v1456, %v1460
        %v1462 = vlaneseq
        %v1463 = vshrl.u32 %v1462, 7
        %v1464 = vsub.s32 1, %v1463
        %v1465 = vrot.slane %v1456, %v1464
        %v1466 = vlaneseq
        %v1467 = vshrl.u32 %v1466, 7
        %v1468 = vsub.s32 2, %v1467
        %v1469 = vrot.slane %v1456, %v1468
        %v1470 = vlaneseq
        %v1471 = vshrl.u32 %v1470, 7
        %v1472 = vsub.s32 3, %v1471
        %v1473 = vrot.slane %v1456, %v1472
        %v1474 = vlaneseq
        %v1475 = vshrl.u32 %v1474, 7
        %v1476 = vsub.s32 4, %v1475
        %v1477 = vrot.slane %v1456, %v1476
        %v1478 = vlaneseq
        %v1479 = vshrl.u32 %v1478, 7
        %v1480 = vsub.s32 5, %v1479
        %v1481 = vrot.slane %v1456, %v1480
        %v1584 = vunpack.c.l.b16 %v1360
        %v1585 = vunpack.c.h.b16 %v1360
        %v1586 = vunpack.c.l.b16 %v1361
        %v1587 = vunpack.c.h.b16 %v1361
        %v1588 = vunpack.c.l.b16 %v1362
        %v1589 = vunpack.c.h.b16 %v1362
        %v1590 = vunpack.c.l.b16 %v1363
        %v1591 = vunpack.c.h.b16 %v1363
        %v1592 = vunpack.c.l.b16 %v1364
        %v1593 = vunpack.c.h.b16 %v1364
        %v1594 = vunpack.c.l.b16 %v1365
        %v1595 = vunpack.c.h.b16 %v1365
        %v1596 = vunpack.c.l.b16 %v1366
        %v1597 = vunpack.c.h.b16 %v1366
        %v1598 = vunpack.c.l.b16 %v1367
        %v1599 = vunpack.c.h.b16 %v1367
        %v1600 = vunpack.c.l.b16 %v1368
        %v1601 = vunpack.c.h.b16 %v1368
        %v1602 = vunpack.c.l.b16 %v1369
        %v1603 = vunpack.c.h.b16 %v1369
        %v1604 = vunpack.c.l.b16 %v1370
        %v1605 = vunpack.c.h.b16 %v1370
        %v1606 = vunpack.c.l.b16 %v1371
        %v1607 = vunpack.c.h.b16 %v1371
        %v1608 = vunpack.c.l.b16 %v1372
        %v1609 = vunpack.c.h.b16 %v1372
        %v1610 = vunpack.c.l.b16 %v1373
        %v1611 = vunpack.c.h.b16 %v1373
        %v1612 = vunpack.c.l.b16 %v1374
        %v1613 = vunpack.c.h.b16 %v1374
        %v1614 = vunpack.c.l.b16 %v1375
        %v1615 = vunpack.c.h.b16 %v1375
        %v1616 = vunpack.c.l.b16 %v1376
        %v1617 = vunpack.c.h.b16 %v1376
        %v1618 = vunpack.c.l.b16 %v1377
        %v1619 = vunpack.c.h.b16 %v1377
        %v1620 = vunpack.c.l.b16 %v1378
        %v1621 = vunpack.c.h.b16 %v1378
        %v1622 = vunpack.c.l.b16 %v1379
        %v1623 = vunpack.c.h.b16 %v1379
        %v1624 = vunpack.c.l.b16 %v1380
        %v1625 = vunpack.c.h.b16 %v1380
        %v1626 = vunpack.c.l.b16 %v1381
        %v1627 = vunpack.c.h.b16 %v1381
        %v1628 = vunpack.c.l.b16 %v1382
        %v1629 = vunpack.c.h.b16 %v1382
        %v1630 = vunpack.c.l.b16 %v1383
        %v1631 = vunpack.c.h.b16 %v1383
        %v1632 = vunpack.c.l.b16 %v1384
        %v1633 = vunpack.c.h.b16 %v1384
        %v1634 = vunpack.c.l.b16 %v1385
        %v1635 = vunpack.c.h.b16 %v1385
        %v1636 = vunpack.c.l.b16 %v1386
        %v1637 = vunpack.c.h.b16 %v1386
        %v1638 = vunpack.c.l.b16 %v1387
        %v1639 = vunpack.c.h.b16 %v1387
        %v1640 = vunpack.c.l.b16 %v1388
        %v1641 = vunpack.c.h.b16 %v1388
        %v1642 = vunpack.c.l.b16 %v1389
        %v1643 = vunpack.c.h.b16 %v1389
        %v1644 = vunpack.c.l.b16 %v1390
        %v1645 = vunpack.c.h.b16 %v1390
        %v1646 = vunpack.c.l.b16 %v1391
        %v1647 = vunpack.c.h.b16 %v1391
        %v1648 = vunpack.c.l.b16 %v1392
        %v1649 = vunpack.c.h.b16 %v1392
        %v1650 = vunpack.c.l.b16 %v1393
        %v1651 = vunpack.c.h.b16 %v1393
        %v1652 = vunpack.c.l.b16 %v1394
        %v1653 = vunpack.c.h.b16 %v1394
        %v1654 = vunpack.c.l.b16 %v1395
        %v1655 = vunpack.c.h.b16 %v1395
        %v1656 = vunpack.c.l.b16 %v1396
        %v1657 = vunpack.c.h.b16 %v1396
        %v1658 = vunpack.c.l.b16 %v1397
        %v1659 = vunpack.c.h.b16 %v1397
        %v1660 = vunpack.c.l.b16 %v1398
        %v1661 = vunpack.c.h.b16 %v1398
        %v1662 = vunpack.c.l.b16 %v1399
        %v1663 = vunpack.c.h.b16 %v1399
        %v1664 = vunpack.c.l.b16 %v1400
        %v1665 = vunpack.c.h.b16 %v1400
        %v1666 = vunpack.c.l.b16 %v1401
        %v1667 = vunpack.c.h.b16 %v1401
        %v1668 = vunpack.c.l.b16 %v1402
        %v1669 = vunpack.c.h.b16 %v1402
        %v1670 = vunpack.c.l.b16 %v1403
        %v1671 = vunpack.c.h.b16 %v1403
        %v1672 = vunpack.c.l.b16 %v1404
        %v1673 = vunpack.c.h.b16 %v1404
        %v1674 = vunpack.c.l.b16 %v1405
        %v1675 = vunpack.c.h.b16 %v1405
        %v1676 = vunpack.c.l.b16 %v1406
        %v1677 = vunpack.c.h.b16 %v1406
        %v1678 = vunpack.c.l.b16 %v1407
        %v1679 = vunpack.c.h.b16 %v1407
        %v1680 = vunpack.c.l.b16 %v1408
        %v1681 = vunpack.c.h.b16 %v1408
        %v1682 = vunpack.c.l.b16 %v1409
        %v1683 = vunpack.c.h.b16 %v1409
        %v1684 = vunpack.c.l.b16 %v1410
        %v1685 = vunpack.c.h.b16 %v1410
        %v1686 = vunpack.c.l.b16 %v1411
        %v1687 = vunpack.c.h.b16 %v1411
        %v1688 = vunpack.c.l.b16 %v1412
        %v1689 = vunpack.c.h.b16 %v1412
        %v1690 = vunpack.c.l.b16 %v1413
        %v1691 = vunpack.c.h.b16 %v1413
        %v1692 = vunpack.c.l.b16 %v1414
        %v1693 = vunpack.c.h.b16 %v1414
        %v1694 = vunpack.c.l.b16 %v1415
        %v1695 = vunpack.c.h.b16 %v1415
        %v1696 = vunpack.c.l.b16 %v1416
        %v1697 = vunpack.c.h.b16 %v1416
        %v1698 = vunpack.c.l.b16 %v1417
        %v1699 = vunpack.c.h.b16 %v1417
        %v1700 = vunpack.c.l.b16 %v1418
        %v1701 = vunpack.c.h.b16 %v1418
        %v1702 = vunpack.c.l.b16 %v1419
        %v1703 = vunpack.c.h.b16 %v1419
        %v1704 = vunpack.c.l.b16 %v1420
        %v1705 = vunpack.c.h.b16 %v1420
        %v1706 = vunpack.c.l.b16 %v1421
        %v1707 = vunpack.c.h.b16 %v1421
        %v1708 = vunpack.c.l.b16 %v1422
        %v1709 = vunpack.c.h.b16 %v1422
        %v1710 = vunpack.c.l.b16 %v1423
        %v1711 = vunpack.c.h.b16 %v1423
        %v1712 = vunpack.c.l.b16 %v1424
        %v1713 = vunpack.c.h.b16 %v1424
        %v1714 = vunpack.c.l.b16 %v1425
        %v1715 = vunpack.c.h.b16 %v1425
        %v1716 = vunpack.c.l.b16 %v1426
        %v1717 = vunpack.c.h.b16 %v1426
        %v1718 = vunpack.c.l.b16 %v1427
        %v1719 = vunpack.c.h.b16 %v1427
        %v1720 = vunpack.c.l.b16 %v1428
        %v1721 = vunpack.c.h.b16 %v1428
        %v1722 = vunpack.c.l.b16 %v1429
        %v1723 = vunpack.c.h.b16 %v1429
        %v1724 = vunpack.c.l.b16 %v1430
        %v1725 = vunpack.c.h.b16 %v1430
        %v1726 = vunpack.c.l.b16 %v1431
        %v1727 = vunpack.c.h.b16 %v1431
        %v1728 = vunpack.c.l.b16 %v1432
        %v1729 = vunpack.c.h.b16 %v1432
        %v1730 = vunpack.c.l.b16 %v1433
        %v1731 = vunpack.c.h.b16 %v1433
        %v1732 = vunpack.c.l.b16 %v1434
        %v1733 = vunpack.c.h.b16 %v1434
        %v1734 = vunpack.c.l.b16 %v1435
        %v1735 = vunpack.c.h.b16 %v1435
        %v1736 = vunpack.c.l.b16 %v1436
        %v1737 = vunpack.c.h.b16 %v1436
        %v1738 = vunpack.c.l.b16 %v1437
        %v1739 = vunpack.c.h.b16 %v1437
        %v1740 = vunpack.c.l.b16 %v1438
        %v1741 = vunpack.c.h.b16 %v1438
        %v1742 = vunpack.c.l.b16 %v1439
        %v1743 = vunpack.c.h.b16 %v1439
        %v1744 = vunpack.c.l.b16 %v1440
        %v1745 = vunpack.c.h.b16 %v1440
        %v1746 = vunpack.c.l.b16 %v1441
        %v1747 = vunpack.c.h.b16 %v1441
        %v1748 = vunpack.c.l.b16 %v1442
        %v1749 = vunpack.c.h.b16 %v1442
        %v1750 = vunpack.c.l.b16 %v1443
        %v1751 = vunpack.c.h.b16 %v1443
        %v1752 = vunpack.c.l.b16 %v1444
        %v1753 = vunpack.c.h.b16 %v1444
        %v1754 = vunpack.c.l.b16 %v1445
        %v1755 = vunpack.c.h.b16 %v1445
        %v1756 = vunpack.c.l.b16 %v1446
        %v1757 = vunpack.c.h.b16 %v1446
        %v1758 = vunpack.c.l.b16 %v1447
        %v1759 = vunpack.c.h.b16 %v1447
        %v1760 = vunpack.c.l.b16 %v1448
        %v1761 = vunpack.c.h.b16 %v1448
        %v1762 = vunpack.c.l.b16 %v1449
        %v1763 = vunpack.c.h.b16 %v1449
        %v1764 = vunpack.c.l.b16 %v1450
        %v1765 = vunpack.c.h.b16 %v1450
        %v1766 = vunpack.c.l.b16 %v1451
        %v1767 = vunpack.c.h.b16 %v1451
        %v1768 = vunpack.c.l.b16 %v1452
        %v1769 = vunpack.c.h.b16 %v1452
        %v1770 = vunpack.c.l.b16 %v1453
        %v1771 = vunpack.c.h.b16 %v1453
        %v1772 = vunpack.c.l.b16 %v1454
        %v1773 = vunpack.c.h.b16 %v1454
        %v1774 = vunpack.c.l.b16 %v1455
        %v1775 = vunpack.c.h.b16 %v1455
        %v1776 = vpack.c.b16 %v1590, %v1584
        %v1777 = vpack.c.b16 %v1591, %v1585
        %v1778 = vpack.c.b16 %v1592, %v1586
        %v1779 = vpack.c.b16 %v1593, %v1587
        %v1780 = vpack.c.b16 %v1594, %v1588
        %v1781 = vpack.c.b16 %v1595, %v1589
        %v1782 = vpack.c.b16 %v1602, %v1596
        %v1783 = vpack.c.b16 %v1603, %v1597
        %v1784 = vpack.c.b16 %v1604, %v1598
        %v1785 = vpack.c.b16 %v1605, %v1599
        %v1786 = vpack.c.b16 %v1606, %v1600
        %v1787 = vpack.c.b16 %v1607, %v1601
        %v1788 = vpack.c.b16 %v1614, %v1608
        %v1789 = vpack.c.b16 %v1615, %v1609
        %v1790 = vpack.c.b16 %v1616, %v1610
        %v1791 = vpack.c.b16 %v1617, %v1611
        %v1792 = vpack.c.b16 %v1618, %v1612
        %v1793 = vpack.c.b16 %v1619, %v1613
        %v1794 = vpack.c.b16 %v1626, %v1620
        %v1795 = vpack.c.b16 %v1627, %v1621
        %v1796 = vpack.c.b16 %v1628, %v1622
        %v1797 = vpack.c.b16 %v1629, %v1623
        %v1798 = vpack.c.b16 %v1630, %v1624
        %v1799 = vpack.c.b16 %v1631, %v1625
        %v1800 = vpack.c.b16 %v1638, %v1632
        %v1801 = vpack.c.b16 %v1639, %v1633
        %v1802 = vpack.c.b16 %v1640, %v1634
        %v1803 = vpack.c.b16 %v1641, %v1635
        %v1804 = vpack.c.b16 %v1642, %v1636
        %v1805 = vpack.c.b16 %v1643, %v1637
        %v1806 = vpack.c.b16 %v1650, %v1644
        %v1807 = vpack.c.b16 %v1651, %v1645
        %v1808 = vpack.c.b16 %v1652, %v1646
        %v1809 = vpack.c.b16 %v1653, %v1647
        %v1810 = vpack.c.b16 %v1654, %v1648
        %v1811 = vpack.c.b16 %v1655, %v1649
        %v1812 = vpack.c.b16 %v1662, %v1656
        %v1813 = vpack.c.b16 %v1663, %v1657
        %v1814 = vpack.c.b16 %v1664, %v1658
        %v1815 = vpack.c.b16 %v1665, %v1659
        %v1816 = vpack.c.b16 %v1666, %v1660
        %v1817 = vpack.c.b16 %v1667, %v1661
        %v1818 = vpack.c.b16 %v1674, %v1668
        %v1819 = vpack.c.b16 %v1675, %v1669
        %v1820 = vpack.c.b16 %v1676, %v1670
        %v1821 = vpack.c.b16 %v1677, %v1671
        %v1822 = vpack.c.b16 %v1678, %v1672
        %v1823 = vpack.c.b16 %v1679, %v1673
        %v1824 = vpack.c.b16 %v1686, %v1680
        %v1825 = vpack.c.b16 %v1687, %v1681
        %v1826 = vpack.c.b16 %v1688, %v1682
        %v1827 = vpack.c.b16 %v1689, %v1683
        %v1828 = vpack.c.b16 %v1690, %v1684
        %v1829 = vpack.c.b16 %v1691, %v1685
        %v1830 = vpack.c.b16 %v1698, %v1692
        %v1831 = vpack.c.b16 %v1699, %v1693
        %v1832 = vpack.c.b16 %v1700, %v1694
        %v1833 = vpack.c.b16 %v1701, %v1695
        %v1834 = vpack.c.b16 %v1702, %v1696
        %v1835 = vpack.c.b16 %v1703, %v1697
        %v1836 = vpack.c.b16 %v1710, %v1704
        %v1837 = vpack.c.b16 %v1711, %v1705
        %v1838 = vpack.c.b16 %v1712, %v1706
        %v1839 = vpack.c.b16 %v1713, %v1707
        %v1840 = vpack.c.b16 %v1714, %v1708
        %v1841 = vpack.c.b16 %v1715, %v1709
        %v1842 = vpack.c.b16 %v1722, %v1716
        %v1843 = vpack.c.b16 %v1723, %v1717
        %v1844 = vpack.c.b16 %v1724, %v1718
        %v1845 = vpack.c.b16 %v1725, %v1719
        %v1846 = vpack.c.b16 %v1726, %v1720
        %v1847 = vpack.c.b16 %v1727, %v1721
        %v1848 = vpack.c.b16 %v1734, %v1728
        %v1849 = vpack.c.b16 %v1735, %v1729
        %v1850 = vpack.c.b16 %v1736, %v1730
        %v1851 = vpack.c.b16 %v1737, %v1731
        %v1852 = vpack.c.b16 %v1738, %v1732
        %v1853 = vpack.c.b16 %v1739, %v1733
        %v1854 = vpack.c.b16 %v1746, %v1740
        %v1855 = vpack.c.b16 %v1747, %v1741
        %v1856 = vpack.c.b16 %v1748, %v1742
        %v1857 = vpack.c.b16 %v1749, %v1743
        %v1858 = vpack.c.b16 %v1750, %v1744
        %v1859 = vpack.c.b16 %v1751, %v1745
        %v1860 = vpack.c.b16 %v1758, %v1752
        %v1861 = vpack.c.b16 %v1759, %v1753
        %v1862 = vpack.c.b16 %v1760, %v1754
        %v1863 = vpack.c.b16 %v1761, %v1755
        %v1864 = vpack.c.b16 %v1762, %v1756
        %v1865 = vpack.c.b16 %v1763, %v1757
        %v1866 = vpack.c.b16 %v1770, %v1764
        %v1867 = vpack.c.b16 %v1771, %v1765
        %v1868 = vpack.c.b16 %v1772, %v1766
        %v1869 = vpack.c.b16 %v1773, %v1767
        %v1870 = vpack.c.b16 %v1774, %v1768
        %v1871 = vpack.c.b16 %v1775, %v1769
        %1968 = vmatprep.subr.bf16.mxu0 %v1777
        %1969 = vmatpush1.bf16.msra.mxu0 %v1776
        %1970 = vmatprep.subr.bf16.mxu0 %v1783
        %1971 = vmatpush1.bf16.msra.mxu0 %v1782
        %1972 = vmatprep.subr.bf16.mxu0 %v1789
        %1973 = vmatpush1.bf16.msra.mxu0 %v1788
        %1974 = vmatprep.subr.bf16.mxu0 %v1795
        %1975 = vmatpush1.bf16.msra.mxu0 %v1794
        %1976 = vmatprep.subr.bf16.mxu0 %v1801
        %1977 = vmatpush1.bf16.msra.mxu0 %v1800
        %1978 = vmatprep.subr.bf16.mxu0 %v1807
        %1979 = vmatpush1.bf16.msra.mxu0 %v1806
        %1980 = vmatprep.subr.bf16.mxu0 %v1813
        %1981 = vmatpush1.bf16.msra.mxu0 %v1812
        %1982 = vmatprep.subr.bf16.mxu0 %v1819
        %1983 = vmatpush1.bf16.msra.mxu0 %v1818
        %1984 = vmatprep.subr.bf16.mxu0 %v1825
        %1985 = vmatpush1.bf16.msra.mxu0 %v1824
        %1986 = vmatprep.subr.bf16.mxu0 %v1831
        %1987 = vmatpush1.bf16.msra.mxu0 %v1830
        %1988 = vmatprep.subr.bf16.mxu0 %v1837
        %1989 = vmatpush1.bf16.msra.mxu0 %v1836
        %1990 = vmatprep.subr.bf16.mxu0 %v1843
        %1991 = vmatpush1.bf16.msra.mxu0 %v1842
        %1992 = vmatprep.subr.bf16.mxu0 %v1849
        %1993 = vmatpush1.bf16.msra.mxu0 %v1848
        %1994 = vmatprep.subr.bf16.mxu0 %v1855
        %1995 = vmatpush1.bf16.msra.mxu0 %v1854
        %1996 = vmatprep.subr.bf16.mxu0 %v1861
        %1997 = vmatpush1.bf16.msra.mxu0 %v1860
        %1998 = vmatprep.subr.bf16.mxu0 %v1867
        %1999 = vmatpush1.bf16.msra.mxu0 %v1866
        %2000 = vmatprep.mubr.bf16.mxu0 %v1357
        %2001 = vmatmul.mubr.bf16.gmra.mrb[0].mxu0 %v1356
        %v2002 = vpop.f32.mrb[0].mxu0
        %v2003 = vadd.f32 %v1461, %v2002
        %v2004 = vpop.f32.mrb[0].mxu0
        %v2005 = vadd.f32 %v1465, %v2004
        %v2006 = vpop.f32.mrb[0].mxu0
        %v2007 = vadd.f32 %v1461, %v2006
        %v2008 = vpop.f32.mrb[0].mxu0
        %v2009 = vadd.f32 %v1465, %v2008
        %2010 = vmatprep.mubr.bf16.mxu0 %v1359
        %2011 = vmatmul.mubr.bf16.gmra.mrb[0].mxu0 %v1358
        %v2012 = vpop.f32.mrb[0].mxu0
        %v2013 = vadd.f32 %v1461, %v2012
        %v2014 = vpop.f32.mrb[0].mxu0
        %v2015 = vadd.f32 %v1465, %v2014
        %v2016 = vpop.f32.mrb[0].mxu0
        %v2017 = vpop.f32.mrb[0].mxu0
        %2018 = vdwg.mxu0
        %2019 = vmatprep.subr.bf16.mxu0 %v1779
        %2020 = vmatpush1.bf16.msra.mxu0 %v1778
        %2021 = vmatprep.subr.bf16.mxu0 %v1785
        %2022 = vmatpush1.bf16.msra.mxu0 %v1784
        %2023 = vmatprep.subr.bf16.mxu0 %v1791
        %2024 = vmatpush1.bf16.msra.mxu0 %v1790
        %2025 = vmatprep.subr.bf16.mxu0 %v1797
        %2026 = vmatpush1.bf16.msra.mxu0 %v1796
        %2027 = vmatprep.subr.bf16.mxu0 %v1803
        %2028 = vmatpush1.bf16.msra.mxu0 %v1802
        %2029 = vmatprep.subr.bf16.mxu0 %v1809
        %2030 = vmatpush1.bf16.msra.mxu0 %v1808
        %2031 = vmatprep.subr.bf16.mxu0 %v1815
        %2032 = vmatpush1.bf16.msra.mxu0 %v1814
        %2033 = vmatprep.subr.bf16.mxu0 %v1821
        %2034 = vmatpush1.bf16.msra.mxu0 %v1820
        %2035 = vmatprep.subr.bf16.mxu0 %v1827
        %2036 = vmatpush1.bf16.msra.mxu0 %v1826
        %2037 = vmatprep.subr.bf16.mxu0 %v1833
        %2038 = vmatpush1.bf16.msra.mxu0 %v1832
        %2039 = vmatprep.subr.bf16.mxu0 %v1839
        %2040 = vmatpush1.bf16.msra.mxu0 %v1838
        %2041 = vmatprep.subr.bf16.mxu0 %v1845
        %2042 = vmatpush1.bf16.msra.mxu0 %v1844
        %2043 = vmatprep.subr.bf16.mxu0 %v1851
        %2044 = vmatpush1.bf16.msra.mxu0 %v1850
        %2045 = vmatprep.subr.bf16.mxu0 %v1857
        %2046 = vmatpush1.bf16.msra.mxu0 %v1856
        %2047 = vmatprep.subr.bf16.mxu0 %v1863
        %2048 = vmatpush1.bf16.msra.mxu0 %v1862
        %2049 = vmatprep.subr.bf16.mxu0 %v1869
        %2050 = vmatpush1.bf16.msra.mxu0 %v1868
        %2051 = vmatprep.mubr.bf16.mxu0 %v1357
        %2052 = vmatmul.mubr.bf16.gmra.mrb[0].mxu0 %v1356
        %v2053 = vpop.f32.mrb[0].mxu0
        %v2054 = vadd.f32 %v1469, %v2053
        %v2055 = vpop.f32.mrb[0].mxu0
        %v2056 = vadd.f32 %v1473, %v2055
        %v2057 = vpop.f32.mrb[0].mxu0
        %v2058 = vadd.f32 %v1469, %v2057
        %v2059 = vpop.f32.mrb[0].mxu0
        %v2060 = vadd.f32 %v1473, %v2059
        %2061 = vmatprep.mubr.bf16.mxu0 %v1359
        %2062 = vmatmul.mubr.bf16.gmra.mrb[0].mxu0 %v1358
        %v2063 = vpop.f32.mrb[0].mxu0
        %v2064 = vadd.f32 %v1469, %v2063
        %v2065 = vpop.f32.mrb[0].mxu0
        %v2066 = vadd.f32 %v1473, %v2065
        %v2067 = vpop.f32.mrb[0].mxu0
        %v2068 = vpop.f32.mrb[0].mxu0
        %2069 = vdwg.mxu0
        %2070 = vmatprep.subr.bf16.mxu0 %v1781
        %2071 = vmatpush1.bf16.msra.mxu0 %v1780
        %2072 = vmatprep.subr.bf16.mxu0 %v1787
        %2073 = vmatpush1.bf16.msra.mxu0 %v1786
        %2074 = vmatprep.subr.bf16.mxu0 %v1793
        %2075 = vmatpush1.bf16.msra.mxu0 %v1792
        %2076 = vmatprep.subr.bf16.mxu0 %v1799
        %2077 = vmatpush1.bf16.msra.mxu0 %v1798
        %2078 = vmatprep.subr.bf16.mxu0 %v1805
        %2079 = vmatpush1.bf16.msra.mxu0 %v1804
        %2080 = vmatprep.subr.bf16.mxu0 %v1811
        %2081 = vmatpush1.bf16.msra.mxu0 %v1810
        %2082 = vmatprep.subr.bf16.mxu0 %v1817
        %2083 = vmatpush1.bf16.msra.mxu0 %v1816
        %2084 = vmatprep.subr.bf16.mxu0 %v1823
        %2085 = vmatpush1.bf16.msra.mxu0 %v1822
        %2086 = vmatprep.subr.bf16.mxu0 %v1829
        %2087 = vmatpush1.bf16.msra.mxu0 %v1828
        %2088 = vmatprep.subr.bf16.mxu0 %v1835
        %2089 = vmatpush1.bf16.msra.mxu0 %v1834
        %2090 = vmatprep.subr.bf16.mxu0 %v1841
        %2091 = vmatpush1.bf16.msra.mxu0 %v1840
        %2092 = vmatprep.subr.bf16.mxu0 %v1847
        %2093 = vmatpush1.bf16.msra.mxu0 %v1846
        %2094 = vmatprep.subr.bf16.mxu0 %v1853
        %2095 = vmatpush1.bf16.msra.mxu0 %v1852
        %2096 = vmatprep.subr.bf16.mxu0 %v1859
        %2097 = vmatpush1.bf16.msra.mxu0 %v1858
        %2098 = vmatprep.subr.bf16.mxu0 %v1865
        %2099 = vmatpush1.bf16.msra.mxu0 %v1864
        %2100 = vmatprep.subr.bf16.mxu0 %v1871
        %2101 = vmatpush1.bf16.msra.mxu0 %v1870
        %2102 = vmatprep.mubr.bf16.mxu0 %v1357
        %2103 = vmatmul.mubr.bf16.gmra.mrb[0].mxu0 %v1356
        %v2104 = vpop.f32.mrb[0].mxu0
        %v2105 = vadd.f32 %v1477, %v2104
        %v2106 = vpop.f32.mrb[0].mxu0
        %v2107 = vadd.f32 %v1481, %v2106
        %v2108 = vpop.f32.mrb[0].mxu0
        %v2109 = vadd.f32 %v1477, %v2108
        %v2110 = vpop.f32.mrb[0].mxu0
        %v2111 = vadd.f32 %v1481, %v2110
        %2112 = vmatprep.mubr.bf16.mxu0 %v1359
        %2113 = vmatmul.mubr.bf16.gmra.mrb[0].mxu0 %v1358
        %v2114 = vpop.f32.mrb[0].mxu0
        %v2115 = vadd.f32 %v1477, %v2114
        %v2116 = vpop.f32.mrb[0].mxu0
        %v2117 = vadd.f32 %v1481, %v2116
        %v2118 = vpop.f32.mrb[0].mxu0
        %v2119 = vpop.f32.mrb[0].mxu0
        %2120 = vdwg.mxu0
        %v2121 = vmul.f32 %v2003, 0.088388346
        %v2122 = vmul.f32 %v2005, 0.088388346
        %v2123 = vmul.f32 %v2007, 0.088388346
        %v2124 = vmul.f32 %v2009, 0.088388346
        %v2125 = vcombine.high %v2121, 0.0
        %v2127 = vunpack.c.l.s4 1983009808
        %v2128 = vunpack.c.0.s8 %v2127
        %v2129 = vlaneseq
        %v2130 = vshrl.u32 %v2129, 7
        %v2131 = vsub.s32 %v2128, %v2130
        %v2132 = vrot.slane %v2121, %v2131
        %v2134 = vunpack.c.l.s4 1983009808
        %v2135 = vunpack.c.0.s8 %v2134
        %v2136 = vlaneseq
        %v2137 = vshrl.u32 %v2136, 7
        %v2138 = vsub.s32 %v2135, %v2137
        %v2139 = vrot.slane %v2125, %v2138
        %v2140 = vcombine.high %v2122, 0.0
        %v2142 = vunpack.c.l.s4 1983009808
        %v2143 = vunpack.c.0.s8 %v2142
        %v2144 = vlaneseq
        %v2145 = vshrl.u32 %v2144, 7
        %v2146 = vsub.s32 %v2143, %v2145
        %v2147 = vrot.slane %v2122, %v2146
        %v2149 = vunpack.c.l.s4 1983009808
        %v2150 = vunpack.c.0.s8 %v2149
        %v2151 = vlaneseq
        %v2152 = vshrl.u32 %v2151, 7
        %v2153 = vsub.s32 %v2150, %v2152
        %v2154 = vrot.slane %v2140, %v2153
        %v2155 = vcombine.low %v2132, %v2147
        %v2156 = vcombine.high %v2132, %v2147
        %v2158 = vunpack.c.l.s4 1934713408
        %v2159 = vunpack.c.0.s8 %v2158
        %v2160 = vlaneseq
        %v2161 = vshrl.u32 %v2160, 7
        %v2162 = vsub.s32 %v2159, %v2161
        %v2163 = vrot.slane %v2155, %v2162
        %v2165 = vunpack.c.l.s4 1934713408
        %v2166 = vunpack.c.0.s8 %v2165
        %v2167 = vlaneseq
        %v2168 = vshrl.u32 %v2167, 7
        %v2169 = vsub.s32 %v2166, %v2168
        %v2170 = vrot.slane %v2156, %v2169
        %v2171 = vcombine.low %v2139, %v2154
        %v2172 = vcombine.high %v2139, %v2154
        %v2174 = vunpack.c.l.s4 1934713408
        %v2175 = vunpack.c.0.s8 %v2174
        %v2176 = vlaneseq
        %v2177 = vshrl.u32 %v2176, 7
        %v2178 = vsub.s32 %v2175, %v2177
        %v2179 = vrot.slane %v2171, %v2178
        %v2181 = vunpack.c.l.s4 1934713408
        %v2182 = vunpack.c.0.s8 %v2181
        %v2183 = vlaneseq
        %v2184 = vshrl.u32 %v2183, 7
        %v2185 = vsub.s32 %v2182, %v2184
        %v2186 = vrot.slane %v2172, %v2185
        %v2187 = vcombine.high %v2163, 0.0
        %v2188 = vcombine.high %v2170, 0.0
        %v2189 = vcombine.high %v2179, 0.0
        %v2190 = vcombine.high %v2186, 0.0
        %v2191 = vcombine.high %v2123, 0.0
        %v2193 = vunpack.c.l.s4 1983009808
        %v2194 = vunpack.c.0.s8 %v2193
        %v2195 = vlaneseq
        %v2196 = vshrl.u32 %v2195, 7
        %v2197 = vsub.s32 %v2194, %v2196
        %v2198 = vrot.slane %v2123, %v2197
        %v2200 = vunpack.c.l.s4 1983009808
        %v2201 = vunpack.c.0.s8 %v2200
        %v2202 = vlaneseq
        %v2203 = vshrl.u32 %v2202, 7
        %v2204 = vsub.s32 %v2201, %v2203
        %v2205 = vrot.slane %v2191, %v2204
        %v2206 = vcombine.high %v2124, 0.0
        %v2208 = vunpack.c.l.s4 1983009808
        %v2209 = vunpack.c.0.s8 %v2208
        %v2210 = vlaneseq
        %v2211 = vshrl.u32 %v2210, 7
        %v2212 = vsub.s32 %v2209, %v2211
        %v2213 = vrot.slane %v2124, %v2212
        %v2215 = vunpack.c.l.s4 1983009808
        %v2216 = vunpack.c.0.s8 %v2215
        %v2217 = vlaneseq
        %v2218 = vshrl.u32 %v2217, 7
        %v2219 = vsub.s32 %v2216, %v2218
        %v2220 = vrot.slane %v2206, %v2219
        %v2221 = vcombine.low %v2198, %v2213
        %v2222 = vcombine.high %v2198, %v2213
        %v2224 = vunpack.c.l.s4 1934713408
        %v2225 = vunpack.c.0.s8 %v2224
        %v2226 = vlaneseq
        %v2227 = vshrl.u32 %v2226, 7
        %v2228 = vsub.s32 %v2225, %v2227
        %v2229 = vrot.slane %v2221, %v2228
        %v2231 = vunpack.c.l.s4 1934713408
        %v2232 = vunpack.c.0.s8 %v2231
        %v2233 = vlaneseq
        %v2234 = vshrl.u32 %v2233, 7
        %v2235 = vsub.s32 %v2232, %v2234
        %v2236 = vrot.slane %v2222, %v2235
        %v2237 = vcombine.low %v2205, %v2220
        %v2238 = vcombine.high %v2205, %v2220
        %v2240 = vunpack.c.l.s4 1934713408
        %v2241 = vunpack.c.0.s8 %v2240
        %v2242 = vlaneseq
        %v2243 = vshrl.u32 %v2242, 7
        %v2244 = vsub.s32 %v2241, %v2243
        %v2245 = vrot.slane %v2237, %v2244
        %v2247 = vunpack.c.l.s4 1934713408
        %v2248 = vunpack.c.0.s8 %v2247
        %v2249 = vlaneseq
        %v2250 = vshrl.u32 %v2249, 7
        %v2251 = vsub.s32 %v2248, %v2250
        %v2252 = vrot.slane %v2238, %v2251
        %v2253 = vcombine.high %v2229, 0.0
        %v2254 = vcombine.high %v2236, 0.0
        %v2255 = vcombine.high %v2245, 0.0
        %v2256 = vcombine.high %v2252, 0.0
        %v2257 = vmul.f32 %v2013, 0.088388346
        %v2258 = vmul.f32 %v2015, 0.088388346
        %v2259 = vcombine.low %v2257, %v2258
        %v2261 = vunpack.c.l.s4 1934713408
        %v2262 = vunpack.c.0.s8 %v2261
        %v2263 = vlaneseq
        %v2264 = vshrl.u32 %v2263, 7
        %v2265 = vsub.s32 %v2262, %v2264
        %v2266 = vrot.slane %v2259, %v2265
        %v2267 = vpack.c.bf16 %v2163, %v2163
        %v2268 = vpack.c.bf16 %v2187, %v2187
        %v2269 = vpack.c.bf16 %v2170, %v2170
        %v2270 = vpack.c.bf16 %v2188, %v2188
        %v2271 = vpack.c.bf16 %v2179, %v2179
        %v2272 = vpack.c.bf16 %v2189, %v2189
        %v2273 = vpack.c.bf16 %v2186, %v2186
        %v2274 = vpack.c.bf16 %v2190, %v2190
        %v2275 = vpack.c.bf16 %v2229, %v2229
        %v2276 = vpack.c.bf16 %v2253, %v2253
        %v2277 = vpack.c.bf16 %v2236, %v2236
        %v2278 = vpack.c.bf16 %v2254, %v2254
        %v2279 = vpack.c.bf16 %v2245, %v2245
        %v2280 = vpack.c.bf16 %v2255, %v2255
        %v2281 = vpack.c.bf16 %v2252, %v2252
        %v2282 = vpack.c.bf16 %v2256, %v2256
        %v2283 = vcombine.high %v2054, 0.0
        %v2285 = vunpack.c.l.s4 1983009808
        %v2286 = vunpack.c.0.s8 %v2285
        %v2287 = vlaneseq
        %v2288 = vshrl.u32 %v2287, 7
        %v2289 = vsub.s32 %v2286, %v2288
        %v2290 = vrot.slane %v2054, %v2289
        %v2292 = vunpack.c.l.s4 1983009808
        %v2293 = vunpack.c.0.s8 %v2292
        %v2294 = vlaneseq
        %v2295 = vshrl.u32 %v2294, 7
        %v2296 = vsub.s32 %v2293, %v2295
        %v2297 = vrot.slane %v2283, %v2296
        %v2298 = vcombine.high %v2056, 0.0
        %v2300 = vunpack.c.l.s4 1983009808
        %v2301 = vunpack.c.0.s8 %v2300
        %v2302 = vlaneseq
        %v2303 = vshrl.u32 %v2302, 7
        %v2304 = vsub.s32 %v2301, %v2303
        %v2305 = vrot.slane %v2056, %v2304
        %v2307 = vunpack.c.l.s4 1983009808
        %v2308 = vunpack.c.0.s8 %v2307
        %v2309 = vlaneseq
        %v2310 = vshrl.u32 %v2309, 7
        %v2311 = vsub.s32 %v2308, %v2310
        %v2312 = vrot.slane %v2298, %v2311
        %v2313 = vcombine.low %v2290, %v2305
        %v2314 = vcombine.high %v2290, %v2305
        %v2316 = vunpack.c.l.s4 1934713408
        %v2317 = vunpack.c.0.s8 %v2316
        %v2318 = vlaneseq
        %v2319 = vshrl.u32 %v2318, 7
        %v2320 = vsub.s32 %v2317, %v2319
        %v2321 = vrot.slane %v2313, %v2320
        %v2323 = vunpack.c.l.s4 1934713408
        %v2324 = vunpack.c.0.s8 %v2323
        %v2325 = vlaneseq
        %v2326 = vshrl.u32 %v2325, 7
        %v2327 = vsub.s32 %v2324, %v2326
        %v2328 = vrot.slane %v2314, %v2327
        %v2329 = vcombine.low %v2297, %v2312
        %v2330 = vcombine.high %v2297, %v2312
        %v2332 = vunpack.c.l.s4 1934713408
        %v2333 = vunpack.c.0.s8 %v2332
        %v2334 = vlaneseq
        %v2335 = vshrl.u32 %v2334, 7
        %v2336 = vsub.s32 %v2333, %v2335
        %v2337 = vrot.slane %v2329, %v2336
        %v2339 = vunpack.c.l.s4 1934713408
        %v2340 = vunpack.c.0.s8 %v2339
        %v2341 = vlaneseq
        %v2342 = vshrl.u32 %v2341, 7
        %v2343 = vsub.s32 %v2340, %v2342
        %v2344 = vrot.slane %v2330, %v2343
        %v2345 = vcombine.high %v2321, 0.0
        %v2346 = vcombine.high %v2328, 0.0
        %v2347 = vcombine.high %v2337, 0.0
        %v2348 = vcombine.high %v2344, 0.0
        %v2349 = vcombine.high %v2058, 0.0
        %v2351 = vunpack.c.l.s4 1983009808
        %v2352 = vunpack.c.0.s8 %v2351
        %v2353 = vlaneseq
        %v2354 = vshrl.u32 %v2353, 7
        %v2355 = vsub.s32 %v2352, %v2354
        %v2356 = vrot.slane %v2058, %v2355
        %v2358 = vunpack.c.l.s4 1983009808
        %v2359 = vunpack.c.0.s8 %v2358
        %v2360 = vlaneseq
        %v2361 = vshrl.u32 %v2360, 7
        %v2362 = vsub.s32 %v2359, %v2361
        %v2363 = vrot.slane %v2349, %v2362
        %v2364 = vcombine.high %v2060, 0.0
        %v2366 = vunpack.c.l.s4 1983009808
        %v2367 = vunpack.c.0.s8 %v2366
        %v2368 = vlaneseq
        %v2369 = vshrl.u32 %v2368, 7
        %v2370 = vsub.s32 %v2367, %v2369
        %v2371 = vrot.slane %v2060, %v2370
        %v2373 = vunpack.c.l.s4 1983009808
        %v2374 = vunpack.c.0.s8 %v2373
        %v2375 = vlaneseq
        %v2376 = vshrl.u32 %v2375, 7
        %v2377 = vsub.s32 %v2374, %v2376
        %v2378 = vrot.slane %v2364, %v2377
        %v2379 = vcombine.low %v2356, %v2371
        %v2380 = vcombine.high %v2356, %v2371
        %v2382 = vunpack.c.l.s4 1934713408
        %v2383 = vunpack.c.0.s8 %v2382
        %v2384 = vlaneseq
        %v2385 = vshrl.u32 %v2384, 7
        %v2386 = vsub.s32 %v2383, %v2385
        %v2387 = vrot.slane %v2379, %v2386
        %v2389 = vunpack.c.l.s4 1934713408
        %v2390 = vunpack.c.0.s8 %v2389
        %v2391 = vlaneseq
        %v2392 = vshrl.u32 %v2391, 7
        %v2393 = vsub.s32 %v2390, %v2392
        %v2394 = vrot.slane %v2380, %v2393
        %v2395 = vcombine.low %v2363, %v2378
        %v2396 = vcombine.high %v2363, %v2378
        %v2398 = vunpack.c.l.s4 1934713408
        %v2399 = vunpack.c.0.s8 %v2398
        %v2400 = vlaneseq
        %v2401 = vshrl.u32 %v2400, 7
        %v2402 = vsub.s32 %v2399, %v2401
        %v2403 = vrot.slane %v2395, %v2402
        %v2405 = vunpack.c.l.s4 1934713408
        %v2406 = vunpack.c.0.s8 %v2405
        %v2407 = vlaneseq
        %v2408 = vshrl.u32 %v2407, 7
        %v2409 = vsub.s32 %v2406, %v2408
        %v2410 = vrot.slane %v2396, %v2409
        %v2411 = vcombine.high %v2387, 0.0
        %v2412 = vcombine.high %v2394, 0.0
        %v2413 = vcombine.high %v2403, 0.0
        %v2414 = vcombine.high %v2410, 0.0
        %v2415 = vcombine.low %v2064, %v2066
        %v2417 = vunpack.c.l.s4 1934713408
        %v2418 = vunpack.c.0.s8 %v2417
        %v2419 = vlaneseq
        %v2420 = vshrl.u32 %v2419, 7
        %v2421 = vsub.s32 %v2418, %v2420
        %v2422 = vrot.slane %v2415, %v2421
        %v2423 = vpack.c.bf16 %v2321, %v2321
        %v2424 = vpack.c.bf16 %v2345, %v2345
        %v2425 = vpack.c.bf16 %v2328, %v2328
        %v2426 = vpack.c.bf16 %v2346, %v2346
        %v2427 = vpack.c.bf16 %v2337, %v2337
        %v2428 = vpack.c.bf16 %v2347, %v2347
        %v2429 = vpack.c.bf16 %v2344, %v2344
        %v2430 = vpack.c.bf16 %v2348, %v2348
        %v2431 = vpack.c.bf16 %v2387, %v2387
        %v2432 = vpack.c.bf16 %v2411, %v2411
        %v2433 = vpack.c.bf16 %v2394, %v2394
        %v2434 = vpack.c.bf16 %v2412, %v2412
        %v2435 = vpack.c.bf16 %v2403, %v2403
        %v2436 = vpack.c.bf16 %v2413, %v2413
        %v2437 = vpack.c.bf16 %v2410, %v2410
        %v2438 = vpack.c.bf16 %v2414, %v2414
        %v2439 = vcombine.high %v2105, 0.0
        %v2441 = vunpack.c.l.s4 1983009808
        %v2442 = vunpack.c.0.s8 %v2441
        %v2443 = vlaneseq
        %v2444 = vshrl.u32 %v2443, 7
        %v2445 = vsub.s32 %v2442, %v2444
        %v2446 = vrot.slane %v2105, %v2445
        %v2448 = vunpack.c.l.s4 1983009808
        %v2449 = vunpack.c.0.s8 %v2448
        %v2450 = vlaneseq
        %v2451 = vshrl.u32 %v2450, 7
        %v2452 = vsub.s32 %v2449, %v2451
        %v2453 = vrot.slane %v2439, %v2452
        %v2454 = vcombine.high %v2107, 0.0
        %v2456 = vunpack.c.l.s4 1983009808
        %v2457 = vunpack.c.0.s8 %v2456
        %v2458 = vlaneseq
        %v2459 = vshrl.u32 %v2458, 7
        %v2460 = vsub.s32 %v2457, %v2459
        %v2461 = vrot.slane %v2107, %v2460
        %v2463 = vunpack.c.l.s4 1983009808
        %v2464 = vunpack.c.0.s8 %v2463
        %v2465 = vlaneseq
        %v2466 = vshrl.u32 %v2465, 7
        %v2467 = vsub.s32 %v2464, %v2466
        %v2468 = vrot.slane %v2454, %v2467
        %v2469 = vcombine.low %v2446, %v2461
        %v2470 = vcombine.high %v2446, %v2461
        %v2472 = vunpack.c.l.s4 1934713408
        %v2473 = vunpack.c.0.s8 %v2472
        %v2474 = vlaneseq
        %v2475 = vshrl.u32 %v2474, 7
        %v2476 = vsub.s32 %v2473, %v2475
        %v2477 = vrot.slane %v2469, %v2476
        %v2479 = vunpack.c.l.s4 1934713408
        %v2480 = vunpack.c.0.s8 %v2479
        %v2481 = vlaneseq
        %v2482 = vshrl.u32 %v2481, 7
        %v2483 = vsub.s32 %v2480, %v2482
        %v2484 = vrot.slane %v2470, %v2483
        %v2485 = vcombine.low %v2453, %v2468
        %v2486 = vcombine.high %v2453, %v2468
        %v2488 = vunpack.c.l.s4 1934713408
        %v2489 = vunpack.c.0.s8 %v2488
        %v2490 = vlaneseq
        %v2491 = vshrl.u32 %v2490, 7
        %v2492 = vsub.s32 %v2489, %v2491
        %v2493 = vrot.slane %v2485, %v2492
        %v2495 = vunpack.c.l.s4 1934713408
        %v2496 = vunpack.c.0.s8 %v2495
        %v2497 = vlaneseq
        %v2498 = vshrl.u32 %v2497, 7
        %v2499 = vsub.s32 %v2496, %v2498
        %v2500 = vrot.slane %v2486, %v2499
        %v2501 = vcombine.high %v2477, 0.0
        %v2502 = vcombine.high %v2484, 0.0
        %v2503 = vcombine.high %v2493, 0.0
        %v2504 = vcombine.high %v2500, 0.0
        %v2505 = vcombine.high %v2109, 0.0
        %v2507 = vunpack.c.l.s4 1983009808
        %v2508 = vunpack.c.0.s8 %v2507
        %v2509 = vlaneseq
        %v2510 = vshrl.u32 %v2509, 7
        %v2511 = vsub.s32 %v2508, %v2510
        %v2512 = vrot.slane %v2109, %v2511
        %v2514 = vunpack.c.l.s4 1983009808
        %v2515 = vunpack.c.0.s8 %v2514
        %v2516 = vlaneseq
        %v2517 = vshrl.u32 %v2516, 7
        %v2518 = vsub.s32 %v2515, %v2517
        %v2519 = vrot.slane %v2505, %v2518
        %v2520 = vcombine.high %v2111, 0.0
        %v2522 = vunpack.c.l.s4 1983009808
        %v2523 = vunpack.c.0.s8 %v2522
        %v2524 = vlaneseq
        %v2525 = vshrl.u32 %v2524, 7
        %v2526 = vsub.s32 %v2523, %v2525
        %v2527 = vrot.slane %v2111, %v2526
        %v2529 = vunpack.c.l.s4 1983009808
        %v2530 = vunpack.c.0.s8 %v2529
        %v2531 = vlaneseq
        %v2532 = vshrl.u32 %v2531, 7
        %v2533 = vsub.s32 %v2530, %v2532
        %v2534 = vrot.slane %v2520, %v2533
        %v2535 = vcombine.low %v2512, %v2527
        %v2536 = vcombine.high %v2512, %v2527
        %v2538 = vunpack.c.l.s4 1934713408
        %v2539 = vunpack.c.0.s8 %v2538
        %v2540 = vlaneseq
        %v2541 = vshrl.u32 %v2540, 7
        %v2542 = vsub.s32 %v2539, %v2541
        %v2543 = vrot.slane %v2535, %v2542
        %v2545 = vunpack.c.l.s4 1934713408
        %v2546 = vunpack.c.0.s8 %v2545
        %v2547 = vlaneseq
        %v2548 = vshrl.u32 %v2547, 7
        %v2549 = vsub.s32 %v2546, %v2548
        %v2550 = vrot.slane %v2536, %v2549
        %v2551 = vcombine.low %v2519, %v2534
        %v2552 = vcombine.high %v2519, %v2534
        %v2554 = vunpack.c.l.s4 1934713408
        %v2555 = vunpack.c.0.s8 %v2554
        %v2556 = vlaneseq
        %v2557 = vshrl.u32 %v2556, 7
        %v2558 = vsub.s32 %v2555, %v2557
        %v2559 = vrot.slane %v2551, %v2558
        %v2561 = vunpack.c.l.s4 1934713408
        %v2562 = vunpack.c.0.s8 %v2561
        %v2563 = vlaneseq
        %v2564 = vshrl.u32 %v2563, 7
        %v2565 = vsub.s32 %v2562, %v2564
        %v2566 = vrot.slane %v2552, %v2565
        %v2567 = vcombine.high %v2543, 0.0
        %v2568 = vcombine.high %v2550, 0.0
        %v2569 = vcombine.high %v2559, 0.0
        %v2570 = vcombine.high %v2566, 0.0
        %v2571 = vcombine.low %v2115, %v2117
        %v2573 = vunpack.c.l.s4 1934713408
        %v2574 = vunpack.c.0.s8 %v2573
        %v2575 = vlaneseq
        %v2576 = vshrl.u32 %v2575, 7
        %v2577 = vsub.s32 %v2574, %v2576
        %v2578 = vrot.slane %v2571, %v2577
        %v2579 = vpack.c.bf16 %v2477, %v2477
        %v2580 = vpack.c.bf16 %v2501, %v2501
        %v2581 = vpack.c.bf16 %v2484, %v2484
        %v2582 = vpack.c.bf16 %v2502, %v2502
        %v2583 = vpack.c.bf16 %v2493, %v2493
        %v2584 = vpack.c.bf16 %v2503, %v2503
        %v2585 = vpack.c.bf16 %v2500, %v2500
        %v2586 = vpack.c.bf16 %v2504, %v2504
        %v2587 = vpack.c.bf16 %v2543, %v2543
        %v2588 = vpack.c.bf16 %v2567, %v2567
        %v2589 = vpack.c.bf16 %v2550, %v2550
        %v2590 = vpack.c.bf16 %v2568, %v2568
        %v2591 = vpack.c.bf16 %v2559, %v2559
        %v2592 = vpack.c.bf16 %v2569, %v2569
        %v2593 = vpack.c.bf16 %v2566, %v2566
        %v2594 = vpack.c.bf16 %v2570, %v2570
        %v2595 = vcombine.low %v2267, %v2271
        %v2597 = vunpack.c.l.s4 1983009808
        %v2598 = vunpack.c.0.s8 %v2597
        %v2599 = vlaneseq
        %v2600 = vshrl.u32 %v2599, 7
        %v2601 = vsub.s32 %v2598, %v2600
        %v2602 = vrot.slane %v2595, %v2601
        %v2603 = vcombine.low %v2269, %v2273
        %v2605 = vunpack.c.l.s4 1983009808
        %v2606 = vunpack.c.0.s8 %v2605
        %v2607 = vlaneseq
        %v2608 = vshrl.u32 %v2607, 7
        %v2609 = vsub.s32 %v2606, %v2608
        %v2610 = vrot.slane %v2603, %v2609
        %v2611 = vcombine.low %v2275, %v2279
        %v2613 = vunpack.c.l.s4 1983009808
        %v2614 = vunpack.c.0.s8 %v2613
        %v2615 = vlaneseq
        %v2616 = vshrl.u32 %v2615, 7
        %v2617 = vsub.s32 %v2614, %v2616
        %v2618 = vrot.slane %v2611, %v2617
        %v2619 = vcombine.low %v2277, %v2281
        %v2621 = vunpack.c.l.s4 1983009808
        %v2622 = vunpack.c.0.s8 %v2621
        %v2623 = vlaneseq
        %v2624 = vshrl.u32 %v2623, 7
        %v2625 = vsub.s32 %v2622, %v2624
        %v2626 = vrot.slane %v2619, %v2625
        %v2627 = vcombine.low %v2602, %v2610
        %v2629 = vunpack.c.l.s4 1934713408
        %v2630 = vunpack.c.0.s8 %v2629
        %v2631 = vlaneseq
        %v2632 = vshrl.u32 %v2631, 7
        %v2633 = vsub.s32 %v2630, %v2632
        %v2634 = vrot.slane %v2627, %v2633
        %v2635 = vcombine.low %v2618, %v2626
        %v2637 = vunpack.c.l.s4 1934713408
        %v2638 = vunpack.c.0.s8 %v2637
        %v2639 = vlaneseq
        %v2640 = vshrl.u32 %v2639, 7
        %v2641 = vsub.s32 %v2638, %v2640
        %v2642 = vrot.slane %v2635, %v2641
        %v2643 = vcombine.low %v2634, %v2642
        %v2644 = vcombine.low %v2268, %v2272
        %v2646 = vunpack.c.l.s4 1983009808
        %v2647 = vunpack.c.0.s8 %v2646
        %v2648 = vlaneseq
        %v2649 = vshrl.u32 %v2648, 7
        %v2650 = vsub.s32 %v2647, %v2649
        %v2651 = vrot.slane %v2644, %v2650
        %v2652 = vcombine.low %v2270, %v2274
        %v2654 = vunpack.c.l.s4 1983009808
        %v2655 = vunpack.c.0.s8 %v2654
        %v2656 = vlaneseq
        %v2657 = vshrl.u32 %v2656, 7
        %v2658 = vsub.s32 %v2655, %v2657
        %v2659 = vrot.slane %v2652, %v2658
        %v2660 = vcombine.low %v2276, %v2280
        %v2662 = vunpack.c.l.s4 1983009808
        %v2663 = vunpack.c.0.s8 %v2662
        %v2664 = vlaneseq
        %v2665 = vshrl.u32 %v2664, 7
        %v2666 = vsub.s32 %v2663, %v2665
        %v2667 = vrot.slane %v2660, %v2666
        %v2668 = vcombine.low %v2278, %v2282
        %v2670 = vunpack.c.l.s4 1983009808
        %v2671 = vunpack.c.0.s8 %v2670
        %v2672 = vlaneseq
        %v2673 = vshrl.u32 %v2672, 7
        %v2674 = vsub.s32 %v2671, %v2673
        %v2675 = vrot.slane %v2668, %v2674
        %v2676 = vcombine.low %v2651, %v2659
        %v2678 = vunpack.c.l.s4 1934713408
        %v2679 = vunpack.c.0.s8 %v2678
        %v2680 = vlaneseq
        %v2681 = vshrl.u32 %v2680, 7
        %v2682 = vsub.s32 %v2679, %v2681
        %v2683 = vrot.slane %v2676, %v2682
        %v2684 = vcombine.low %v2667, %v2675
        %v2686 = vunpack.c.l.s4 1934713408
        %v2687 = vunpack.c.0.s8 %v2686
        %v2688 = vlaneseq
        %v2689 = vshrl.u32 %v2688, 7
        %v2690 = vsub.s32 %v2687, %v2689
        %v2691 = vrot.slane %v2684, %v2690
        %v2692 = vcombine.low %v2683, %v2691
        %v2693 = vpack.c.bf16 %v2266, %v2266
        %v2696 = vpack.i.b16 %v2692, %v2643
        %v2698 = vshrl.u32 %v2643, 16
        %v2699 = vshrl.u32 %v2692, 16
        %v2700 = vpack.i.b16 %v2699, %v2698
        %v2704 = vpack.i.b16 0, %v2693
        %v2706 = vshrl.u32 %v2693, 16
        %v2707 = vshrl.u32 0, 16
        %v2708 = vpack.i.b16 %v2707, %v2706
        %v2710 = vcombine.low %v2423, %v2427
        %v2712 = vunpack.c.l.s4 1983009808
        %v2713 = vunpack.c.0.s8 %v2712
        %v2714 = vlaneseq
        %v2715 = vshrl.u32 %v2714, 7
        %v2716 = vsub.s32 %v2713, %v2715
        %v2717 = vrot.slane %v2710, %v2716
        %v2718 = vcombine.low %v2425, %v2429
        %v2720 = vunpack.c.l.s4 1983009808
        %v2721 = vunpack.c.0.s8 %v2720
        %v2722 = vlaneseq
        %v2723 = vshrl.u32 %v2722, 7
        %v2724 = vsub.s32 %v2721, %v2723
        %v2725 = vrot.slane %v2718, %v2724
        %v2726 = vcombine.low %v2431, %v2435
        %v2728 = vunpack.c.l.s4 1983009808
        %v2729 = vunpack.c.0.s8 %v2728
        %v2730 = vlaneseq
        %v2731 = vshrl.u32 %v2730, 7
        %v2732 = vsub.s32 %v2729, %v2731
        %v2733 = vrot.slane %v2726, %v2732
        %v2734 = vcombine.low %v2433, %v2437
        %v2736 = vunpack.c.l.s4 1983009808
        %v2737 = vunpack.c.0.s8 %v2736
        %v2738 = vlaneseq
        %v2739 = vshrl.u32 %v2738, 7
        %v2740 = vsub.s32 %v2737, %v2739
        %v2741 = vrot.slane %v2734, %v2740
        %v2742 = vcombine.low %v2717, %v2725
        %v2744 = vunpack.c.l.s4 1934713408
        %v2745 = vunpack.c.0.s8 %v2744
        %v2746 = vlaneseq
        %v2747 = vshrl.u32 %v2746, 7
        %v2748 = vsub.s32 %v2745, %v2747
        %v2749 = vrot.slane %v2742, %v2748
        %v2750 = vcombine.low %v2733, %v2741
        %v2752 = vunpack.c.l.s4 1934713408
        %v2753 = vunpack.c.0.s8 %v2752
        %v2754 = vlaneseq
        %v2755 = vshrl.u32 %v2754, 7
        %v2756 = vsub.s32 %v2753, %v2755
        %v2757 = vrot.slane %v2750, %v2756
        %v2758 = vcombine.low %v2749, %v2757
        %v2759 = vcombine.low %v2424, %v2428
        %v2761 = vunpack.c.l.s4 1983009808
        %v2762 = vunpack.c.0.s8 %v2761
        %v2763 = vlaneseq
        %v2764 = vshrl.u32 %v2763, 7
        %v2765 = vsub.s32 %v2762, %v2764
        %v2766 = vrot.slane %v2759, %v2765
        %v2767 = vcombine.low %v2426, %v2430
        %v2769 = vunpack.c.l.s4 1983009808
        %v2770 = vunpack.c.0.s8 %v2769
        %v2771 = vlaneseq
        %v2772 = vshrl.u32 %v2771, 7
        %v2773 = vsub.s32 %v2770, %v2772
        %v2774 = vrot.slane %v2767, %v2773
        %v2775 = vcombine.low %v2432, %v2436
        %v2777 = vunpack.c.l.s4 1983009808
        %v2778 = vunpack.c.0.s8 %v2777
        %v2779 = vlaneseq
        %v2780 = vshrl.u32 %v2779, 7
        %v2781 = vsub.s32 %v2778, %v2780
        %v2782 = vrot.slane %v2775, %v2781
        %v2783 = vcombine.low %v2434, %v2438
        %v2785 = vunpack.c.l.s4 1983009808
        %v2786 = vunpack.c.0.s8 %v2785
        %v2787 = vlaneseq
        %v2788 = vshrl.u32 %v2787, 7
        %v2789 = vsub.s32 %v2786, %v2788
        %v2790 = vrot.slane %v2783, %v2789
        %v2791 = vcombine.low %v2766, %v2774
        %v2793 = vunpack.c.l.s4 1934713408
        %v2794 = vunpack.c.0.s8 %v2793
        %v2795 = vlaneseq
        %v2796 = vshrl.u32 %v2795, 7
        %v2797 = vsub.s32 %v2794, %v2796
        %v2798 = vrot.slane %v2791, %v2797
        %v2799 = vcombine.low %v2782, %v2790
        %v2801 = vunpack.c.l.s4 1934713408
        %v2802 = vunpack.c.0.s8 %v2801
        %v2803 = vlaneseq
        %v2804 = vshrl.u32 %v2803, 7
        %v2805 = vsub.s32 %v2802, %v2804
        %v2806 = vrot.slane %v2799, %v2805
        %v2807 = vcombine.low %v2798, %v2806
        %v2808 = vpack.c.bf16 %v2422, %v2422
        %v2811 = vpack.i.b16 %v2807, %v2758
        %v2813 = vshrl.u32 %v2758, 16
        %v2814 = vshrl.u32 %v2807, 16
        %v2815 = vpack.i.b16 %v2814, %v2813
        %v2818 = vpack.i.b16 0, %v2808
        %v2820 = vshrl.u32 %v2808, 16
        %v2821 = vpack.i.b16 %v2707, %v2820
        %v2823 = vcombine.low %v2579, %v2583
        %v2825 = vunpack.c.l.s4 1983009808
        %v2826 = vunpack.c.0.s8 %v2825
        %v2827 = vlaneseq
        %v2828 = vshrl.u32 %v2827, 7
        %v2829 = vsub.s32 %v2826, %v2828
        %v2830 = vrot.slane %v2823, %v2829
        %v2831 = vcombine.low %v2581, %v2585
        %v2833 = vunpack.c.l.s4 1983009808
        %v2834 = vunpack.c.0.s8 %v2833
        %v2835 = vlaneseq
        %v2836 = vshrl.u32 %v2835, 7
        %v2837 = vsub.s32 %v2834, %v2836
        %v2838 = vrot.slane %v2831, %v2837
        %v2839 = vcombine.low %v2587, %v2591
        %v2841 = vunpack.c.l.s4 1983009808
        %v2842 = vunpack.c.0.s8 %v2841
        %v2843 = vlaneseq
        %v2844 = vshrl.u32 %v2843, 7
        %v2845 = vsub.s32 %v2842, %v2844
        %v2846 = vrot.slane %v2839, %v2845
        %v2847 = vcombine.low %v2589, %v2593
        %v2849 = vunpack.c.l.s4 1983009808
        %v2850 = vunpack.c.0.s8 %v2849
        %v2851 = vlaneseq
        %v2852 = vshrl.u32 %v2851, 7
        %v2853 = vsub.s32 %v2850, %v2852
        %v2854 = vrot.slane %v2847, %v2853
        %v2855 = vcombine.low %v2830, %v2838
        %v2857 = vunpack.c.l.s4 1934713408
        %v2858 = vunpack.c.0.s8 %v2857
        %v2859 = vlaneseq
        %v2860 = vshrl.u32 %v2859, 7
        %v2861 = vsub.s32 %v2858, %v2860
        %v2862 = vrot.slane %v2855, %v2861
        %v2863 = vcombine.low %v2846, %v2854
        %v2865 = vunpack.c.l.s4 1934713408
        %v2866 = vunpack.c.0.s8 %v2865
        %v2867 = vlaneseq
        %v2868 = vshrl.u32 %v2867, 7
        %v2869 = vsub.s32 %v2866, %v2868
        %v2870 = vrot.slane %v2863, %v2869
        %v2871 = vcombine.low %v2862, %v2870
        %v2872 = vcombine.low %v2580, %v2584
        %v2874 = vunpack.c.l.s4 1983009808
        %v2875 = vunpack.c.0.s8 %v2874
        %v2876 = vlaneseq
        %v2877 = vshrl.u32 %v2876, 7
        %v2878 = vsub.s32 %v2875, %v2877
        %v2879 = vrot.slane %v2872, %v2878
        %v2880 = vcombine.low %v2582, %v2586
        %v2882 = vunpack.c.l.s4 1983009808
        %v2883 = vunpack.c.0.s8 %v2882
        %v2884 = vlaneseq
        %v2885 = vshrl.u32 %v2884, 7
        %v2886 = vsub.s32 %v2883, %v2885
        %v2887 = vrot.slane %v2880, %v2886
        %v2888 = vcombine.low %v2588, %v2592
        %v2890 = vunpack.c.l.s4 1983009808
        %v2891 = vunpack.c.0.s8 %v2890
        %v2892 = vlaneseq
        %v2893 = vshrl.u32 %v2892, 7
        %v2894 = vsub.s32 %v2891, %v2893
        %v2895 = vrot.slane %v2888, %v2894
        %v2896 = vcombine.low %v2590, %v2594
        %v2898 = vunpack.c.l.s4 1983009808
        %v2899 = vunpack.c.0.s8 %v2898
        %v2900 = vlaneseq
        %v2901 = vshrl.u32 %v2900, 7
        %v2902 = vsub.s32 %v2899, %v2901
        %v2903 = vrot.slane %v2896, %v2902
        %v2904 = vcombine.low %v2879, %v2887
        %v2906 = vunpack.c.l.s4 1934713408
        %v2907 = vunpack.c.0.s8 %v2906
        %v2908 = vlaneseq
        %v2909 = vshrl.u32 %v2908, 7
        %v2910 = vsub.s32 %v2907, %v2909
        %v2911 = vrot.slane %v2904, %v2910
        %v2912 = vcombine.low %v2895, %v2903
        %v2914 = vunpack.c.l.s4 1934713408
        %v2915 = vunpack.c.0.s8 %v2914
        %v2916 = vlaneseq
        %v2917 = vshrl.u32 %v2916, 7
        %v2918 = vsub.s32 %v2915, %v2917
        %v2919 = vrot.slane %v2912, %v2918
        %v2920 = vcombine.low %v2911, %v2919
        %v2921 = vpack.c.bf16 %v2578, %v2578
        %v2924 = vpack.i.b16 %v2920, %v2871
        %v2926 = vshrl.u32 %v2871, 16
        %v2927 = vshrl.u32 %v2920, 16
        %v2928 = vpack.i.b16 %v2927, %v2926
        %v2931 = vpack.i.b16 0, %v2921
        %v2932 = vshrl.u32 %v2921, 16
        %v2933 = vpack.i.b16 %v2707, %v2932
        %2934 = vmatprep.subr.bf16.mxu0 0
        %2935 = vmatpush1.bf16.xpose.msra.mxu0 %v2811
        %2936 = vmatprep.subr.bf16.mxu0 0
        %2937 = vmatpush1.bf16.xpose.msra.mxu0 %v2818
        %2938 = vmatprep.subr.bf16.mxu0 0
        %2939 = vmatpush1.bf16.xpose.msra.mxu0 0
        %2940 = vmatprep.subr.bf16.mxu0 0
        %2941 = vmatpush1.bf16.xpose.msra.mxu0 0
        %2942 = vmatprep.subr.bf16.mxu0 0
        %2943 = vmatpush1.bf16.xpose.msra.mxu0 0
        %2944 = vmatprep.subr.bf16.mxu0 0
        %2945 = vmatpush1.bf16.xpose.msra.mxu0 0
        %2946 = vmatprep.subr.bf16.mxu0 0
        %2947 = vmatpush1.bf16.xpose.msra.mxu0 0
        %2948 = vmatprep.subr.bf16.mxu0 0
        %2949 = vmatpush1.bf16.xpose.msra.mxu0 0
        %2950 = vmatprep.subr.bf16.mxu0 0
        %2951 = vmatpush1.bf16.xpose.msra.mxu0 0
        %2952 = vmatprep.subr.bf16.mxu0 0
        %2953 = vmatpush1.bf16.xpose.msra.mxu0 0
        %2954 = vmatprep.subr.bf16.mxu0 0
        %2955 = vmatpush1.bf16.xpose.msra.mxu0 0
        %2956 = vmatprep.subr.bf16.mxu0 0
        %2957 = vmatpush1.bf16.xpose.msra.mxu0 0
        %2958 = vmatprep.subr.bf16.mxu0 0
        %2959 = vmatpush1.bf16.xpose.msra.mxu0 0
        %2960 = vmatprep.subr.bf16.mxu0 0
        %2961 = vmatpush1.bf16.xpose.msra.mxu0 0
        %2962 = vmatprep.subr.bf16.mxu0 0
        %2963 = vmatpush1.bf16.xpose.msra.mxu0 0
        %2964 = vmatprep.subr.bf16.mxu0 0
        %2965 = vmatpush1.bf16.xpose.msra.mxu0 0
        %2966 = vmatprep.mubr.bf16.mxu0 0
        %2967 = vmatmul.mubr.bf16.gmra.mrb[0].mxu0 %v2696
        %v2968 = vpop.f32.mrb[0].mxu0
        %v2969 = vadd.f32 0.0, %v2968
        %v2970 = vpop.f32.mrb[0].mxu0
        %v2971 = vpop.f32.mrb[0].mxu0
        %v2972 = vadd.f32 0.0, %v2971
        %v2973 = vpop.f32.mrb[0].mxu0
        %2974 = vmatprep.mubr.bf16.mxu0 0
        %2975 = vmatmul.mubr.bf16.gmra.mrb[0].mxu0 %v2704
        %v2976 = vpop.f32.mrb[0].mxu0
        %v2977 = vadd.f32 0.0, %v2976
        %v2978 = vpop.f32.mrb[0].mxu0
        %v2979 = vpop.f32.mrb[0].mxu0
        %v2980 = vpop.f32.mrb[0].mxu0
        %2981 = vdwg.mxu0
        %2982 = vmatprep.subr.bf16.mxu0 0
        %2983 = vmatpush1.bf16.xpose.msra.mxu0 %v2815
        %2984 = vmatprep.subr.bf16.mxu0 0
        %2985 = vmatpush1.bf16.xpose.msra.mxu0 %v2821
        %2986 = vmatprep.subr.bf16.mxu0 0
        %2987 = vmatpush1.bf16.xpose.msra.mxu0 0
        %2988 = vmatprep.subr.bf16.mxu0 0
        %2989 = vmatpush1.bf16.xpose.msra.mxu0 0
        %2990 = vmatprep.subr.bf16.mxu0 0
        %2991 = vmatpush1.bf16.xpose.msra.mxu0 0
        %2992 = vmatprep.subr.bf16.mxu0 0
        %2993 = vmatpush1.bf16.xpose.msra.mxu0 0
        %2994 = vmatprep.subr.bf16.mxu0 0
        %2995 = vmatpush1.bf16.xpose.msra.mxu0 0
        %2996 = vmatprep.subr.bf16.mxu0 0
        %2997 = vmatpush1.bf16.xpose.msra.mxu0 0
        %2998 = vmatprep.subr.bf16.mxu0 0
        %2999 = vmatpush1.bf16.xpose.msra.mxu0 0
        %3000 = vmatprep.subr.bf16.mxu0 0
        %3001 = vmatpush1.bf16.xpose.msra.mxu0 0
        %3002 = vmatprep.subr.bf16.mxu0 0
        %3003 = vmatpush1.bf16.xpose.msra.mxu0 0
        %3004 = vmatprep.subr.bf16.mxu0 0
        %3005 = vmatpush1.bf16.xpose.msra.mxu0 0
        %3006 = vmatprep.subr.bf16.mxu0 0
        %3007 = vmatpush1.bf16.xpose.msra.mxu0 0
        %3008 = vmatprep.subr.bf16.mxu0 0
        %3009 = vmatpush1.bf16.xpose.msra.mxu0 0
        %3010 = vmatprep.subr.bf16.mxu0 0
        %3011 = vmatpush1.bf16.xpose.msra.mxu0 0
        %3012 = vmatprep.subr.bf16.mxu0 0
        %3013 = vmatpush1.bf16.xpose.msra.mxu0 0
        %3014 = vmatprep.mubr.bf16.mxu0 0
        %3015 = vmatmul.mubr.bf16.gmra.mrb[0].mxu0 %v2700
        %v3016 = vpop.f32.mrb[0].mxu0
        %v3017 = vadd.f32 0.0, %v3016
        %v3018 = vpop.f32.mrb[0].mxu0
        %v3019 = vpop.f32.mrb[0].mxu0
        %v3020 = vadd.f32 0.0, %v3019
        %v3021 = vpop.f32.mrb[0].mxu0
        %3022 = vmatprep.mubr.bf16.mxu0 0
        %3023 = vmatmul.mubr.bf16.gmra.mrb[0].mxu0 %v2708
        %v3024 = vpop.f32.mrb[0].mxu0
        %v3025 = vadd.f32 0.0, %v3024
        %v3026 = vpop.f32.mrb[0].mxu0
        %v3027 = vpop.f32.mrb[0].mxu0
        %v3028 = vpop.f32.mrb[0].mxu0
        %3029 = vdwg.mxu0
        %vm3030 = vcmask 138240
        %v3031 = vsel %vm3030, %v2969, -inf
        %3032 = vmax.xlane.f32.xlu0 %v3031
        %v3033 = vpop.xlane.xlu0 %3032
        %v3034 = vsel %vm3030, %v2972, -inf
        %3035 = vmax.xlane.f32.xlu0 %v3034
        %v3036 = vpop.xlane.xlu0 %3035
        %vm3037 = vcmask 131072
        %v3038 = vsel %vm3037, %v2977, -inf
        %3039 = vmax.xlane.f32.xlu0 %v3038
        %v3040 = vpop.xlane.xlu0 %3039
        %v3041 = vsel %vm3030, %v3017, -inf
        %3042 = vmax.xlane.f32.xlu0 %v3041
        %v3043 = vpop.xlane.xlu0 %3042
        %v3044 = vsel %vm3030, %v3020, -inf
        %3045 = vmax.xlane.f32.xlu0 %v3044
        %v3046 = vpop.xlane.xlu0 %3045
        %v3047 = vsel %vm3037, %v3025, -inf
        %3048 = vmax.xlane.f32.xlu0 %v3047
        %v3049 = vpop.xlane.xlu0 %3048
        %v3050 = vsub.f32 %v2969, %v3033
        %v3051 = vsub.f32 %v2972, %v3036
        %v3052 = vsub.f32 %v2977, %v3040
        %v3053 = vsub.f32 %v3017, %v3043
        %v3054 = vsub.f32 %v3020, %v3046
        %v3055 = vsub.f32 %v3025, %v3049
        %v3056 = vmul.f32 %v3050, 1.442695
        %v3057 = vpow.pop %v3056
        %v3058 = vmul.f32 %v3051, 1.442695
        %v3059 = vpow.pop %v3058
        %v3060 = vmul.f32 %v3052, 1.442695
        %v3061 = vpow.pop %v3060
        %v3062 = vmul.f32 %v3053, 1.442695
        %v3063 = vpow.pop %v3062
        %v3064 = vmul.f32 %v3054, 1.442695
        %v3065 = vpow.pop %v3064
        %v3066 = vmul.f32 %v3055, 1.442695
        %v3067 = vpow.pop %v3066
        %v3068 = vsel %vm3030, %v3057, 0.0
        %3069 = vadd.xlane.f32.xlu0 %v3068
        %v3070 = vpop.xlane.xlu0 %3069
        %v3071 = vsel %vm3030, %v3059, 0.0
        %3072 = vadd.xlane.f32.xlu0 %v3071
        %v3073 = vpop.xlane.xlu0 %3072
        %v3074 = vsel %vm3037, %v3061, 0.0
        %3075 = vadd.xlane.f32.xlu0 %v3074
        %v3076 = vpop.xlane.xlu0 %3075
        %v3077 = vsel %vm3030, %v3063, 0.0
        %3078 = vadd.xlane.f32.xlu0 %v3077
        %v3079 = vpop.xlane.xlu0 %3078
        %v3080 = vsel %vm3030, %v3065, 0.0
        %3081 = vadd.xlane.f32.xlu0 %v3080
        %v3082 = vpop.xlane.xlu0 %3081
        %v3083 = vsel %vm3037, %v3067, 0.0
        %3084 = vadd.xlane.f32.xlu0 %v3083
        %v3085 = vpop.xlane.xlu0 %3084
        %v3086 = vrcp.pop %v3070
        %v3087 = vrcp.pop %v3073
        %v3088 = vrcp.pop %v3076
        %v3089 = vrcp.pop %v3079
        %v3090 = vrcp.pop %v3082
        %v3091 = vrcp.pop %v3085
        %v3092 = vmul.f32 %v3057, %v3086
        %v3093 = vmul.f32 %v3059, %v3087
        %v3094 = vmul.f32 %v3061, %v3088
        %v3095 = vmul.f32 %v3063, %v3089
        %v3096 = vmul.f32 %v3065, %v3090
        %v3097 = vmul.f32 %v3067, %v3091
        %v3098 = vpack.c.bf16 %v3093, %v3092
        %v3099 = vpack.c.bf16 %v3094, %v3094
        %v3100 = vpack.c.bf16 %v3096, %v3095
        %v3101 = vpack.c.bf16 %v3097, %v3097
        %v3103 = vsel %vm3030, %v3098, 0
        %v3106 = vsel %vm3030, %v3099, 0
        %v3108 = vsel 0, 4294967295, 65535
        %v3109 = vsel %vm1274, %v3108, 0
        %v3111 = vand.u32 %v2931, %v3109
        %3113 = vmatprep.subr.bf16.mxu0 0
        %3114 = vmatpush1.bf16.msra.mxu0 %v2924
        %3115 = vmatprep.subr.bf16.mxu0 0
        %3116 = vmatpush1.bf16.msra.mxu0 %v3111
        %3117 = vmatprep.subr.bf16.mxu0 0
        %3118 = vmatpush1.bf16.msra.mxu0 0
        %3119 = vmatprep.subr.bf16.mxu0 0
        %3120 = vmatpush1.bf16.msra.mxu0 0
        %3121 = vmatprep.subr.bf16.mxu0 0
        %3122 = vmatpush1.bf16.msra.mxu0 0
        %3123 = vmatprep.subr.bf16.mxu0 0
        %3124 = vmatpush1.bf16.msra.mxu0 0
        %3125 = vmatprep.subr.bf16.mxu0 0
        %3126 = vmatpush1.bf16.msra.mxu0 0
        %3127 = vmatprep.subr.bf16.mxu0 0
        %3128 = vmatpush1.bf16.msra.mxu0 0
        %3129 = vmatprep.subr.bf16.mxu0 0
        %3130 = vmatpush1.bf16.msra.mxu0 0
        %3131 = vmatprep.subr.bf16.mxu0 0
        %3132 = vmatpush1.bf16.msra.mxu0 0
        %3133 = vmatprep.subr.bf16.mxu0 0
        %3134 = vmatpush1.bf16.msra.mxu0 0
        %3135 = vmatprep.subr.bf16.mxu0 0
        %3136 = vmatpush1.bf16.msra.mxu0 0
        %3137 = vmatprep.subr.bf16.mxu0 0
        %3138 = vmatpush1.bf16.msra.mxu0 0
        %3139 = vmatprep.subr.bf16.mxu0 0
        %3140 = vmatpush1.bf16.msra.mxu0 0
        %3141 = vmatprep.subr.bf16.mxu0 0
        %3142 = vmatpush1.bf16.msra.mxu0 0
        %3143 = vmatprep.subr.bf16.mxu0 0
        %3144 = vmatpush1.bf16.msra.mxu0 0
        %3145 = vmatprep.mubr.bf16.mxu0 0
        %3146 = vmatmul.mubr.bf16.gmra.mrb[0].mxu0 %v3103
        %v3147 = vpop.f32.mrb[0].mxu0
        %v3148 = vadd.f32 0.0, %v3147
        %v3149 = vpop.f32.mrb[0].mxu0
        %v3150 = vpop.f32.mrb[0].mxu0
        %v3151 = vadd.f32 0.0, %v3150
        %v3152 = vpop.f32.mrb[0].mxu0
        %3153 = vmatprep.mubr.bf16.mxu0 0
        %3154 = vmatmul.mubr.bf16.gmra.mrb[0].mxu0 %v3106
        %v3155 = vpop.f32.mrb[0].mxu0
        %v3156 = vadd.f32 0.0, %v3155
        %v3157 = vpop.f32.mrb[0].mxu0
        %v3158 = vpop.f32.mrb[0].mxu0
        %v3159 = vpop.f32.mrb[0].mxu0
        %3160 = vdwg.mxu0
        %v3162 = vsel %vm3030, %v3100, 0
        %v3165 = vsel %vm3030, %v3101, 0
        %v3168 = vand.u32 %v2933, %v3109
        %3170 = vmatprep.subr.bf16.mxu0 0
        %3171 = vmatpush1.bf16.msra.mxu0 %v2928
        %3172 = vmatprep.subr.bf16.mxu0 0
        %3173 = vmatpush1.bf16.msra.mxu0 %v3168
        %3174 = vmatprep.subr.bf16.mxu0 0
        %3175 = vmatpush1.bf16.msra.mxu0 0
        %3176 = vmatprep.subr.bf16.mxu0 0
        %3177 = vmatpush1.bf16.msra.mxu0 0
        %3178 = vmatprep.subr.bf16.mxu0 0
        %3179 = vmatpush1.bf16.msra.mxu0 0
        %3180 = vmatprep.subr.bf16.mxu0 0
        %3181 = vmatpush1.bf16.msra.mxu0 0
        %3182 = vmatprep.subr.bf16.mxu0 0
        %3183 = vmatpush1.bf16.msra.mxu0 0
        %3184 = vmatprep.subr.bf16.mxu0 0
        %3185 = vmatpush1.bf16.msra.mxu0 0
        %3186 = vmatprep.subr.bf16.mxu0 0
        %3187 = vmatpush1.bf16.msra.mxu0 0
        %3188 = vmatprep.subr.bf16.mxu0 0
        %3189 = vmatpush1.bf16.msra.mxu0 0
        %3190 = vmatprep.subr.bf16.mxu0 0
        %3191 = vmatpush1.bf16.msra.mxu0 0
        %3192 = vmatprep.subr.bf16.mxu0 0
        %3193 = vmatpush1.bf16.msra.mxu0 0
        %3194 = vmatprep.subr.bf16.mxu0 0
        %3195 = vmatpush1.bf16.msra.mxu0 0
        %3196 = vmatprep.subr.bf16.mxu0 0
        %3197 = vmatpush1.bf16.msra.mxu0 0
        %3198 = vmatprep.subr.bf16.mxu0 0
        %3199 = vmatpush1.bf16.msra.mxu0 0
        %3200 = vmatprep.subr.bf16.mxu0 0
        %3201 = vmatpush1.bf16.msra.mxu0 0
        %3202 = vmatprep.mubr.bf16.mxu0 0
        %3203 = vmatmul.mubr.bf16.gmra.mrb[0].mxu0 %v3162
        %v3204 = vpop.f32.mrb[0].mxu0
        %v3205 = vadd.f32 0.0, %v3204
        %v3206 = vpop.f32.mrb[0].mxu0
        %v3207 = vpop.f32.mrb[0].mxu0
        %v3208 = vadd.f32 0.0, %v3207
        %v3209 = vpop.f32.mrb[0].mxu0
        %3210 = vmatprep.mubr.bf16.mxu0 0
        %3211 = vmatmul.mubr.bf16.gmra.mrb[0].mxu0 %v3165
        %v3212 = vpop.f32.mrb[0].mxu0
        %v3213 = vadd.f32 0.0, %v3212
        %v3214 = vpop.f32.mrb[0].mxu0
        %v3215 = vpop.f32.mrb[0].mxu0
        %v3216 = vpop.f32.mrb[0].mxu0
        %3217 = vdwg.mxu0
        %v3218 = vcombine.high %v3148, 0.0
        %v3220 = vunpack.c.l.s4 1983009808
        %v3221 = vunpack.c.0.s8 %v3220
        %v3222 = vlaneseq
        %v3223 = vshrl.u32 %v3222, 7
        %v3224 = vsub.s32 %v3221, %v3223
        %v3225 = vrot.slane %v3148, %v3224
        %v3227 = vunpack.c.l.s4 1983009808
        %v3228 = vunpack.c.0.s8 %v3227
        %v3229 = vlaneseq
        %v3230 = vshrl.u32 %v3229, 7
        %v3231 = vsub.s32 %v3228, %v3230
        %v3232 = vrot.slane %v3218, %v3231
        %v3233 = vcombine.high %v3205, 0.0
        %v3235 = vunpack.c.l.s4 1983009808
        %v3236 = vunpack.c.0.s8 %v3235
        %v3237 = vlaneseq
        %v3238 = vshrl.u32 %v3237, 7
        %v3239 = vsub.s32 %v3236, %v3238
        %v3240 = vrot.slane %v3205, %v3239
        %v3242 = vunpack.c.l.s4 1983009808
        %v3243 = vunpack.c.0.s8 %v3242
        %v3244 = vlaneseq
        %v3245 = vshrl.u32 %v3244, 7
        %v3246 = vsub.s32 %v3243, %v3245
        %v3247 = vrot.slane %v3233, %v3246
        %v3248 = vcombine.low %v3225, %v3240
        %v3249 = vcombine.high %v3225, %v3240
        %v3251 = vunpack.c.l.s4 1934713408
        %v3252 = vunpack.c.0.s8 %v3251
        %v3253 = vlaneseq
        %v3254 = vshrl.u32 %v3253, 7
        %v3255 = vsub.s32 %v3252, %v3254
        %v3256 = vrot.slane %v3248, %v3255
        %v3258 = vunpack.c.l.s4 1934713408
        %v3259 = vunpack.c.0.s8 %v3258
        %v3260 = vlaneseq
        %v3261 = vshrl.u32 %v3260, 7
        %v3262 = vsub.s32 %v3259, %v3261
        %v3263 = vrot.slane %v3249, %v3262
        %v3264 = vcombine.low %v3232, %v3247
        %v3265 = vcombine.high %v3232, %v3247
        %v3267 = vunpack.c.l.s4 1934713408
        %v3268 = vunpack.c.0.s8 %v3267
        %v3269 = vlaneseq
        %v3270 = vshrl.u32 %v3269, 7
        %v3271 = vsub.s32 %v3268, %v3270
        %v3272 = vrot.slane %v3264, %v3271
        %v3274 = vunpack.c.l.s4 1934713408
        %v3275 = vunpack.c.0.s8 %v3274
        %v3276 = vlaneseq
        %v3277 = vshrl.u32 %v3276, 7
        %v3278 = vsub.s32 %v3275, %v3277
        %v3279 = vrot.slane %v3265, %v3278
        %v3280 = vcombine.high %v3256, 0.0
        %v3281 = vcombine.high %v3263, 0.0
        %v3282 = vcombine.high %v3272, 0.0
        %v3283 = vcombine.high %v3279, 0.0
        %v3284 = vcombine.high %v3151, 0.0
        %v3286 = vunpack.c.l.s4 1983009808
        %v3287 = vunpack.c.0.s8 %v3286
        %v3288 = vlaneseq
        %v3289 = vshrl.u32 %v3288, 7
        %v3290 = vsub.s32 %v3287, %v3289
        %v3291 = vrot.slane %v3151, %v3290
        %v3293 = vunpack.c.l.s4 1983009808
        %v3294 = vunpack.c.0.s8 %v3293
        %v3295 = vlaneseq
        %v3296 = vshrl.u32 %v3295, 7
        %v3297 = vsub.s32 %v3294, %v3296
        %v3298 = vrot.slane %v3284, %v3297
        %v3299 = vcombine.high %v3208, 0.0
        %v3301 = vunpack.c.l.s4 1983009808
        %v3302 = vunpack.c.0.s8 %v3301
        %v3303 = vlaneseq
        %v3304 = vshrl.u32 %v3303, 7
        %v3305 = vsub.s32 %v3302, %v3304
        %v3306 = vrot.slane %v3208, %v3305
        %v3308 = vunpack.c.l.s4 1983009808
        %v3309 = vunpack.c.0.s8 %v3308
        %v3310 = vlaneseq
        %v3311 = vshrl.u32 %v3310, 7
        %v3312 = vsub.s32 %v3309, %v3311
        %v3313 = vrot.slane %v3299, %v3312
        %v3314 = vcombine.low %v3291, %v3306
        %v3315 = vcombine.high %v3291, %v3306
        %v3317 = vunpack.c.l.s4 1934713408
        %v3318 = vunpack.c.0.s8 %v3317
        %v3319 = vlaneseq
        %v3320 = vshrl.u32 %v3319, 7
        %v3321 = vsub.s32 %v3318, %v3320
        %v3322 = vrot.slane %v3314, %v3321
        %v3324 = vunpack.c.l.s4 1934713408
        %v3325 = vunpack.c.0.s8 %v3324
        %v3326 = vlaneseq
        %v3327 = vshrl.u32 %v3326, 7
        %v3328 = vsub.s32 %v3325, %v3327
        %v3329 = vrot.slane %v3315, %v3328
        %v3330 = vcombine.low %v3298, %v3313
        %v3331 = vcombine.high %v3298, %v3313
        %v3333 = vunpack.c.l.s4 1934713408
        %v3334 = vunpack.c.0.s8 %v3333
        %v3335 = vlaneseq
        %v3336 = vshrl.u32 %v3335, 7
        %v3337 = vsub.s32 %v3334, %v3336
        %v3338 = vrot.slane %v3330, %v3337
        %v3340 = vunpack.c.l.s4 1934713408
        %v3341 = vunpack.c.0.s8 %v3340
        %v3342 = vlaneseq
        %v3343 = vshrl.u32 %v3342, 7
        %v3344 = vsub.s32 %v3341, %v3343
        %v3345 = vrot.slane %v3331, %v3344
        %v3346 = vcombine.high %v3322, 0.0
        %v3347 = vcombine.high %v3329, 0.0
        %v3348 = vcombine.high %v3338, 0.0
        %v3349 = vcombine.high %v3345, 0.0
        %v3350 = vcombine.low %v3156, %v3213
        %v3351 = vcombine.low %v3256, %v3263
        %v3353 = vunpack.c.l.s4 1983009808
        %v3354 = vunpack.c.0.s8 %v3353
        %v3355 = vlaneseq
        %v3356 = vshrl.u32 %v3355, 7
        %v3357 = vsub.s32 %v3354, %v3356
        %v3358 = vrot.slane %v3351, %v3357
        %v3359 = vcombine.low %v3280, %v3281
        %v3361 = vunpack.c.l.s4 1983009808
        %v3362 = vunpack.c.0.s8 %v3361
        %v3363 = vlaneseq
        %v3364 = vshrl.u32 %v3363, 7
        %v3365 = vsub.s32 %v3362, %v3364
        %v3366 = vrot.slane %v3359, %v3365
        %v3367 = vcombine.low %v3272, %v3279
        %v3369 = vunpack.c.l.s4 1983009808
        %v3370 = vunpack.c.0.s8 %v3369
        %v3371 = vlaneseq
        %v3372 = vshrl.u32 %v3371, 7
        %v3373 = vsub.s32 %v3370, %v3372
        %v3374 = vrot.slane %v3367, %v3373
        %v3375 = vcombine.low %v3282, %v3283
        %v3377 = vunpack.c.l.s4 1983009808
        %v3378 = vunpack.c.0.s8 %v3377
        %v3379 = vlaneseq
        %v3380 = vshrl.u32 %v3379, 7
        %v3381 = vsub.s32 %v3378, %v3380
        %v3382 = vrot.slane %v3375, %v3381
        %v3383 = vcombine.low %v3358, %v3366
        %v3385 = vunpack.c.l.s4 1934713408
        %v3386 = vunpack.c.0.s8 %v3385
        %v3387 = vlaneseq
        %v3388 = vshrl.u32 %v3387, 7
        %v3389 = vsub.s32 %v3386, %v3388
        %v3390 = vrot.slane %v3383, %v3389
        %v3391 = vcombine.low %v3374, %v3382
        %v3393 = vunpack.c.l.s4 1934713408
        %v3394 = vunpack.c.0.s8 %v3393
        %v3395 = vlaneseq
        %v3396 = vshrl.u32 %v3395, 7
        %v3397 = vsub.s32 %v3394, %v3396
        %v3398 = vrot.slane %v3391, %v3397
        %v3399 = vcombine.low %v3390, %v3398
        %v3400 = vcombine.high %v3390, %v3398
        %v3401 = vcombine.low %v3322, %v3329
        %v3403 = vunpack.c.l.s4 1983009808
        %v3404 = vunpack.c.0.s8 %v3403
        %v3405 = vlaneseq
        %v3406 = vshrl.u32 %v3405, 7
        %v3407 = vsub.s32 %v3404, %v3406
        %v3408 = vrot.slane %v3401, %v3407
        %v3409 = vcombine.low %v3346, %v3347
        %v3411 = vunpack.c.l.s4 1983009808
        %v3412 = vunpack.c.0.s8 %v3411
        %v3413 = vlaneseq
        %v3414 = vshrl.u32 %v3413, 7
        %v3415 = vsub.s32 %v3412, %v3414
        %v3416 = vrot.slane %v3409, %v3415
        %v3417 = vcombine.low %v3338, %v3345
        %v3419 = vunpack.c.l.s4 1983009808
        %v3420 = vunpack.c.0.s8 %v3419
        %v3421 = vlaneseq
        %v3422 = vshrl.u32 %v3421, 7
        %v3423 = vsub.s32 %v3420, %v3422
        %v3424 = vrot.slane %v3417, %v3423
        %v3425 = vcombine.low %v3348, %v3349
        %v3427 = vunpack.c.l.s4 1983009808
        %v3428 = vunpack.c.0.s8 %v3427
        %v3429 = vlaneseq
        %v3430 = vshrl.u32 %v3429, 7
        %v3431 = vsub.s32 %v3428, %v3430
        %v3432 = vrot.slane %v3425, %v3431
        %v3433 = vcombine.low %v3408, %v3416
        %v3435 = vunpack.c.l.s4 1934713408
        %v3436 = vunpack.c.0.s8 %v3435
        %v3437 = vlaneseq
        %v3438 = vshrl.u32 %v3437, 7
        %v3439 = vsub.s32 %v3436, %v3438
        %v3440 = vrot.slane %v3433, %v3439
        %v3441 = vcombine.low %v3424, %v3432
        %v3443 = vunpack.c.l.s4 1934713408
        %v3444 = vunpack.c.0.s8 %v3443
        %v3445 = vlaneseq
        %v3446 = vshrl.u32 %v3445, 7
        %v3447 = vsub.s32 %v3444, %v3446
        %v3448 = vrot.slane %v3441, %v3447
        %v3449 = vcombine.low %v3440, %v3448
        %v3450 = vcombine.high %v3440, %v3448
        %v3452 = vunpack.c.l.s4 1934713408
        %v3453 = vunpack.c.0.s8 %v3452
        %v3454 = vlaneseq
        %v3455 = vshrl.u32 %v3454, 7
        %v3456 = vsub.s32 %v3453, %v3455
        %v3457 = vrot.slane %v3350, %v3456
        %v3459 = vunpack.c.l.s4 1934713408
        %v3460 = vunpack.c.0.s8 %v3459
        %v3461 = vlaneseq
        %v3462 = vshrl.u32 %v3461, 7
        %v3463 = vsub.s32 %v3460, %v3462
        %v3464 = vrot.slane %v3457, %v3463
        %v3465 = vcombine.high %v3464, 0.0
        %v3466 = vpack.c.bf16 %v3449, %v3399
        %v3467 = vpack.c.bf16 %v3450, %v3400
        %v3468 = vpack.c.bf16 %v3464, %v3464
        %v3469 = vpack.c.bf16 %v3465, %v3465
        %v3470 = vld [vmem:[%s890] sm:$0xff]
        %v3471 = vld [vmem:[%s890 + $0x8] sm:$0xff]
        %v3472 = vld [vmem:[%s890 + $0x10] sm:$0xff]
        %v3473 = vld [vmem:[%s890 + $0x18] sm:$0xff]
        %v3474 = vld [vmem:[%s890 + $0x20] sm:$0xff]
        %v3475 = vld [vmem:[%s890 + $0x28] sm:$0xff]
        %v3476 = vld [vmem:[%s890 + $0x30] sm:$0xff]
        %v3477 = vld [vmem:[%s890 + $0x38] sm:$0xff]
        %v3478 = vld [vmem:[%s890 + $0x40] sm:$0xff]
        %v3479 = vld [vmem:[%s890 + $0x48] sm:$0xff]
        %v3480 = vld [vmem:[%s890 + $0x50] sm:$0xff]
        %v3481 = vld [vmem:[%s890 + $0x58] sm:$0xff]
        %v3482 = vld [vmem:[%s890 + $0x60] sm:$0xff]
        %v3483 = vld [vmem:[%s890 + $0x68] sm:$0xff]
        %v3484 = vld [vmem:[%s890 + $0x70] sm:$0xff]
        %v3485 = vld [vmem:[%s890 + $0x78] sm:$0xff]
        %v3486 = vld [vmem:[%s890 + $0x80] sm:$0xff]
        %v3487 = vld [vmem:[%s890 + $0x88] sm:$0xff]
        %v3488 = vld [vmem:[%s890 + $0x90] sm:$0xff]
        %v3489 = vld [vmem:[%s890 + $0x98] sm:$0xff]
        %v3490 = vld [vmem:[%s890 + $0xa0] sm:$0xff]
        %v3491 = vld [vmem:[%s890 + $0xa8] sm:$0xff]
        %v3492 = vld [vmem:[%s890 + $0xb0] sm:$0xff]
        %v3493 = vld [vmem:[%s890 + $0xb8] sm:$0xff]
        %v3494 = vld [vmem:[%s890 + $0xc0] sm:$0xff]
        %v3495 = vld [vmem:[%s890 + $0xc8] sm:$0xff]
        %v3496 = vld [vmem:[%s890 + $0xd0] sm:$0xff]
        %v3497 = vld [vmem:[%s890 + $0xd8] sm:$0xff]
        %v3498 = vld [vmem:[%s890 + $0xe0] sm:$0xff]
        %v3499 = vld [vmem:[%s890 + $0xe8] sm:$0xff]
        %v3500 = vld [vmem:[%s890 + $0xf0] sm:$0xff]
        %v3501 = vld [vmem:[%s890 + $0xf8] sm:$0xff]
        %v3502 = vld [vmem:[%s899] sm:$0x3]
        %v3504 = vlaneseq
        %v3505 = vshrl.u32 %v3504, 7
        %v3506 = vsub.s32 0, %v3505
        %v3507 = vrot.slane %v3502, %v3506
        %v3508 = vlaneseq
        %v3509 = vshrl.u32 %v3508, 7
        %v3510 = vsub.s32 1, %v3509
        %v3511 = vrot.slane %v3502, %v3510
        %v3546 = vunpack.c.l.b16 %v3470
        %v3547 = vunpack.c.h.b16 %v3470
        %v3548 = vunpack.c.l.b16 %v3471
        %v3549 = vunpack.c.h.b16 %v3471
        %v3550 = vunpack.c.l.b16 %v3472
        %v3551 = vunpack.c.h.b16 %v3472
        %v3552 = vunpack.c.l.b16 %v3473
        %v3553 = vunpack.c.h.b16 %v3473
        %v3554 = vunpack.c.l.b16 %v3474
        %v3555 = vunpack.c.h.b16 %v3474
        %v3556 = vunpack.c.l.b16 %v3475
        %v3557 = vunpack.c.h.b16 %v3475
        %v3558 = vunpack.c.l.b16 %v3476
        %v3559 = vunpack.c.h.b16 %v3476
        %v3560 = vunpack.c.l.b16 %v3477
        %v3561 = vunpack.c.h.b16 %v3477
        %v3562 = vunpack.c.l.b16 %v3478
        %v3563 = vunpack.c.h.b16 %v3478
        %v3564 = vunpack.c.l.b16 %v3479
        %v3565 = vunpack.c.h.b16 %v3479
        %v3566 = vunpack.c.l.b16 %v3480
        %v3567 = vunpack.c.h.b16 %v3480
        %v3568 = vunpack.c.l.b16 %v3481
        %v3569 = vunpack.c.h.b16 %v3481
        %v3570 = vunpack.c.l.b16 %v3482
        %v3571 = vunpack.c.h.b16 %v3482
        %v3572 = vunpack.c.l.b16 %v3483
        %v3573 = vunpack.c.h.b16 %v3483
        %v3574 = vunpack.c.l.b16 %v3484
        %v3575 = vunpack.c.h.b16 %v3484
        %v3576 = vunpack.c.l.b16 %v3485
        %v3577 = vunpack.c.h.b16 %v3485
        %v3578 = vunpack.c.l.b16 %v3486
        %v3579 = vunpack.c.h.b16 %v3486
        %v3580 = vunpack.c.l.b16 %v3487
        %v3581 = vunpack.c.h.b16 %v3487
        %v3582 = vunpack.c.l.b16 %v3488
        %v3583 = vunpack.c.h.b16 %v3488
        %v3584 = vunpack.c.l.b16 %v3489
        %v3585 = vunpack.c.h.b16 %v3489
        %v3586 = vunpack.c.l.b16 %v3490
        %v3587 = vunpack.c.h.b16 %v3490
        %v3588 = vunpack.c.l.b16 %v3491
        %v3589 = vunpack.c.h.b16 %v3491
        %v3590 = vunpack.c.l.b16 %v3492
        %v3591 = vunpack.c.h.b16 %v3492
        %v3592 = vunpack.c.l.b16 %v3493
        %v3593 = vunpack.c.h.b16 %v3493
        %v3594 = vunpack.c.l.b16 %v3494
        %v3595 = vunpack.c.h.b16 %v3494
        %v3596 = vunpack.c.l.b16 %v3495
        %v3597 = vunpack.c.h.b16 %v3495
        %v3598 = vunpack.c.l.b16 %v3496
        %v3599 = vunpack.c.h.b16 %v3496
        %v3600 = vunpack.c.l.b16 %v3497
        %v3601 = vunpack.c.h.b16 %v3497
        %v3602 = vunpack.c.l.b16 %v3498
        %v3603 = vunpack.c.h.b16 %v3498
        %v3604 = vunpack.c.l.b16 %v3499
        %v3605 = vunpack.c.h.b16 %v3499
        %v3606 = vunpack.c.l.b16 %v3500
        %v3607 = vunpack.c.h.b16 %v3500
        %v3608 = vunpack.c.l.b16 %v3501
        %v3609 = vunpack.c.h.b16 %v3501
        %v3610 = vpack.c.b16 %v3548, %v3546
        %v3611 = vpack.c.b16 %v3549, %v3547
        %v3612 = vpack.c.b16 %v3552, %v3550
        %v3613 = vpack.c.b16 %v3553, %v3551
        %v3614 = vpack.c.b16 %v3556, %v3554
        %v3615 = vpack.c.b16 %v3557, %v3555
        %v3616 = vpack.c.b16 %v3560, %v3558
        %v3617 = vpack.c.b16 %v3561, %v3559
        %v3618 = vpack.c.b16 %v3564, %v3562
        %v3619 = vpack.c.b16 %v3565, %v3563
        %v3620 = vpack.c.b16 %v3568, %v3566
        %v3621 = vpack.c.b16 %v3569, %v3567
        %v3622 = vpack.c.b16 %v3572, %v3570
        %v3623 = vpack.c.b16 %v3573, %v3571
        %v3624 = vpack.c.b16 %v3576, %v3574
        %v3625 = vpack.c.b16 %v3577, %v3575
        %v3626 = vpack.c.b16 %v3580, %v3578
        %v3627 = vpack.c.b16 %v3581, %v3579
        %v3628 = vpack.c.b16 %v3584, %v3582
        %v3629 = vpack.c.b16 %v3585, %v3583
        %v3630 = vpack.c.b16 %v3588, %v3586
        %v3631 = vpack.c.b16 %v3589, %v3587
        %v3632 = vpack.c.b16 %v3592, %v3590
        %v3633 = vpack.c.b16 %v3593, %v3591
        %v3634 = vpack.c.b16 %v3596, %v3594
        %v3635 = vpack.c.b16 %v3597, %v3595
        %v3636 = vpack.c.b16 %v3600, %v3598
        %v3637 = vpack.c.b16 %v3601, %v3599
        %v3638 = vpack.c.b16 %v3604, %v3602
        %v3639 = vpack.c.b16 %v3605, %v3603
        %v3640 = vpack.c.b16 %v3608, %v3606
        %v3641 = vpack.c.b16 %v3609, %v3607
        %3674 = vmatprep.subr.bf16.mxu0 %v3611
        %3675 = vmatpush1.bf16.msra.mxu0 %v3610
        %3676 = vmatprep.subr.bf16.mxu0 %v3613
        %3677 = vmatpush1.bf16.msra.mxu0 %v3612
        %3678 = vmatprep.subr.bf16.mxu0 %v3615
        %3679 = vmatpush1.bf16.msra.mxu0 %v3614
        %3680 = vmatprep.subr.bf16.mxu0 %v3617
        %3681 = vmatpush1.bf16.msra.mxu0 %v3616
        %3682 = vmatprep.subr.bf16.mxu0 %v3619
        %3683 = vmatpush1.bf16.msra.mxu0 %v3618
        %3684 = vmatprep.subr.bf16.mxu0 %v3621
        %3685 = vmatpush1.bf16.msra.mxu0 %v3620
        %3686 = vmatprep.subr.bf16.mxu0 %v3623
        %3687 = vmatpush1.bf16.msra.mxu0 %v3622
        %3688 = vmatprep.subr.bf16.mxu0 %v3625
        %3689 = vmatpush1.bf16.msra.mxu0 %v3624
        %3690 = vmatprep.subr.bf16.mxu0 %v3627
        %3691 = vmatpush1.bf16.msra.mxu0 %v3626
        %3692 = vmatprep.subr.bf16.mxu0 %v3629
        %3693 = vmatpush1.bf16.msra.mxu0 %v3628
        %3694 = vmatprep.subr.bf16.mxu0 %v3631
        %3695 = vmatpush1.bf16.msra.mxu0 %v3630
        %3696 = vmatprep.subr.bf16.mxu0 %v3633
        %3697 = vmatpush1.bf16.msra.mxu0 %v3632
        %3698 = vmatprep.subr.bf16.mxu0 %v3635
        %3699 = vmatpush1.bf16.msra.mxu0 %v3634
        %3700 = vmatprep.subr.bf16.mxu0 %v3637
        %3701 = vmatpush1.bf16.msra.mxu0 %v3636
        %3702 = vmatprep.subr.bf16.mxu0 %v3639
        %3703 = vmatpush1.bf16.msra.mxu0 %v3638
        %3704 = vmatprep.subr.bf16.mxu0 %v3641
        %3705 = vmatpush1.bf16.msra.mxu0 %v3640
        %3706 = vmatprep.mubr.bf16.mxu0 %v3467
        %3707 = vmatmul.mubr.bf16.gmra.mrb[0].mxu0 %v3466
        %v3708 = vpop.f32.mrb[0].mxu0
        %v3709 = vadd.f32 %v3507, %v3708
        %v3710 = vpop.f32.mrb[0].mxu0
        %v3711 = vadd.f32 %v3511, %v3710
        %v3712 = vpop.f32.mrb[0].mxu0
        %v3713 = vadd.f32 %v3507, %v3712
        %v3714 = vpop.f32.mrb[0].mxu0
        %v3715 = vadd.f32 %v3511, %v3714
        %3716 = vmatprep.mubr.bf16.mxu0 %v3469
        %3717 = vmatmul.mubr.bf16.gmra.mrb[0].mxu0 %v3468
        %v3718 = vpop.f32.mrb[0].mxu0
        %v3719 = vadd.f32 %v3507, %v3718
        %v3720 = vpop.f32.mrb[0].mxu0
        %v3721 = vadd.f32 %v3511, %v3720
        %v3722 = vpop.f32.mrb[0].mxu0
        %v3723 = vpop.f32.mrb[0].mxu0
        %3724 = vdwg.mxu0
        %v3725 = vadd.f32 %v1260, %v3709
        %v3726 = vadd.f32 %v1261, %v3711
        %v3727 = vadd.f32 %v1262, %v3713
        %v3728 = vadd.f32 %v1263, %v3715
        %v3729 = vadd.f32 %v1264, %v3719
        %v3730 = vadd.f32 %v1265, %v3721
        %v3731 = vld [vmem:[%s908] sm:$0x3]
        %v3732 = vld [vmem:[%s917] sm:$0x3]
        %v3733 = vadd.f32 %v3725, %v3726
        %3734 = vadd.xlane.f32.xlu0 %v3733
        %v3735 = vpop.xlane.xlu0 %3734
        %v3736 = vadd.f32 %v3727, %v3728
        %3737 = vadd.xlane.f32.xlu0 %v3736
        %v3738 = vpop.xlane.xlu0 %3737
        %v3739 = vsel %vm1274, %v3729, 0.0
        %v3740 = vsel %vm1274, %v3730, 0.0
        %v3741 = vadd.f32 %v3739, %v3740
        %3742 = vadd.xlane.f32.xlu0 %v3741
        %v3743 = vpop.xlane.xlu0 %3742
        %v3744 = vmul.f32 %v3735, %v1280
        %v3745 = vmul.f32 %v3738, %v1280
        %v3746 = vmul.f32 %v3743, %v1280
        %v3747 = vsub.f32 %v3725, %v3744
        %v3748 = vsub.f32 %v3726, %v3744
        %v3749 = vsub.f32 %v3727, %v3745
        %v3750 = vsub.f32 %v3728, %v3745
        %v3751 = vsub.f32 %v3729, %v3746
        %v3752 = vsub.f32 %v3730, %v3746
        %v3753 = vmul.f32 %v3747, %v3747
        %v3754 = vmul.f32 %v3748, %v3748
        %v3755 = vmul.f32 %v3749, %v3749
        %v3756 = vmul.f32 %v3750, %v3750
        %v3757 = vmul.f32 %v3751, %v3751
        %v3758 = vmul.f32 %v3752, %v3752
        %v3759 = vadd.f32 %v3753, %v3754
        %3760 = vadd.xlane.f32.xlu0 %v3759
        %v3761 = vpop.xlane.xlu0 %3760
        %v3762 = vadd.f32 %v3755, %v3756
        %3763 = vadd.xlane.f32.xlu0 %v3762
        %v3764 = vpop.xlane.xlu0 %3763
        %v3765 = vsel %vm1274, %v3757, 0.0
        %v3766 = vsel %vm1274, %v3758, 0.0
        %v3767 = vadd.f32 %v3765, %v3766
        %3768 = vadd.xlane.f32.xlu0 %v3767
        %v3769 = vpop.xlane.xlu0 %3768
        %v3770 = vmul.f32 %v3761, %v1280
        %v3771 = vmul.f32 %v3764, %v1280
        %v3772 = vmul.f32 %v3769, %v1280
        %v3773 = vadd.f32 %v3770, 1e-05
        %v3774 = vadd.f32 %v3771, 1e-05
        %v3775 = vadd.f32 %v3772, 1e-05
        %v3776 = vrsqrt.pop %v3773
        %v3777 = vrsqrt.pop %v3774
        %v3778 = vrsqrt.pop %v3775
        %v3779 = vmul.f32 %v3747, %v3776
        %v3780 = vmul.f32 %v3748, %v3776
        %v3781 = vmul.f32 %v3749, %v3777
        %v3782 = vmul.f32 %v3750, %v3777
        %v3783 = vmul.f32 %v3751, %v3778
        %v3784 = vmul.f32 %v3752, %v3778
        %v3786 = vlaneseq
        %v3787 = vshrl.u32 %v3786, 7
        %v3788 = vsub.s32 0, %v3787
        %v3789 = vrot.slane %v3731, %v3788
        %v3790 = vlaneseq
        %v3791 = vshrl.u32 %v3790, 7
        %v3792 = vsub.s32 1, %v3791
        %v3793 = vrot.slane %v3731, %v3792
        %v3796 = vmul.f32 %v3779, %v3789
        %v3797 = vmul.f32 %v3780, %v3793
        %v3798 = vmul.f32 %v3781, %v3789
        %v3799 = vmul.f32 %v3782, %v3793
        %v3800 = vmul.f32 %v3783, %v3789
        %v3801 = vmul.f32 %v3784, %v3793
        %v3803 = vlaneseq
        %v3804 = vshrl.u32 %v3803, 7
        %v3805 = vsub.s32 0, %v3804
        %v3806 = vrot.slane %v3732, %v3805
        %v3807 = vlaneseq
        %v3808 = vshrl.u32 %v3807, 7
        %v3809 = vsub.s32 1, %v3808
        %v3810 = vrot.slane %v3732, %v3809
        %v3813 = vadd.f32 %v3796, %v3806
        %v3814 = vadd.f32 %v3797, %v3810
        %v3815 = vadd.f32 %v3798, %v3806
        %v3816 = vadd.f32 %v3799, %v3810
        %v3817 = vadd.f32 %v3800, %v3806
        %v3818 = vadd.f32 %v3801, %v3810
        %v3819 = vpack.c.bf16 %v3815, %v3813
        %v3820 = vpack.c.bf16 %v3816, %v3814
        %v3821 = vpack.c.bf16 %v3817, %v3817
        %v3822 = vpack.c.bf16 %v3818, %v3818
        %v3823 = vld [vmem:[%s926] sm:$0xff]
        %v3824 = vld [vmem:[%s926 + $0x8] sm:$0xff]
        %v3825 = vld [vmem:[%s926 + $0x10] sm:$0xff]
        %v3826 = vld [vmem:[%s926 + $0x18] sm:$0xff]
        %v3827 = vld [vmem:[%s926 + $0x20] sm:$0xff]
        %v3828 = vld [vmem:[%s926 + $0x28] sm:$0xff]
        %v3829 = vld [vmem:[%s926 + $0x30] sm:$0xff]
        %v3830 = vld [vmem:[%s926 + $0x38] sm:$0xff]
        %v3831 = vld [vmem:[%s926 + $0x40] sm:$0xff]
        %v3832 = vld [vmem:[%s926 + $0x48] sm:$0xff]
        %v3833 = vld [vmem:[%s926 + $0x50] sm:$0xff]
        %v3834 = vld [vmem:[%s926 + $0x58] sm:$0xff]
        %v3835 = vld [vmem:[%s926 + $0x60] sm:$0xff]
        %v3836 = vld [vmem:[%s926 + $0x68] sm:$0xff]
        %v3837 = vld [vmem:[%s926 + $0x70] sm:$0xff]
        %v3838 = vld [vmem:[%s926 + $0x78] sm:$0xff]
        %v3839 = vld [vmem:[%s926 + $0x80] sm:$0xff]
        %v3840 = vld [vmem:[%s926 + $0x88] sm:$0xff]
        %v3841 = vld [vmem:[%s926 + $0x90] sm:$0xff]
        %v3842 = vld [vmem:[%s926 + $0x98] sm:$0xff]
        %v3843 = vld [vmem:[%s926 + $0xa0] sm:$0xff]
        %v3844 = vld [vmem:[%s926 + $0xa8] sm:$0xff]
        %v3845 = vld [vmem:[%s926 + $0xb0] sm:$0xff]
        %v3846 = vld [vmem:[%s926 + $0xb8] sm:$0xff]
        %v3847 = vld [vmem:[%s926 + $0xc0] sm:$0xff]
        %v3848 = vld [vmem:[%s926 + $0xc8] sm:$0xff]
        %v3849 = vld [vmem:[%s926 + $0xd0] sm:$0xff]
        %v3850 = vld [vmem:[%s926 + $0xd8] sm:$0xff]
        %v3851 = vld [vmem:[%s926 + $0xe0] sm:$0xff]
        %v3852 = vld [vmem:[%s926 + $0xe8] sm:$0xff]
        %v3853 = vld [vmem:[%s926 + $0xf0] sm:$0xff]
        %v3854 = vld [vmem:[%s926 + $0xf8] sm:$0xff]
        %v3855 = vld [vmem:[%s926 + $0x100] sm:$0xff]
        %v3856 = vld [vmem:[%s926 + $0x108] sm:$0xff]
        %v3857 = vld [vmem:[%s926 + $0x110] sm:$0xff]
        %v3858 = vld [vmem:[%s926 + $0x118] sm:$0xff]
        %v3859 = vld [vmem:[%s926 + $0x120] sm:$0xff]
        %v3860 = vld [vmem:[%s926 + $0x128] sm:$0xff]
        %v3861 = vld [vmem:[%s926 + $0x130] sm:$0xff]
        %v3862 = vld [vmem:[%s926 + $0x138] sm:$0xff]
        %v3863 = vld [vmem:[%s926 + $0x140] sm:$0xff]
        %v3864 = vld [vmem:[%s926 + $0x148] sm:$0xff]
        %v3865 = vld [vmem:[%s926 + $0x150] sm:$0xff]
        %v3866 = vld [vmem:[%s926 + $0x158] sm:$0xff]
        %v3867 = vld [vmem:[%s926 + $0x160] sm:$0xff]
        %v3868 = vld [vmem:[%s926 + $0x168] sm:$0xff]
        %v3869 = vld [vmem:[%s926 + $0x170] sm:$0xff]
        %v3870 = vld [vmem:[%s926 + $0x178] sm:$0xff]
        %v3871 = vld [vmem:[%s926 + $0x180] sm:$0xff]
        %v3872 = vld [vmem:[%s926 + $0x188] sm:$0xff]
        %v3873 = vld [vmem:[%s926 + $0x190] sm:$0xff]
        %v3874 = vld [vmem:[%s926 + $0x198] sm:$0xff]
        %v3875 = vld [vmem:[%s926 + $0x1a0] sm:$0xff]
        %v3876 = vld [vmem:[%s926 + $0x1a8] sm:$0xff]
        %v3877 = vld [vmem:[%s926 + $0x1b0] sm:$0xff]
        %v3878 = vld [vmem:[%s926 + $0x1b8] sm:$0xff]
        %v3879 = vld [vmem:[%s926 + $0x1c0] sm:$0xff]
        %v3880 = vld [vmem:[%s926 + $0x1c8] sm:$0xff]
        %v3881 = vld [vmem:[%s926 + $0x1d0] sm:$0xff]
        %v3882 = vld [vmem:[%s926 + $0x1d8] sm:$0xff]
        %v3883 = vld [vmem:[%s926 + $0x1e0] sm:$0xff]
        %v3884 = vld [vmem:[%s926 + $0x1e8] sm:$0xff]
        %v3885 = vld [vmem:[%s926 + $0x1f0] sm:$0xff]
        %v3886 = vld [vmem:[%s926 + $0x1f8] sm:$0xff]
        %v3887 = vld [vmem:[%s926 + $0x200] sm:$0xff]
        %v3888 = vld [vmem:[%s926 + $0x208] sm:$0xff]
        %v3889 = vld [vmem:[%s926 + $0x210] sm:$0xff]
        %v3890 = vld [vmem:[%s926 + $0x218] sm:$0xff]
        %v3891 = vld [vmem:[%s926 + $0x220] sm:$0xff]
        %v3892 = vld [vmem:[%s926 + $0x228] sm:$0xff]
        %v3893 = vld [vmem:[%s926 + $0x230] sm:$0xff]
        %v3894 = vld [vmem:[%s926 + $0x238] sm:$0xff]
        %v3895 = vld [vmem:[%s926 + $0x240] sm:$0xff]
        %v3896 = vld [vmem:[%s926 + $0x248] sm:$0xff]
        %v3897 = vld [vmem:[%s926 + $0x250] sm:$0xff]
        %v3898 = vld [vmem:[%s926 + $0x258] sm:$0xff]
        %v3899 = vld [vmem:[%s926 + $0x260] sm:$0xff]
        %v3900 = vld [vmem:[%s926 + $0x268] sm:$0xff]
        %v3901 = vld [vmem:[%s926 + $0x270] sm:$0xff]
        %v3902 = vld [vmem:[%s926 + $0x278] sm:$0xff]
        %v3903 = vld [vmem:[%s926 + $0x280] sm:$0xff]
        %v3904 = vld [vmem:[%s926 + $0x288] sm:$0xff]
        %v3905 = vld [vmem:[%s926 + $0x290] sm:$0xff]
        %v3906 = vld [vmem:[%s926 + $0x298] sm:$0xff]
        %v3907 = vld [vmem:[%s926 + $0x2a0] sm:$0xff]
        %v3908 = vld [vmem:[%s926 + $0x2a8] sm:$0xff]
        %v3909 = vld [vmem:[%s926 + $0x2b0] sm:$0xff]
        %v3910 = vld [vmem:[%s926 + $0x2b8] sm:$0xff]
        %v3911 = vld [vmem:[%s926 + $0x2c0] sm:$0xff]
        %v3912 = vld [vmem:[%s926 + $0x2c8] sm:$0xff]
        %v3913 = vld [vmem:[%s926 + $0x2d0] sm:$0xff]
        %v3914 = vld [vmem:[%s926 + $0x2d8] sm:$0xff]
        %v3915 = vld [vmem:[%s926 + $0x2e0] sm:$0xff]
        %v3916 = vld [vmem:[%s926 + $0x2e8] sm:$0xff]
        %v3917 = vld [vmem:[%s926 + $0x2f0] sm:$0xff]
        %v3918 = vld [vmem:[%s926 + $0x2f8] sm:$0xff]
        %v3919 = vld [vmem:[%s926 + $0x300] sm:$0xff]
        %v3920 = vld [vmem:[%s926 + $0x308] sm:$0xff]
        %v3921 = vld [vmem:[%s926 + $0x310] sm:$0xff]
        %v3922 = vld [vmem:[%s926 + $0x318] sm:$0xff]
        %v3923 = vld [vmem:[%s926 + $0x320] sm:$0xff]
        %v3924 = vld [vmem:[%s926 + $0x328] sm:$0xff]
        %v3925 = vld [vmem:[%s926 + $0x330] sm:$0xff]
        %v3926 = vld [vmem:[%s926 + $0x338] sm:$0xff]
        %v3927 = vld [vmem:[%s926 + $0x340] sm:$0xff]
        %v3928 = vld [vmem:[%s926 + $0x348] sm:$0xff]
        %v3929 = vld [vmem:[%s926 + $0x350] sm:$0xff]
        %v3930 = vld [vmem:[%s926 + $0x358] sm:$0xff]
        %v3931 = vld [vmem:[%s926 + $0x360] sm:$0xff]
        %v3932 = vld [vmem:[%s926 + $0x368] sm:$0xff]
        %v3933 = vld [vmem:[%s926 + $0x370] sm:$0xff]
        %v3934 = vld [vmem:[%s926 + $0x378] sm:$0xff]
        %v3935 = vld [vmem:[%s926 + $0x380] sm:$0xff]
        %v3936 = vld [vmem:[%s926 + $0x388] sm:$0xff]
        %v3937 = vld [vmem:[%s926 + $0x390] sm:$0xff]
        %v3938 = vld [vmem:[%s926 + $0x398] sm:$0xff]
        %v3939 = vld [vmem:[%s926 + $0x3a0] sm:$0xff]
        %v3940 = vld [vmem:[%s926 + $0x3a8] sm:$0xff]
        %v3941 = vld [vmem:[%s926 + $0x3b0] sm:$0xff]
        %v3942 = vld [vmem:[%s926 + $0x3b8] sm:$0xff]
        %v3943 = vld [vmem:[%s926 + $0x3c0] sm:$0xff]
        %v3944 = vld [vmem:[%s926 + $0x3c8] sm:$0xff]
        %v3945 = vld [vmem:[%s926 + $0x3d0] sm:$0xff]
        %v3946 = vld [vmem:[%s926 + $0x3d8] sm:$0xff]
        %v3947 = vld [vmem:[%s926 + $0x3e0] sm:$0xff]
        %v3948 = vld [vmem:[%s926 + $0x3e8] sm:$0xff]
        %v3949 = vld [vmem:[%s926 + $0x3f0] sm:$0xff]
        %v3950 = vld [vmem:[%s926 + $0x3f8] sm:$0xff]
        %v3951 = vld [vmem:[%s935] sm:$0xff]
        %v3953 = vlaneseq
        %v3954 = vshrl.u32 %v3953, 7
        %v3955 = vsub.s32 0, %v3954
        %v3956 = vrot.slane %v3951, %v3955
        %v3957 = vlaneseq
        %v3958 = vshrl.u32 %v3957, 7
        %v3959 = vsub.s32 1, %v3958
        %v3960 = vrot.slane %v3951, %v3959
        %v3961 = vlaneseq
        %v3962 = vshrl.u32 %v3961, 7
        %v3963 = vsub.s32 2, %v3962
        %v3964 = vrot.slane %v3951, %v3963
        %v3965 = vlaneseq
        %v3966 = vshrl.u32 %v3965, 7
        %v3967 = vsub.s32 3, %v3966
        %v3968 = vrot.slane %v3951, %v3967
        %v3969 = vlaneseq
        %v3970 = vshrl.u32 %v3969, 7
        %v3971 = vsub.s32 4, %v3970
        %v3972 = vrot.slane %v3951, %v3971
        %v3973 = vlaneseq
        %v3974 = vshrl.u32 %v3973, 7
        %v3975 = vsub.s32 5, %v3974
        %v3976 = vrot.slane %v3951, %v3975
        %v3977 = vlaneseq
        %v3978 = vshrl.u32 %v3977, 7
        %v3979 = vsub.s32 6, %v3978
        %v3980 = vrot.slane %v3951, %v3979
        %v3981 = vlaneseq
        %v3982 = vshrl.u32 %v3981, 7
        %v3983 = vsub.s32 7, %v3982
        %v3984 = vrot.slane %v3951, %v3983
        %v4121 = vunpack.c.l.b16 %v3823
        %v4122 = vunpack.c.h.b16 %v3823
        %v4123 = vunpack.c.l.b16 %v3824
        %v4124 = vunpack.c.h.b16 %v3824
        %v4125 = vunpack.c.l.b16 %v3825
        %v4126 = vunpack.c.h.b16 %v3825
        %v4127 = vunpack.c.l.b16 %v3826
        %v4128 = vunpack.c.h.b16 %v3826
        %v4129 = vunpack.c.l.b16 %v3827
        %v4130 = vunpack.c.h.b16 %v3827
        %v4131 = vunpack.c.l.b16 %v3828
        %v4132 = vunpack.c.h.b16 %v3828
        %v4133 = vunpack.c.l.b16 %v3829
        %v4134 = vunpack.c.h.b16 %v3829
        %v4135 = vunpack.c.l.b16 %v3830
        %v4136 = vunpack.c.h.b16 %v3830
        %v4137 = vunpack.c.l.b16 %v3831
        %v4138 = vunpack.c.h.b16 %v3831
        %v4139 = vunpack.c.l.b16 %v3832
        %v4140 = vunpack.c.h.b16 %v3832
        %v4141 = vunpack.c.l.b16 %v3833
        %v4142 = vunpack.c.h.b16 %v3833
        %v4143 = vunpack.c.l.b16 %v3834
        %v4144 = vunpack.c.h.b16 %v3834
        %v4145 = vunpack.c.l.b16 %v3835
        %v4146 = vunpack.c.h.b16 %v3835
        %v4147 = vunpack.c.l.b16 %v3836
        %v4148 = vunpack.c.h.b16 %v3836
        %v4149 = vunpack.c.l.b16 %v3837
        %v4150 = vunpack.c.h.b16 %v3837
        %v4151 = vunpack.c.l.b16 %v3838
        %v4152 = vunpack.c.h.b16 %v3838
        %v4153 = vunpack.c.l.b16 %v3839
        %v4154 = vunpack.c.h.b16 %v3839
        %v4155 = vunpack.c.l.b16 %v3840
        %v4156 = vunpack.c.h.b16 %v3840
        %v4157 = vunpack.c.l.b16 %v3841
        %v4158 = vunpack.c.h.b16 %v3841
        %v4159 = vunpack.c.l.b16 %v3842
        %v4160 = vunpack.c.h.b16 %v3842
        %v4161 = vunpack.c.l.b16 %v3843
        %v4162 = vunpack.c.h.b16 %v3843
        %v4163 = vunpack.c.l.b16 %v3844
        %v4164 = vunpack.c.h.b16 %v3844
        %v4165 = vunpack.c.l.b16 %v3845
        %v4166 = vunpack.c.h.b16 %v3845
        %v4167 = vunpack.c.l.b16 %v3846
        %v4168 = vunpack.c.h.b16 %v3846
        %v4169 = vunpack.c.l.b16 %v3847
        %v4170 = vunpack.c.h.b16 %v3847
        %v4171 = vunpack.c.l.b16 %v3848
        %v4172 = vunpack.c.h.b16 %v3848
        %v4173 = vunpack.c.l.b16 %v3849
        %v4174 = vunpack.c.h.b16 %v3849
        %v4175 = vunpack.c.l.b16 %v3850
        %v4176 = vunpack.c.h.b16 %v3850
        %v4177 = vunpack.c.l.b16 %v3851
        %v4178 = vunpack.c.h.b16 %v3851
        %v4179 = vunpack.c.l.b16 %v3852
        %v4180 = vunpack.c.h.b16 %v3852
        %v4181 = vunpack.c.l.b16 %v3853
        %v4182 = vunpack.c.h.b16 %v3853
        %v4183 = vunpack.c.l.b16 %v3854
        %v4184 = vunpack.c.h.b16 %v3854
        %v4185 = vunpack.c.l.b16 %v3855
        %v4186 = vunpack.c.h.b16 %v3855
        %v4187 = vunpack.c.l.b16 %v3856
        %v4188 = vunpack.c.h.b16 %v3856
        %v4189 = vunpack.c.l.b16 %v3857
        %v4190 = vunpack.c.h.b16 %v3857
        %v4191 = vunpack.c.l.b16 %v3858
        %v4192 = vunpack.c.h.b16 %v3858
        %v4193 = vunpack.c.l.b16 %v3859
        %v4194 = vunpack.c.h.b16 %v3859
        %v4195 = vunpack.c.l.b16 %v3860
        %v4196 = vunpack.c.h.b16 %v3860
        %v4197 = vunpack.c.l.b16 %v3861
        %v4198 = vunpack.c.h.b16 %v3861
        %v4199 = vunpack.c.l.b16 %v3862
        %v4200 = vunpack.c.h.b16 %v3862
        %v4201 = vunpack.c.l.b16 %v3863
        %v4202 = vunpack.c.h.b16 %v3863
        %v4203 = vunpack.c.l.b16 %v3864
        %v4204 = vunpack.c.h.b16 %v3864
        %v4205 = vunpack.c.l.b16 %v3865
        %v4206 = vunpack.c.h.b16 %v3865
        %v4207 = vunpack.c.l.b16 %v3866
        %v4208 = vunpack.c.h.b16 %v3866
        %v4209 = vunpack.c.l.b16 %v3867
        %v4210 = vunpack.c.h.b16 %v3867
        %v4211 = vunpack.c.l.b16 %v3868
        %v4212 = vunpack.c.h.b16 %v3868
        %v4213 = vunpack.c.l.b16 %v3869
        %v4214 = vunpack.c.h.b16 %v3869
        %v4215 = vunpack.c.l.b16 %v3870
        %v4216 = vunpack.c.h.b16 %v3870
        %v4217 = vunpack.c.l.b16 %v3871
        %v4218 = vunpack.c.h.b16 %v3871
        %v4219 = vunpack.c.l.b16 %v3872
        %v4220 = vunpack.c.h.b16 %v3872
        %v4221 = vunpack.c.l.b16 %v3873
        %v4222 = vunpack.c.h.b16 %v3873
        %v4223 = vunpack.c.l.b16 %v3874
        %v4224 = vunpack.c.h.b16 %v3874
        %v4225 = vunpack.c.l.b16 %v3875
        %v4226 = vunpack.c.h.b16 %v3875
        %v4227 = vunpack.c.l.b16 %v3876
        %v4228 = vunpack.c.h.b16 %v3876
        %v4229 = vunpack.c.l.b16 %v3877
        %v4230 = vunpack.c.h.b16 %v3877
        %v4231 = vunpack.c.l.b16 %v3878
        %v4232 = vunpack.c.h.b16 %v3878
        %v4233 = vunpack.c.l.b16 %v3879
        %v4234 = vunpack.c.h.b16 %v3879
        %v4235 = vunpack.c.l.b16 %v3880
        %v4236 = vunpack.c.h.b16 %v3880
        %v4237 = vunpack.c.l.b16 %v3881
        %v4238 = vunpack.c.h.b16 %v3881
        %v4239 = vunpack.c.l.b16 %v3882
        %v4240 = vunpack.c.h.b16 %v3882
        %v4241 = vunpack.c.l.b16 %v3883
        %v4242 = vunpack.c.h.b16 %v3883
        %v4243 = vunpack.c.l.b16 %v3884
        %v4244 = vunpack.c.h.b16 %v3884
        %v4245 = vunpack.c.l.b16 %v3885
        %v4246 = vunpack.c.h.b16 %v3885
        %v4247 = vunpack.c.l.b16 %v3886
        %v4248 = vunpack.c.h.b16 %v3886
        %v4249 = vunpack.c.l.b16 %v3887
        %v4250 = vunpack.c.h.b16 %v3887
        %v4251 = vunpack.c.l.b16 %v3888
        %v4252 = vunpack.c.h.b16 %v3888
        %v4253 = vunpack.c.l.b16 %v3889
        %v4254 = vunpack.c.h.b16 %v3889
        %v4255 = vunpack.c.l.b16 %v3890
        %v4256 = vunpack.c.h.b16 %v3890
        %v4257 = vunpack.c.l.b16 %v3891
        %v4258 = vunpack.c.h.b16 %v3891
        %v4259 = vunpack.c.l.b16 %v3892
        %v4260 = vunpack.c.h.b16 %v3892
        %v4261 = vunpack.c.l.b16 %v3893
        %v4262 = vunpack.c.h.b16 %v3893
        %v4263 = vunpack.c.l.b16 %v3894
        %v4264 = vunpack.c.h.b16 %v3894
        %v4265 = vunpack.c.l.b16 %v3895
        %v4266 = vunpack.c.h.b16 %v3895
        %v4267 = vunpack.c.l.b16 %v3896
        %v4268 = vunpack.c.h.b16 %v3896
        %v4269 = vunpack.c.l.b16 %v3897
        %v4270 = vunpack.c.h.b16 %v3897
        %v4271 = vunpack.c.l.b16 %v3898
        %v4272 = vunpack.c.h.b16 %v3898
        %v4273 = vunpack.c.l.b16 %v3899
        %v4274 = vunpack.c.h.b16 %v3899
        %v4275 = vunpack.c.l.b16 %v3900
        %v4276 = vunpack.c.h.b16 %v3900
        %v4277 = vunpack.c.l.b16 %v3901
        %v4278 = vunpack.c.h.b16 %v3901
        %v4279 = vunpack.c.l.b16 %v3902
        %v4280 = vunpack.c.h.b16 %v3902
        %v4281 = vunpack.c.l.b16 %v3903
        %v4282 = vunpack.c.h.b16 %v3903
        %v4283 = vunpack.c.l.b16 %v3904
        %v4284 = vunpack.c.h.b16 %v3904
        %v4285 = vunpack.c.l.b16 %v3905
        %v4286 = vunpack.c.h.b16 %v3905
        %v4287 = vunpack.c.l.b16 %v3906
        %v4288 = vunpack.c.h.b16 %v3906
        %v4289 = vunpack.c.l.b16 %v3907
        %v4290 = vunpack.c.h.b16 %v3907
        %v4291 = vunpack.c.l.b16 %v3908
        %v4292 = vunpack.c.h.b16 %v3908
        %v4293 = vunpack.c.l.b16 %v3909
        %v4294 = vunpack.c.h.b16 %v3909
        %v4295 = vunpack.c.l.b16 %v3910
        %v4296 = vunpack.c.h.b16 %v3910
        %v4297 = vunpack.c.l.b16 %v3911
        %v4298 = vunpack.c.h.b16 %v3911
        %v4299 = vunpack.c.l.b16 %v3912
        %v4300 = vunpack.c.h.b16 %v3912
        %v4301 = vunpack.c.l.b16 %v3913
        %v4302 = vunpack.c.h.b16 %v3913
        %v4303 = vunpack.c.l.b16 %v3914
        %v4304 = vunpack.c.h.b16 %v3914
        %v4305 = vunpack.c.l.b16 %v3915
        %v4306 = vunpack.c.h.b16 %v3915
        %v4307 = vunpack.c.l.b16 %v3916
        %v4308 = vunpack.c.h.b16 %v3916
        %v4309 = vunpack.c.l.b16 %v3917
        %v4310 = vunpack.c.h.b16 %v3917
        %v4311 = vunpack.c.l.b16 %v3918
        %v4312 = vunpack.c.h.b16 %v3918
        %v4313 = vunpack.c.l.b16 %v3919
        %v4314 = vunpack.c.h.b16 %v3919
        %v4315 = vunpack.c.l.b16 %v3920
        %v4316 = vunpack.c.h.b16 %v3920
        %v4317 = vunpack.c.l.b16 %v3921
        %v4318 = vunpack.c.h.b16 %v3921
        %v4319 = vunpack.c.l.b16 %v3922
        %v4320 = vunpack.c.h.b16 %v3922
        %v4321 = vunpack.c.l.b16 %v3923
        %v4322 = vunpack.c.h.b16 %v3923
        %v4323 = vunpack.c.l.b16 %v3924
        %v4324 = vunpack.c.h.b16 %v3924
        %v4325 = vunpack.c.l.b16 %v3925
        %v4326 = vunpack.c.h.b16 %v3925
        %v4327 = vunpack.c.l.b16 %v3926
        %v4328 = vunpack.c.h.b16 %v3926
        %v4329 = vunpack.c.l.b16 %v3927
        %v4330 = vunpack.c.h.b16 %v3927
        %v4331 = vunpack.c.l.b16 %v3928
        %v4332 = vunpack.c.h.b16 %v3928
        %v4333 = vunpack.c.l.b16 %v3929
        %v4334 = vunpack.c.h.b16 %v3929
        %v4335 = vunpack.c.l.b16 %v3930
        %v4336 = vunpack.c.h.b16 %v3930
        %v4337 = vunpack.c.l.b16 %v3931
        %v4338 = vunpack.c.h.b16 %v3931
        %v4339 = vunpack.c.l.b16 %v3932
        %v4340 = vunpack.c.h.b16 %v3932
        %v4341 = vunpack.c.l.b16 %v3933
        %v4342 = vunpack.c.h.b16 %v3933
        %v4343 = vunpack.c.l.b16 %v3934
        %v4344 = vunpack.c.h.b16 %v3934
        %v4345 = vunpack.c.l.b16 %v3935
        %v4346 = vunpack.c.h.b16 %v3935
        %v4347 = vunpack.c.l.b16 %v3936
        %v4348 = vunpack.c.h.b16 %v3936
        %v4349 = vunpack.c.l.b16 %v3937
        %v4350 = vunpack.c.h.b16 %v3937
        %v4351 = vunpack.c.l.b16 %v3938
        %v4352 = vunpack.c.h.b16 %v3938
        %v4353 = vunpack.c.l.b16 %v3939
        %v4354 = vunpack.c.h.b16 %v3939
        %v4355 = vunpack.c.l.b16 %v3940
        %v4356 = vunpack.c.h.b16 %v3940
        %v4357 = vunpack.c.l.b16 %v3941
        %v4358 = vunpack.c.h.b16 %v3941
        %v4359 = vunpack.c.l.b16 %v3942
        %v4360 = vunpack.c.h.b16 %v3942
        %v4361 = vunpack.c.l.b16 %v3943
        %v4362 = vunpack.c.h.b16 %v3943
        %v4363 = vunpack.c.l.b16 %v3944
        %v4364 = vunpack.c.h.b16 %v3944
        %v4365 = vunpack.c.l.b16 %v3945
        %v4366 = vunpack.c.h.b16 %v3945
        %v4367 = vunpack.c.l.b16 %v3946
        %v4368 = vunpack.c.h.b16 %v3946
        %v4369 = vunpack.c.l.b16 %v3947
        %v4370 = vunpack.c.h.b16 %v3947
        %v4371 = vunpack.c.l.b16 %v3948
        %v4372 = vunpack.c.h.b16 %v3948
        %v4373 = vunpack.c.l.b16 %v3949
        %v4374 = vunpack.c.h.b16 %v3949
        %v4375 = vunpack.c.l.b16 %v3950
        %v4376 = vunpack.c.h.b16 %v3950
        %v4377 = vpack.c.b16 %v4129, %v4121
        %v4378 = vpack.c.b16 %v4130, %v4122
        %v4379 = vpack.c.b16 %v4131, %v4123
        %v4380 = vpack.c.b16 %v4132, %v4124
        %v4381 = vpack.c.b16 %v4133, %v4125
        %v4382 = vpack.c.b16 %v4134, %v4126
        %v4383 = vpack.c.b16 %v4135, %v4127
        %v4384 = vpack.c.b16 %v4136, %v4128
        %v4385 = vpack.c.b16 %v4145, %v4137
        %v4386 = vpack.c.b16 %v4146, %v4138
        %v4387 = vpack.c.b16 %v4147, %v4139
        %v4388 = vpack.c.b16 %v4148, %v4140
        %v4389 = vpack.c.b16 %v4149, %v4141
        %v4390 = vpack.c.b16 %v4150, %v4142
        %v4391 = vpack.c.b16 %v4151, %v4143
        %v4392 = vpack.c.b16 %v4152, %v4144
        %v4393 = vpack.c.b16 %v4161, %v4153
        %v4394 = vpack.c.b16 %v4162, %v4154
        %v4395 = vpack.c.b16 %v4163, %v4155
        %v4396 = vpack.c.b16 %v4164, %v4156
        %v4397 = vpack.c.b16 %v4165, %v4157
        %v4398 = vpack.c.b16 %v4166, %v4158
        %v4399 = vpack.c.b16 %v4167, %v4159
        %v4400 = vpack.c.b16 %v4168, %v4160
        %v4401 = vpack.c.b16 %v4177, %v4169
        %v4402 = vpack.c.b16 %v4178, %v4170
        %v4403 = vpack.c.b16 %v4179, %v4171
        %v4404 = vpack.c.b16 %v4180, %v4172
        %v4405 = vpack.c.b16 %v4181, %v4173
        %v4406 = vpack.c.b16 %v4182, %v4174
        %v4407 = vpack.c.b16 %v4183, %v4175
        %v4408 = vpack.c.b16 %v4184, %v4176
        %v4409 = vpack.c.b16 %v4193, %v4185
        %v4410 = vpack.c.b16 %v4194, %v4186
        %v4411 = vpack.c.b16 %v4195, %v4187
        %v4412 = vpack.c.b16 %v4196, %v4188
        %v4413 = vpack.c.b16 %v4197, %v4189
        %v4414 = vpack.c.b16 %v4198, %v4190
        %v4415 = vpack.c.b16 %v4199, %v4191
        %v4416 = vpack.c.b16 %v4200, %v4192
        %v4417 = vpack.c.b16 %v4209, %v4201
        %v4418 = vpack.c.b16 %v4210, %v4202
        %v4419 = vpack.c.b16 %v4211, %v4203
        %v4420 = vpack.c.b16 %v4212, %v4204
        %v4421 = vpack.c.b16 %v4213, %v4205
        %v4422 = vpack.c.b16 %v4214, %v4206
        %v4423 = vpack.c.b16 %v4215, %v4207
        %v4424 = vpack.c.b16 %v4216, %v4208
        %v4425 = vpack.c.b16 %v4225, %v4217
        %v4426 = vpack.c.b16 %v4226, %v4218
        %v4427 = vpack.c.b16 %v4227, %v4219
        %v4428 = vpack.c.b16 %v4228, %v4220
        %v4429 = vpack.c.b16 %v4229, %v4221
        %v4430 = vpack.c.b16 %v4230, %v4222
        %v4431 = vpack.c.b16 %v4231, %v4223
        %v4432 = vpack.c.b16 %v4232, %v4224
        %v4433 = vpack.c.b16 %v4241, %v4233
        %v4434 = vpack.c.b16 %v4242, %v4234
        %v4435 = vpack.c.b16 %v4243, %v4235
        %v4436 = vpack.c.b16 %v4244, %v4236
        %v4437 = vpack.c.b16 %v4245, %v4237
        %v4438 = vpack.c.b16 %v4246, %v4238
        %v4439 = vpack.c.b16 %v4247, %v4239
        %v4440 = vpack.c.b16 %v4248, %v4240
        %v4441 = vpack.c.b16 %v4257, %v4249
        %v4442 = vpack.c.b16 %v4258, %v4250
        %v4443 = vpack.c.b16 %v4259, %v4251
        %v4444 = vpack.c.b16 %v4260, %v4252
        %v4445 = vpack.c.b16 %v4261, %v4253
        %v4446 = vpack.c.b16 %v4262, %v4254
        %v4447 = vpack.c.b16 %v4263, %v4255
        %v4448 = vpack.c.b16 %v4264, %v4256
        %v4449 = vpack.c.b16 %v4273, %v4265
        %v4450 = vpack.c.b16 %v4274, %v4266
        %v4451 = vpack.c.b16 %v4275, %v4267
        %v4452 = vpack.c.b16 %v4276, %v4268
        %v4453 = vpack.c.b16 %v4277, %v4269
        %v4454 = vpack.c.b16 %v4278, %v4270
        %v4455 = vpack.c.b16 %v4279, %v4271
        %v4456 = vpack.c.b16 %v4280, %v4272
        %v4457 = vpack.c.b16 %v4289, %v4281
        %v4458 = vpack.c.b16 %v4290, %v4282
        %v4459 = vpack.c.b16 %v4291, %v4283
        %v4460 = vpack.c.b16 %v4292, %v4284
        %v4461 = vpack.c.b16 %v4293, %v4285
        %v4462 = vpack.c.b16 %v4294, %v4286
        %v4463 = vpack.c.b16 %v4295, %v4287
        %v4464 = vpack.c.b16 %v4296, %v4288
        %v4465 = vpack.c.b16 %v4305, %v4297
        %v4466 = vpack.c.b16 %v4306, %v4298
        %v4467 = vpack.c.b16 %v4307, %v4299
        %v4468 = vpack.c.b16 %v4308, %v4300
        %v4469 = vpack.c.b16 %v4309, %v4301
        %v4470 = vpack.c.b16 %v4310, %v4302
        %v4471 = vpack.c.b16 %v4311, %v4303
        %v4472 = vpack.c.b16 %v4312, %v4304
        %v4473 = vpack.c.b16 %v4321, %v4313
        %v4474 = vpack.c.b16 %v4322, %v4314
        %v4475 = vpack.c.b16 %v4323, %v4315
        %v4476 = vpack.c.b16 %v4324, %v4316
        %v4477 = vpack.c.b16 %v4325, %v4317
        %v4478 = vpack.c.b16 %v4326, %v4318
        %v4479 = vpack.c.b16 %v4327, %v4319
        %v4480 = vpack.c.b16 %v4328, %v4320
        %v4481 = vpack.c.b16 %v4337, %v4329
        %v4482 = vpack.c.b16 %v4338, %v4330
        %v4483 = vpack.c.b16 %v4339, %v4331
        %v4484 = vpack.c.b16 %v4340, %v4332
        %v4485 = vpack.c.b16 %v4341, %v4333
        %v4486 = vpack.c.b16 %v4342, %v4334
        %v4487 = vpack.c.b16 %v4343, %v4335
        %v4488 = vpack.c.b16 %v4344, %v4336
        %v4489 = vpack.c.b16 %v4353, %v4345
        %v4490 = vpack.c.b16 %v4354, %v4346
        %v4491 = vpack.c.b16 %v4355, %v4347
        %v4492 = vpack.c.b16 %v4356, %v4348
        %v4493 = vpack.c.b16 %v4357, %v4349
        %v4494 = vpack.c.b16 %v4358, %v4350
        %v4495 = vpack.c.b16 %v4359, %v4351
        %v4496 = vpack.c.b16 %v4360, %v4352
        %v4497 = vpack.c.b16 %v4369, %v4361
        %v4498 = vpack.c.b16 %v4370, %v4362
        %v4499 = vpack.c.b16 %v4371, %v4363
        %v4500 = vpack.c.b16 %v4372, %v4364
        %v4501 = vpack.c.b16 %v4373, %v4365
        %v4502 = vpack.c.b16 %v4374, %v4366
        %v4503 = vpack.c.b16 %v4375, %v4367
        %v4504 = vpack.c.b16 %v4376, %v4368
        %4633 = vmatprep.subr.bf16.mxu0 %v4378
        %4634 = vmatpush1.bf16.msra.mxu0 %v4377
        %4635 = vmatprep.subr.bf16.mxu0 %v4386
        %4636 = vmatpush1.bf16.msra.mxu0 %v4385
        %4637 = vmatprep.subr.bf16.mxu0 %v4394
        %4638 = vmatpush1.bf16.msra.mxu0 %v4393
        %4639 = vmatprep.subr.bf16.mxu0 %v4402
        %4640 = vmatpush1.bf16.msra.mxu0 %v4401
        %4641 = vmatprep.subr.bf16.mxu0 %v4410
        %4642 = vmatpush1.bf16.msra.mxu0 %v4409
        %4643 = vmatprep.subr.bf16.mxu0 %v4418
        %4644 = vmatpush1.bf16.msra.mxu0 %v4417
        %4645 = vmatprep.subr.bf16.mxu0 %v4426
        %4646 = vmatpush1.bf16.msra.mxu0 %v4425
        %4647 = vmatprep.subr.bf16.mxu0 %v4434
        %4648 = vmatpush1.bf16.msra.mxu0 %v4433
        %4649 = vmatprep.subr.bf16.mxu0 %v4442
        %4650 = vmatpush1.bf16.msra.mxu0 %v4441
        %4651 = vmatprep.subr.bf16.mxu0 %v4450
        %4652 = vmatpush1.bf16.msra.mxu0 %v4449
        %4653 = vmatprep.subr.bf16.mxu0 %v4458
        %4654 = vmatpush1.bf16.msra.mxu0 %v4457
        %4655 = vmatprep.subr.bf16.mxu0 %v4466
        %4656 = vmatpush1.bf16.msra.mxu0 %v4465
        %4657 = vmatprep.subr.bf16.mxu0 %v4474
        %4658 = vmatpush1.bf16.msra.mxu0 %v4473
        %4659 = vmatprep.subr.bf16.mxu0 %v4482
        %4660 = vmatpush1.bf16.msra.mxu0 %v4481
        %4661 = vmatprep.subr.bf16.mxu0 %v4490
        %4662 = vmatpush1.bf16.msra.mxu0 %v4489
        %4663 = vmatprep.subr.bf16.mxu0 %v4498
        %4664 = vmatpush1.bf16.msra.mxu0 %v4497
        %4665 = vmatprep.mubr.bf16.mxu0 %v3820
        %4666 = vmatmul.mubr.bf16.gmra.mrb[0].mxu0 %v3819
        %v4667 = vpop.f32.mrb[0].mxu0
        %v4668 = vadd.f32 %v3956, %v4667
        %v4669 = vpop.f32.mrb[0].mxu0
        %v4670 = vadd.f32 %v3960, %v4669
        %v4671 = vpop.f32.mrb[0].mxu0
        %v4672 = vadd.f32 %v3956, %v4671
        %v4673 = vpop.f32.mrb[0].mxu0
        %v4674 = vadd.f32 %v3960, %v4673
        %4675 = vmatprep.mubr.bf16.mxu0 %v3822
        %4676 = vmatmul.mubr.bf16.gmra.mrb[0].mxu0 %v3821
        %v4677 = vpop.f32.mrb[0].mxu0
        %v4678 = vadd.f32 %v3956, %v4677
        %v4679 = vpop.f32.mrb[0].mxu0
        %v4680 = vadd.f32 %v3960, %v4679
        %v4681 = vpop.f32.mrb[0].mxu0
        %v4682 = vpop.f32.mrb[0].mxu0
        %4683 = vdwg.mxu0
        %4684 = vmatprep.subr.bf16.mxu0 %v4380
        %4685 = vmatpush1.bf16.msra.mxu0 %v4379
        %4686 = vmatprep.subr.bf16.mxu0 %v4388
        %4687 = vmatpush1.bf16.msra.mxu0 %v4387
        %4688 = vmatprep.subr.bf16.mxu0 %v4396
        %4689 = vmatpush1.bf16.msra.mxu0 %v4395
        %4690 = vmatprep.subr.bf16.mxu0 %v4404
        %4691 = vmatpush1.bf16.msra.mxu0 %v4403
        %4692 = vmatprep.subr.bf16.mxu0 %v4412
        %4693 = vmatpush1.bf16.msra.mxu0 %v4411
        %4694 = vmatprep.subr.bf16.mxu0 %v4420
        %4695 = vmatpush1.bf16.msra.mxu0 %v4419
        %4696 = vmatprep.subr.bf16.mxu0 %v4428
        %4697 = vmatpush1.bf16.msra.mxu0 %v4427
        %4698 = vmatprep.subr.bf16.mxu0 %v4436
        %4699 = vmatpush1.bf16.msra.mxu0 %v4435
        %4700 = vmatprep.subr.bf16.mxu0 %v4444
        %4701 = vmatpush1.bf16.msra.mxu0 %v4443
        %4702 = vmatprep.subr.bf16.mxu0 %v4452
        %4703 = vmatpush1.bf16.msra.mxu0 %v4451
        %4704 = vmatprep.subr.bf16.mxu0 %v4460
        %4705 = vmatpush1.bf16.msra.mxu0 %v4459
        %4706 = vmatprep.subr.bf16.mxu0 %v4468
        %4707 = vmatpush1.bf16.msra.mxu0 %v4467
        %4708 = vmatprep.subr.bf16.mxu0 %v4476
        %4709 = vmatpush1.bf16.msra.mxu0 %v4475
        %4710 = vmatprep.subr.bf16.mxu0 %v4484
        %4711 = vmatpush1.bf16.msra.mxu0 %v4483
        %4712 = vmatprep.subr.bf16.mxu0 %v4492
        %4713 = vmatpush1.bf16.msra.mxu0 %v4491
        %4714 = vmatprep.subr.bf16.mxu0 %v4500
        %4715 = vmatpush1.bf16.msra.mxu0 %v4499
        %4716 = vmatprep.mubr.bf16.mxu0 %v3820
        %4717 = vmatmul.mubr.bf16.gmra.mrb[0].mxu0 %v3819
        %v4718 = vpop.f32.mrb[0].mxu0
        %v4719 = vadd.f32 %v3964, %v4718
        %v4720 = vpop.f32.mrb[0].mxu0
        %v4721 = vadd.f32 %v3968, %v4720
        %v4722 = vpop.f32.mrb[0].mxu0
        %v4723 = vadd.f32 %v3964, %v4722
        %v4724 = vpop.f32.mrb[0].mxu0
        %v4725 = vadd.f32 %v3968, %v4724
        %4726 = vmatprep.mubr.bf16.mxu0 %v3822
        %4727 = vmatmul.mubr.bf16.gmra.mrb[0].mxu0 %v3821
        %v4728 = vpop.f32.mrb[0].mxu0
        %v4729 = vadd.f32 %v3964, %v4728
        %v4730 = vpop.f32.mrb[0].mxu0
        %v4731 = vadd.f32 %v3968, %v4730
        %v4732 = vpop.f32.mrb[0].mxu0
        %v4733 = vpop.f32.mrb[0].mxu0
        %4734 = vdwg.mxu0
        %4735 = vmatprep.subr.bf16.mxu0 %v4382
        %4736 = vmatpush1.bf16.msra.mxu0 %v4381
        %4737 = vmatprep.subr.bf16.mxu0 %v4390
        %4738 = vmatpush1.bf16.msra.mxu0 %v4389
        %4739 = vmatprep.subr.bf16.mxu0 %v4398
        %4740 = vmatpush1.bf16.msra.mxu0 %v4397
        %4741 = vmatprep.subr.bf16.mxu0 %v4406
        %4742 = vmatpush1.bf16.msra.mxu0 %v4405
        %4743 = vmatprep.subr.bf16.mxu0 %v4414
        %4744 = vmatpush1.bf16.msra.mxu0 %v4413
        %4745 = vmatprep.subr.bf16.mxu0 %v4422
        %4746 = vmatpush1.bf16.msra.mxu0 %v4421
        %4747 = vmatprep.subr.bf16.mxu0 %v4430
        %4748 = vmatpush1.bf16.msra.mxu0 %v4429
        %4749 = vmatprep.subr.bf16.mxu0 %v4438
        %4750 = vmatpush1.bf16.msra.mxu0 %v4437
        %4751 = vmatprep.subr.bf16.mxu0 %v4446
        %4752 = vmatpush1.bf16.msra.mxu0 %v4445
        %4753 = vmatprep.subr.bf16.mxu0 %v4454
        %4754 = vmatpush1.bf16.msra.mxu0 %v4453
        %4755 = vmatprep.subr.bf16.mxu0 %v4462
        %4756 = vmatpush1.bf16.msra.mxu0 %v4461
        %4757 = vmatprep.subr.bf16.mxu0 %v4470
        %4758 = vmatpush1.bf16.msra.mxu0 %v4469
        %4759 = vmatprep.subr.bf16.mxu0 %v4478
        %4760 = vmatpush1.bf16.msra.mxu0 %v4477
        %4761 = vmatprep.subr.bf16.mxu0 %v4486
        %4762 = vmatpush1.bf16.msra.mxu0 %v4485
        %4763 = vmatprep.subr.bf16.mxu0 %v4494
        %4764 = vmatpush1.bf16.msra.mxu0 %v4493
        %4765 = vmatprep.subr.bf16.mxu0 %v4502
        %4766 = vmatpush1.bf16.msra.mxu0 %v4501
        %4767 = vmatprep.mubr.bf16.mxu0 %v3820
        %4768 = vmatmul.mubr.bf16.gmra.mrb[0].mxu0 %v3819
        %v4769 = vpop.f32.mrb[0].mxu0
        %v4770 = vadd.f32 %v3972, %v4769
        %v4771 = vpop.f32.mrb[0].mxu0
        %v4772 = vadd.f32 %v3976, %v4771
        %v4773 = vpop.f32.mrb[0].mxu0
        %v4774 = vadd.f32 %v3972, %v4773
        %v4775 = vpop.f32.mrb[0].mxu0
        %v4776 = vadd.f32 %v3976, %v4775
        %4777 = vmatprep.mubr.bf16.mxu0 %v3822
        %4778 = vmatmul.mubr.bf16.gmra.mrb[0].mxu0 %v3821
        %v4779 = vpop.f32.mrb[0].mxu0
        %v4780 = vadd.f32 %v3972, %v4779
        %v4781 = vpop.f32.mrb[0].mxu0
        %v4782 = vadd.f32 %v3976, %v4781
        %v4783 = vpop.f32.mrb[0].mxu0
        %v4784 = vpop.f32.mrb[0].mxu0
        %4785 = vdwg.mxu0
        %4786 = vmatprep.subr.bf16.mxu0 %v4384
        %4787 = vmatpush1.bf16.msra.mxu0 %v4383
        %4788 = vmatprep.subr.bf16.mxu0 %v4392
        %4789 = vmatpush1.bf16.msra.mxu0 %v4391
        %4790 = vmatprep.subr.bf16.mxu0 %v4400
        %4791 = vmatpush1.bf16.msra.mxu0 %v4399
        %4792 = vmatprep.subr.bf16.mxu0 %v4408
        %4793 = vmatpush1.bf16.msra.mxu0 %v4407
        %4794 = vmatprep.subr.bf16.mxu0 %v4416
        %4795 = vmatpush1.bf16.msra.mxu0 %v4415
        %4796 = vmatprep.subr.bf16.mxu0 %v4424
        %4797 = vmatpush1.bf16.msra.mxu0 %v4423
        %4798 = vmatprep.subr.bf16.mxu0 %v4432
        %4799 = vmatpush1.bf16.msra.mxu0 %v4431
        %4800 = vmatprep.subr.bf16.mxu0 %v4440
        %4801 = vmatpush1.bf16.msra.mxu0 %v4439
        %4802 = vmatprep.subr.bf16.mxu0 %v4448
        %4803 = vmatpush1.bf16.msra.mxu0 %v4447
        %4804 = vmatprep.subr.bf16.mxu0 %v4456
        %4805 = vmatpush1.bf16.msra.mxu0 %v4455
        %4806 = vmatprep.subr.bf16.mxu0 %v4464
        %4807 = vmatpush1.bf16.msra.mxu0 %v4463
        %4808 = vmatprep.subr.bf16.mxu0 %v4472
        %4809 = vmatpush1.bf16.msra.mxu0 %v4471
        %4810 = vmatprep.subr.bf16.mxu0 %v4480
        %4811 = vmatpush1.bf16.msra.mxu0 %v4479
        %4812 = vmatprep.subr.bf16.mxu0 %v4488
        %4813 = vmatpush1.bf16.msra.mxu0 %v4487
        %4814 = vmatprep.subr.bf16.mxu0 %v4496
        %4815 = vmatpush1.bf16.msra.mxu0 %v4495
        %4816 = vmatprep.subr.bf16.mxu0 %v4504
        %4817 = vmatpush1.bf16.msra.mxu0 %v4503
        %4818 = vmatprep.mubr.bf16.mxu0 %v3820
        %4819 = vmatmul.mubr.bf16.gmra.mrb[0].mxu0 %v3819
        %v4820 = vpop.f32.mrb[0].mxu0
        %v4821 = vadd.f32 %v3980, %v4820
        %v4822 = vpop.f32.mrb[0].mxu0
        %v4823 = vadd.f32 %v3984, %v4822
        %v4824 = vpop.f32.mrb[0].mxu0
        %v4825 = vadd.f32 %v3980, %v4824
        %v4826 = vpop.f32.mrb[0].mxu0
        %v4827 = vadd.f32 %v3984, %v4826
        %4828 = vmatprep.mubr.bf16.mxu0 %v3822
        %4829 = vmatmul.mubr.bf16.gmra.mrb[0].mxu0 %v3821
        %v4830 = vpop.f32.mrb[0].mxu0
        %v4831 = vadd.f32 %v3980, %v4830
        %v4832 = vpop.f32.mrb[0].mxu0
        %v4833 = vadd.f32 %v3984, %v4832
        %v4834 = vpop.f32.mrb[0].mxu0
        %v4835 = vpop.f32.mrb[0].mxu0
        %4836 = vdwg.mxu0
        %v4837 = vmul.f32 %v4668, 0.5
        %v4838 = vmul.f32 %v4670, 0.5
        %v4839 = vmul.f32 %v4719, 0.5
        %v4840 = vmul.f32 %v4721, 0.5
        %v4841 = vmul.f32 %v4770, 0.5
        %v4842 = vmul.f32 %v4772, 0.5
        %v4843 = vmul.f32 %v4821, 0.5
        %v4844 = vmul.f32 %v4823, 0.5
        %v4845 = vmul.f32 %v4672, 0.5
        %v4846 = vmul.f32 %v4674, 0.5
        %v4847 = vmul.f32 %v4723, 0.5
        %v4848 = vmul.f32 %v4725, 0.5
        %v4849 = vmul.f32 %v4774, 0.5
        %v4850 = vmul.f32 %v4776, 0.5
        %v4851 = vmul.f32 %v4825, 0.5
        %v4852 = vmul.f32 %v4827, 0.5
        %v4853 = vmul.f32 %v4678, 0.5
        %v4854 = vmul.f32 %v4680, 0.5
        %v4855 = vmul.f32 %v4729, 0.5
        %v4856 = vmul.f32 %v4731, 0.5
        %v4857 = vmul.f32 %v4780, 0.5
        %v4858 = vmul.f32 %v4782, 0.5
        %v4859 = vmul.f32 %v4831, 0.5
        %v4860 = vmul.f32 %v4833, 0.5
        %v4861 = vmul.f32 %v4668, 0.044715
        %v4862 = vmul.f32 %v4670, 0.044715
        %v4863 = vmul.f32 %v4719, 0.044715
        %v4864 = vmul.f32 %v4721, 0.044715
        %v4865 = vmul.f32 %v4770, 0.044715
        %v4866 = vmul.f32 %v4772, 0.044715
        %v4867 = vmul.f32 %v4821, 0.044715
        %v4868 = vmul.f32 %v4823, 0.044715
        %v4869 = vmul.f32 %v4672, 0.044715
        %v4870 = vmul.f32 %v4674, 0.044715
        %v4871 = vmul.f32 %v4723, 0.044715
        %v4872 = vmul.f32 %v4725, 0.044715
        %v4873 = vmul.f32 %v4774, 0.044715
        %v4874 = vmul.f32 %v4776, 0.044715
        %v4875 = vmul.f32 %v4825, 0.044715
        %v4876 = vmul.f32 %v4827, 0.044715
        %v4877 = vmul.f32 %v4678, 0.044715
        %v4878 = vmul.f32 %v4680, 0.044715
        %v4879 = vmul.f32 %v4729, 0.044715
        %v4880 = vmul.f32 %v4731, 0.044715
        %v4881 = vmul.f32 %v4780, 0.044715
        %v4882 = vmul.f32 %v4782, 0.044715
        %v4883 = vmul.f32 %v4831, 0.044715
        %v4884 = vmul.f32 %v4833, 0.044715
        %v4885 = vmul.f32 %v4861, %v4668
        %v4886 = vmul.f32 %v4862, %v4670
        %v4887 = vmul.f32 %v4863, %v4719
        %v4888 = vmul.f32 %v4864, %v4721
        %v4889 = vmul.f32 %v4865, %v4770
        %v4890 = vmul.f32 %v4866, %v4772
        %v4891 = vmul.f32 %v4867, %v4821
        %v4892 = vmul.f32 %v4868, %v4823
        %v4893 = vmul.f32 %v4869, %v4672
        %v4894 = vmul.f32 %v4870, %v4674
        %v4895 = vmul.f32 %v4871, %v4723
        %v4896 = vmul.f32 %v4872, %v4725
        %v4897 = vmul.f32 %v4873, %v4774
        %v4898 = vmul.f32 %v4874, %v4776
        %v4899 = vmul.f32 %v4875, %v4825
        %v4900 = vmul.f32 %v4876, %v4827
        %v4901 = vmul.f32 %v4877, %v4678
        %v4902 = vmul.f32 %v4878, %v4680
        %v4903 = vmul.f32 %v4879, %v4729
        %v4904 = vmul.f32 %v4880, %v4731
        %v4905 = vmul.f32 %v4881, %v4780
        %v4906 = vmul.f32 %v4882, %v4782
        %v4907 = vmul.f32 %v4883, %v4831
        %v4908 = vmul.f32 %v4884, %v4833
        %v4909 = vmul.f32 %v4885, %v4668
        %v4910 = vmul.f32 %v4886, %v4670
        %v4911 = vmul.f32 %v4887, %v4719
        %v4912 = vmul.f32 %v4888, %v4721
        %v4913 = vmul.f32 %v4889, %v4770
        %v4914 = vmul.f32 %v4890, %v4772
        %v4915 = vmul.f32 %v4891, %v4821
        %v4916 = vmul.f32 %v4892, %v4823
        %v4917 = vmul.f32 %v4893, %v4672
        %v4918 = vmul.f32 %v4894, %v4674
        %v4919 = vmul.f32 %v4895, %v4723
        %v4920 = vmul.f32 %v4896, %v4725
        %v4921 = vmul.f32 %v4897, %v4774
        %v4922 = vmul.f32 %v4898, %v4776
        %v4923 = vmul.f32 %v4899, %v4825
        %v4924 = vmul.f32 %v4900, %v4827
        %v4925 = vmul.f32 %v4901, %v4678
        %v4926 = vmul.f32 %v4902, %v4680
        %v4927 = vmul.f32 %v4903, %v4729
        %v4928 = vmul.f32 %v4904, %v4731
        %v4929 = vmul.f32 %v4905, %v4780
        %v4930 = vmul.f32 %v4906, %v4782
        %v4931 = vmul.f32 %v4907, %v4831
        %v4932 = vmul.f32 %v4908, %v4833
        %v4933 = vadd.f32 %v4668, %v4909
        %v4934 = vadd.f32 %v4670, %v4910
        %v4935 = vadd.f32 %v4719, %v4911
        %v4936 = vadd.f32 %v4721, %v4912
        %v4937 = vadd.f32 %v4770, %v4913
        %v4938 = vadd.f32 %v4772, %v4914
        %v4939 = vadd.f32 %v4821, %v4915
        %v4940 = vadd.f32 %v4823, %v4916
        %v4941 = vadd.f32 %v4672, %v4917
        %v4942 = vadd.f32 %v4674, %v4918
        %v4943 = vadd.f32 %v4723, %v4919
        %v4944 = vadd.f32 %v4725, %v4920
        %v4945 = vadd.f32 %v4774, %v4921
        %v4946 = vadd.f32 %v4776, %v4922
        %v4947 = vadd.f32 %v4825, %v4923
        %v4948 = vadd.f32 %v4827, %v4924
        %v4949 = vadd.f32 %v4678, %v4925
        %v4950 = vadd.f32 %v4680, %v4926
        %v4951 = vadd.f32 %v4729, %v4927
        %v4952 = vadd.f32 %v4731, %v4928
        %v4953 = vadd.f32 %v4780, %v4929
        %v4954 = vadd.f32 %v4782, %v4930
        %v4955 = vadd.f32 %v4831, %v4931
        %v4956 = vadd.f32 %v4833, %v4932
        %v4957 = vmul.f32 %v4933, 0.7978846
        %v4958 = vmul.f32 %v4934, 0.7978846
        %v4959 = vmul.f32 %v4935, 0.7978846
        %v4960 = vmul.f32 %v4936, 0.7978846
        %v4961 = vmul.f32 %v4937, 0.7978846
        %v4962 = vmul.f32 %v4938, 0.7978846
        %v4963 = vmul.f32 %v4939, 0.7978846
        %v4964 = vmul.f32 %v4940, 0.7978846
        %v4965 = vmul.f32 %v4941, 0.7978846
        %v4966 = vmul.f32 %v4942, 0.7978846
        %v4967 = vmul.f32 %v4943, 0.7978846
        %v4968 = vmul.f32 %v4944, 0.7978846
        %v4969 = vmul.f32 %v4945, 0.7978846
        %v4970 = vmul.f32 %v4946, 0.7978846
        %v4971 = vmul.f32 %v4947, 0.7978846
        %v4972 = vmul.f32 %v4948, 0.7978846
        %v4973 = vmul.f32 %v4949, 0.7978846
        %v4974 = vmul.f32 %v4950, 0.7978846
        %v4975 = vmul.f32 %v4951, 0.7978846
        %v4976 = vmul.f32 %v4952, 0.7978846
        %v4977 = vmul.f32 %v4953, 0.7978846
        %v4978 = vmul.f32 %v4954, 0.7978846
        %v4979 = vmul.f32 %v4955, 0.7978846
        %v4980 = vmul.f32 %v4956, 0.7978846
        %v4981 = vtanh.pop %v4957
        %v4982 = vtanh.pop %v4958
        %v4983 = vtanh.pop %v4959
        %v4984 = vtanh.pop %v4960
        %v4985 = vtanh.pop %v4961
        %v4986 = vtanh.pop %v4962
        %v4987 = vtanh.pop %v4963
        %v4988 = vtanh.pop %v4964
        %v4989 = vtanh.pop %v4965
        %v4990 = vtanh.pop %v4966
        %v4991 = vtanh.pop %v4967
        %v4992 = vtanh.pop %v4968
        %v4993 = vtanh.pop %v4969
        %v4994 = vtanh.pop %v4970
        %v4995 = vtanh.pop %v4971
        %v4996 = vtanh.pop %v4972
        %v4997 = vtanh.pop %v4973
        %v4998 = vtanh.pop %v4974
        %v4999 = vtanh.pop %v4975
        %v5000 = vtanh.pop %v4976
        %v5001 = vtanh.pop %v4977
        %v5002 = vtanh.pop %v4978
        %v5003 = vtanh.pop %v4979
        %v5004 = vtanh.pop %v4980
        %v5005 = vadd.f32 %v4981, 1.0
        %v5006 = vadd.f32 %v4982, 1.0
        %v5007 = vadd.f32 %v4983, 1.0
        %v5008 = vadd.f32 %v4984, 1.0
        %v5009 = vadd.f32 %v4985, 1.0
        %v5010 = vadd.f32 %v4986, 1.0
        %v5011 = vadd.f32 %v4987, 1.0
        %v5012 = vadd.f32 %v4988, 1.0
        %v5013 = vadd.f32 %v4989, 1.0
        %v5014 = vadd.f32 %v4990, 1.0
        %v5015 = vadd.f32 %v4991, 1.0
        %v5016 = vadd.f32 %v4992, 1.0
        %v5017 = vadd.f32 %v4993, 1.0
        %v5018 = vadd.f32 %v4994, 1.0
        %v5019 = vadd.f32 %v4995, 1.0
        %v5020 = vadd.f32 %v4996, 1.0
        %v5021 = vadd.f32 %v4997, 1.0
        %v5022 = vadd.f32 %v4998, 1.0
        %v5023 = vadd.f32 %v4999, 1.0
        %v5024 = vadd.f32 %v5000, 1.0
        %v5025 = vadd.f32 %v5001, 1.0
        %v5026 = vadd.f32 %v5002, 1.0
        %v5027 = vadd.f32 %v5003, 1.0
        %v5028 = vadd.f32 %v5004, 1.0
        %v5029 = vmul.f32 %v4837, %v5005
        %v5030 = vmul.f32 %v4838, %v5006
        %v5031 = vmul.f32 %v4839, %v5007
        %v5032 = vmul.f32 %v4840, %v5008
        %v5033 = vmul.f32 %v4841, %v5009
        %v5034 = vmul.f32 %v4842, %v5010
        %v5035 = vmul.f32 %v4843, %v5011
        %v5036 = vmul.f32 %v4844, %v5012
        %v5037 = vmul.f32 %v4845, %v5013
        %v5038 = vmul.f32 %v4846, %v5014
        %v5039 = vmul.f32 %v4847, %v5015
        %v5040 = vmul.f32 %v4848, %v5016
        %v5041 = vmul.f32 %v4849, %v5017
        %v5042 = vmul.f32 %v4850, %v5018
        %v5043 = vmul.f32 %v4851, %v5019
        %v5044 = vmul.f32 %v4852, %v5020
        %v5045 = vmul.f32 %v4853, %v5021
        %v5046 = vmul.f32 %v4854, %v5022
        %v5047 = vmul.f32 %v4855, %v5023
        %v5048 = vmul.f32 %v4856, %v5024
        %v5049 = vmul.f32 %v4857, %v5025
        %v5050 = vmul.f32 %v4858, %v5026
        %v5051 = vmul.f32 %v4859, %v5027
        %v5052 = vmul.f32 %v4860, %v5028
        %v5053 = vpack.c.bf16 %v5037, %v5029
        %v5054 = vpack.c.bf16 %v5038, %v5030
        %v5055 = vpack.c.bf16 %v5039, %v5031
        %v5056 = vpack.c.bf16 %v5040, %v5032
        %v5057 = vpack.c.bf16 %v5041, %v5033
        %v5058 = vpack.c.bf16 %v5042, %v5034
        %v5059 = vpack.c.bf16 %v5043, %v5035
        %v5060 = vpack.c.bf16 %v5044, %v5036
        %v5061 = vpack.c.bf16 %v5045, %v5045
        %v5062 = vpack.c.bf16 %v5046, %v5046
        %v5063 = vpack.c.bf16 %v5047, %v5047
        %v5064 = vpack.c.bf16 %v5048, %v5048
        %v5065 = vpack.c.bf16 %v5049, %v5049
        %v5066 = vpack.c.bf16 %v5050, %v5050
        %v5067 = vpack.c.bf16 %v5051, %v5051
        %v5068 = vpack.c.bf16 %v5052, %v5052
        %v5069 = vld [vmem:[%s944] sm:$0xff]
        %v5070 = vld [vmem:[%s944 + $0x8] sm:$0xff]
        %v5071 = vld [vmem:[%s944 + $0x10] sm:$0xff]
        %v5072 = vld [vmem:[%s944 + $0x18] sm:$0xff]
        %v5073 = vld [vmem:[%s944 + $0x20] sm:$0xff]
        %v5074 = vld [vmem:[%s944 + $0x28] sm:$0xff]
        %v5075 = vld [vmem:[%s944 + $0x30] sm:$0xff]
        %v5076 = vld [vmem:[%s944 + $0x38] sm:$0xff]
        %v5077 = vld [vmem:[%s944 + $0x40] sm:$0xff]
        %v5078 = vld [vmem:[%s944 + $0x48] sm:$0xff]
        %v5079 = vld [vmem:[%s944 + $0x50] sm:$0xff]
        %v5080 = vld [vmem:[%s944 + $0x58] sm:$0xff]
        %v5081 = vld [vmem:[%s944 + $0x60] sm:$0xff]
        %v5082 = vld [vmem:[%s944 + $0x68] sm:$0xff]
        %v5083 = vld [vmem:[%s944 + $0x70] sm:$0xff]
        %v5084 = vld [vmem:[%s944 + $0x78] sm:$0xff]
        %v5085 = vld [vmem:[%s944 + $0x80] sm:$0xff]
        %v5086 = vld [vmem:[%s944 + $0x88] sm:$0xff]
        %v5087 = vld [vmem:[%s944 + $0x90] sm:$0xff]
        %v5088 = vld [vmem:[%s944 + $0x98] sm:$0xff]
        %v5089 = vld [vmem:[%s944 + $0xa0] sm:$0xff]
        %v5090 = vld [vmem:[%s944 + $0xa8] sm:$0xff]
        %v5091 = vld [vmem:[%s944 + $0xb0] sm:$0xff]
        %v5092 = vld [vmem:[%s944 + $0xb8] sm:$0xff]
        %v5093 = vld [vmem:[%s944 + $0xc0] sm:$0xff]
        %v5094 = vld [vmem:[%s944 + $0xc8] sm:$0xff]
        %v5095 = vld [vmem:[%s944 + $0xd0] sm:$0xff]
        %v5096 = vld [vmem:[%s944 + $0xd8] sm:$0xff]
        %v5097 = vld [vmem:[%s944 + $0xe0] sm:$0xff]
        %v5098 = vld [vmem:[%s944 + $0xe8] sm:$0xff]
        %v5099 = vld [vmem:[%s944 + $0xf0] sm:$0xff]
        %v5100 = vld [vmem:[%s944 + $0xf8] sm:$0xff]
        %v5101 = vld [vmem:[%s944 + $0x100] sm:$0xff]
        %v5102 = vld [vmem:[%s944 + $0x108] sm:$0xff]
        %v5103 = vld [vmem:[%s944 + $0x110] sm:$0xff]
        %v5104 = vld [vmem:[%s944 + $0x118] sm:$0xff]
        %v5105 = vld [vmem:[%s944 + $0x120] sm:$0xff]
        %v5106 = vld [vmem:[%s944 + $0x128] sm:$0xff]
        %v5107 = vld [vmem:[%s944 + $0x130] sm:$0xff]
        %v5108 = vld [vmem:[%s944 + $0x138] sm:$0xff]
        %v5109 = vld [vmem:[%s944 + $0x140] sm:$0xff]
        %v5110 = vld [vmem:[%s944 + $0x148] sm:$0xff]
        %v5111 = vld [vmem:[%s944 + $0x150] sm:$0xff]
        %v5112 = vld [vmem:[%s944 + $0x158] sm:$0xff]
        %v5113 = vld [vmem:[%s944 + $0x160] sm:$0xff]
        %v5114 = vld [vmem:[%s944 + $0x168] sm:$0xff]
        %v5115 = vld [vmem:[%s944 + $0x170] sm:$0xff]
        %v5116 = vld [vmem:[%s944 + $0x178] sm:$0xff]
        %v5117 = vld [vmem:[%s944 + $0x180] sm:$0xff]
        %v5118 = vld [vmem:[%s944 + $0x188] sm:$0xff]
        %v5119 = vld [vmem:[%s944 + $0x190] sm:$0xff]
        %v5120 = vld [vmem:[%s944 + $0x198] sm:$0xff]
        %v5121 = vld [vmem:[%s944 + $0x1a0] sm:$0xff]
        %v5122 = vld [vmem:[%s944 + $0x1a8] sm:$0xff]
        %v5123 = vld [vmem:[%s944 + $0x1b0] sm:$0xff]
        %v5124 = vld [vmem:[%s944 + $0x1b8] sm:$0xff]
        %v5125 = vld [vmem:[%s944 + $0x1c0] sm:$0xff]
        %v5126 = vld [vmem:[%s944 + $0x1c8] sm:$0xff]
        %v5127 = vld [vmem:[%s944 + $0x1d0] sm:$0xff]
        %v5128 = vld [vmem:[%s944 + $0x1d8] sm:$0xff]
        %v5129 = vld [vmem:[%s944 + $0x1e0] sm:$0xff]
        %v5130 = vld [vmem:[%s944 + $0x1e8] sm:$0xff]
        %v5131 = vld [vmem:[%s944 + $0x1f0] sm:$0xff]
        %v5132 = vld [vmem:[%s944 + $0x1f8] sm:$0xff]
        %v5133 = vld [vmem:[%s944 + $0x200] sm:$0xff]
        %v5134 = vld [vmem:[%s944 + $0x208] sm:$0xff]
        %v5135 = vld [vmem:[%s944 + $0x210] sm:$0xff]
        %v5136 = vld [vmem:[%s944 + $0x218] sm:$0xff]
        %v5137 = vld [vmem:[%s944 + $0x220] sm:$0xff]
        %v5138 = vld [vmem:[%s944 + $0x228] sm:$0xff]
        %v5139 = vld [vmem:[%s944 + $0x230] sm:$0xff]
        %v5140 = vld [vmem:[%s944 + $0x238] sm:$0xff]
        %v5141 = vld [vmem:[%s944 + $0x240] sm:$0xff]
        %v5142 = vld [vmem:[%s944 + $0x248] sm:$0xff]
        %v5143 = vld [vmem:[%s944 + $0x250] sm:$0xff]
        %v5144 = vld [vmem:[%s944 + $0x258] sm:$0xff]
        %v5145 = vld [vmem:[%s944 + $0x260] sm:$0xff]
        %v5146 = vld [vmem:[%s944 + $0x268] sm:$0xff]
        %v5147 = vld [vmem:[%s944 + $0x270] sm:$0xff]
        %v5148 = vld [vmem:[%s944 + $0x278] sm:$0xff]
        %v5149 = vld [vmem:[%s944 + $0x280] sm:$0xff]
        %v5150 = vld [vmem:[%s944 + $0x288] sm:$0xff]
        %v5151 = vld [vmem:[%s944 + $0x290] sm:$0xff]
        %v5152 = vld [vmem:[%s944 + $0x298] sm:$0xff]
        %v5153 = vld [vmem:[%s944 + $0x2a0] sm:$0xff]
        %v5154 = vld [vmem:[%s944 + $0x2a8] sm:$0xff]
        %v5155 = vld [vmem:[%s944 + $0x2b0] sm:$0xff]
        %v5156 = vld [vmem:[%s944 + $0x2b8] sm:$0xff]
        %v5157 = vld [vmem:[%s944 + $0x2c0] sm:$0xff]
        %v5158 = vld [vmem:[%s944 + $0x2c8] sm:$0xff]
        %v5159 = vld [vmem:[%s944 + $0x2d0] sm:$0xff]
        %v5160 = vld [vmem:[%s944 + $0x2d8] sm:$0xff]
        %v5161 = vld [vmem:[%s944 + $0x2e0] sm:$0xff]
        %v5162 = vld [vmem:[%s944 + $0x2e8] sm:$0xff]
        %v5163 = vld [vmem:[%s944 + $0x2f0] sm:$0xff]
        %v5164 = vld [vmem:[%s944 + $0x2f8] sm:$0xff]
        %v5165 = vld [vmem:[%s944 + $0x300] sm:$0xff]
        %v5166 = vld [vmem:[%s944 + $0x308] sm:$0xff]
        %v5167 = vld [vmem:[%s944 + $0x310] sm:$0xff]
        %v5168 = vld [vmem:[%s944 + $0x318] sm:$0xff]
        %v5169 = vld [vmem:[%s944 + $0x320] sm:$0xff]
        %v5170 = vld [vmem:[%s944 + $0x328] sm:$0xff]
        %v5171 = vld [vmem:[%s944 + $0x330] sm:$0xff]
        %v5172 = vld [vmem:[%s944 + $0x338] sm:$0xff]
        %v5173 = vld [vmem:[%s944 + $0x340] sm:$0xff]
        %v5174 = vld [vmem:[%s944 + $0x348] sm:$0xff]
        %v5175 = vld [vmem:[%s944 + $0x350] sm:$0xff]
        %v5176 = vld [vmem:[%s944 + $0x358] sm:$0xff]
        %v5177 = vld [vmem:[%s944 + $0x360] sm:$0xff]
        %v5178 = vld [vmem:[%s944 + $0x368] sm:$0xff]
        %v5179 = vld [vmem:[%s944 + $0x370] sm:$0xff]
        %v5180 = vld [vmem:[%s944 + $0x378] sm:$0xff]
        %v5181 = vld [vmem:[%s944 + $0x380] sm:$0xff]
        %v5182 = vld [vmem:[%s944 + $0x388] sm:$0xff]
        %v5183 = vld [vmem:[%s944 + $0x390] sm:$0xff]
        %v5184 = vld [vmem:[%s944 + $0x398] sm:$0xff]
        %v5185 = vld [vmem:[%s944 + $0x3a0] sm:$0xff]
        %v5186 = vld [vmem:[%s944 + $0x3a8] sm:$0xff]
        %v5187 = vld [vmem:[%s944 + $0x3b0] sm:$0xff]
        %v5188 = vld [vmem:[%s944 + $0x3b8] sm:$0xff]
        %v5189 = vld [vmem:[%s944 + $0x3c0] sm:$0xff]
        %v5190 = vld [vmem:[%s944 + $0x3c8] sm:$0xff]
        %v5191 = vld [vmem:[%s944 + $0x3d0] sm:$0xff]
        %v5192 = vld [vmem:[%s944 + $0x3d8] sm:$0xff]
        %v5193 = vld [vmem:[%s944 + $0x3e0] sm:$0xff]
        %v5194 = vld [vmem:[%s944 + $0x3e8] sm:$0xff]
        %v5195 = vld [vmem:[%s944 + $0x3f0] sm:$0xff]
        %v5196 = vld [vmem:[%s944 + $0x3f8] sm:$0xff]
        %v5197 = vld [vmem:[%s953] sm:$0x3]
        %v5199 = vlaneseq
        %v5200 = vshrl.u32 %v5199, 7
        %v5201 = vsub.s32 0, %v5200
        %v5202 = vrot.slane %v5197, %v5201
        %v5203 = vlaneseq
        %v5204 = vshrl.u32 %v5203, 7
        %v5205 = vsub.s32 1, %v5204
        %v5206 = vrot.slane %v5197, %v5205
        %v5337 = vunpack.c.l.b16 %v5069
        %v5338 = vunpack.c.h.b16 %v5069
        %v5339 = vunpack.c.l.b16 %v5070
        %v5340 = vunpack.c.h.b16 %v5070
        %v5341 = vunpack.c.l.b16 %v5071
        %v5342 = vunpack.c.h.b16 %v5071
        %v5343 = vunpack.c.l.b16 %v5072
        %v5344 = vunpack.c.h.b16 %v5072
        %v5345 = vunpack.c.l.b16 %v5073
        %v5346 = vunpack.c.h.b16 %v5073
        %v5347 = vunpack.c.l.b16 %v5074
        %v5348 = vunpack.c.h.b16 %v5074
        %v5349 = vunpack.c.l.b16 %v5075
        %v5350 = vunpack.c.h.b16 %v5075
        %v5351 = vunpack.c.l.b16 %v5076
        %v5352 = vunpack.c.h.b16 %v5076
        %v5353 = vunpack.c.l.b16 %v5077
        %v5354 = vunpack.c.h.b16 %v5077
        %v5355 = vunpack.c.l.b16 %v5078
        %v5356 = vunpack.c.h.b16 %v5078
        %v5357 = vunpack.c.l.b16 %v5079
        %v5358 = vunpack.c.h.b16 %v5079
        %v5359 = vunpack.c.l.b16 %v5080
        %v5360 = vunpack.c.h.b16 %v5080
        %v5361 = vunpack.c.l.b16 %v5081
        %v5362 = vunpack.c.h.b16 %v5081
        %v5363 = vunpack.c.l.b16 %v5082
        %v5364 = vunpack.c.h.b16 %v5082
        %v5365 = vunpack.c.l.b16 %v5083
        %v5366 = vunpack.c.h.b16 %v5083
        %v5367 = vunpack.c.l.b16 %v5084
        %v5368 = vunpack.c.h.b16 %v5084
        %v5369 = vunpack.c.l.b16 %v5085
        %v5370 = vunpack.c.h.b16 %v5085
        %v5371 = vunpack.c.l.b16 %v5086
        %v5372 = vunpack.c.h.b16 %v5086
        %v5373 = vunpack.c.l.b16 %v5087
        %v5374 = vunpack.c.h.b16 %v5087
        %v5375 = vunpack.c.l.b16 %v5088
        %v5376 = vunpack.c.h.b16 %v5088
        %v5377 = vunpack.c.l.b16 %v5089
        %v5378 = vunpack.c.h.b16 %v5089
        %v5379 = vunpack.c.l.b16 %v5090
        %v5380 = vunpack.c.h.b16 %v5090
        %v5381 = vunpack.c.l.b16 %v5091
        %v5382 = vunpack.c.h.b16 %v5091
        %v5383 = vunpack.c.l.b16 %v5092
        %v5384 = vunpack.c.h.b16 %v5092
        %v5385 = vunpack.c.l.b16 %v5093
        %v5386 = vunpack.c.h.b16 %v5093
        %v5387 = vunpack.c.l.b16 %v5094
        %v5388 = vunpack.c.h.b16 %v5094
        %v5389 = vunpack.c.l.b16 %v5095
        %v5390 = vunpack.c.h.b16 %v5095
        %v5391 = vunpack.c.l.b16 %v5096
        %v5392 = vunpack.c.h.b16 %v5096
        %v5393 = vunpack.c.l.b16 %v5097
        %v5394 = vunpack.c.h.b16 %v5097
        %v5395 = vunpack.c.l.b16 %v5098
        %v5396 = vunpack.c.h.b16 %v5098
        %v5397 = vunpack.c.l.b16 %v5099
        %v5398 = vunpack.c.h.b16 %v5099
        %v5399 = vunpack.c.l.b16 %v5100
        %v5400 = vunpack.c.h.b16 %v5100
        %v5401 = vunpack.c.l.b16 %v5101
        %v5402 = vunpack.c.h.b16 %v5101
        %v5403 = vunpack.c.l.b16 %v5102
        %v5404 = vunpack.c.h.b16 %v5102
        %v5405 = vunpack.c.l.b16 %v5103
        %v5406 = vunpack.c.h.b16 %v5103
        %v5407 = vunpack.c.l.b16 %v5104
        %v5408 = vunpack.c.h.b16 %v5104
        %v5409 = vunpack.c.l.b16 %v5105
        %v5410 = vunpack.c.h.b16 %v5105
        %v5411 = vunpack.c.l.b16 %v5106
        %v5412 = vunpack.c.h.b16 %v5106
        %v5413 = vunpack.c.l.b16 %v5107
        %v5414 = vunpack.c.h.b16 %v5107
        %v5415 = vunpack.c.l.b16 %v5108
        %v5416 = vunpack.c.h.b16 %v5108
        %v5417 = vunpack.c.l.b16 %v5109
        %v5418 = vunpack.c.h.b16 %v5109
        %v5419 = vunpack.c.l.b16 %v5110
        %v5420 = vunpack.c.h.b16 %v5110
        %v5421 = vunpack.c.l.b16 %v5111
        %v5422 = vunpack.c.h.b16 %v5111
        %v5423 = vunpack.c.l.b16 %v5112
        %v5424 = vunpack.c.h.b16 %v5112
        %v5425 = vunpack.c.l.b16 %v5113
        %v5426 = vunpack.c.h.b16 %v5113
        %v5427 = vunpack.c.l.b16 %v5114
        %v5428 = vunpack.c.h.b16 %v5114
        %v5429 = vunpack.c.l.b16 %v5115
        %v5430 = vunpack.c.h.b16 %v5115
        %v5431 = vunpack.c.l.b16 %v5116
        %v5432 = vunpack.c.h.b16 %v5116
        %v5433 = vunpack.c.l.b16 %v5117
        %v5434 = vunpack.c.h.b16 %v5117
        %v5435 = vunpack.c.l.b16 %v5118
        %v5436 = vunpack.c.h.b16 %v5118
        %v5437 = vunpack.c.l.b16 %v5119
        %v5438 = vunpack.c.h.b16 %v5119
        %v5439 = vunpack.c.l.b16 %v5120
        %v5440 = vunpack.c.h.b16 %v5120
        %v5441 = vunpack.c.l.b16 %v5121
        %v5442 = vunpack.c.h.b16 %v5121
        %v5443 = vunpack.c.l.b16 %v5122
        %v5444 = vunpack.c.h.b16 %v5122
        %v5445 = vunpack.c.l.b16 %v5123
        %v5446 = vunpack.c.h.b16 %v5123
        %v5447 = vunpack.c.l.b16 %v5124
        %v5448 = vunpack.c.h.b16 %v5124
        %v5449 = vunpack.c.l.b16 %v5125
        %v5450 = vunpack.c.h.b16 %v5125
        %v5451 = vunpack.c.l.b16 %v5126
        %v5452 = vunpack.c.h.b16 %v5126
        %v5453 = vunpack.c.l.b16 %v5127
        %v5454 = vunpack.c.h.b16 %v5127
        %v5455 = vunpack.c.l.b16 %v5128
        %v5456 = vunpack.c.h.b16 %v5128
        %v5457 = vunpack.c.l.b16 %v5129
        %v5458 = vunpack.c.h.b16 %v5129
        %v5459 = vunpack.c.l.b16 %v5130
        %v5460 = vunpack.c.h.b16 %v5130
        %v5461 = vunpack.c.l.b16 %v5131
        %v5462 = vunpack.c.h.b16 %v5131
        %v5463 = vunpack.c.l.b16 %v5132
        %v5464 = vunpack.c.h.b16 %v5132
        %v5465 = vunpack.c.l.b16 %v5133
        %v5466 = vunpack.c.h.b16 %v5133
        %v5467 = vunpack.c.l.b16 %v5134
        %v5468 = vunpack.c.h.b16 %v5134
        %v5469 = vunpack.c.l.b16 %v5135
        %v5470 = vunpack.c.h.b16 %v5135
        %v5471 = vunpack.c.l.b16 %v5136
        %v5472 = vunpack.c.h.b16 %v5136
        %v5473 = vunpack.c.l.b16 %v5137
        %v5474 = vunpack.c.h.b16 %v5137
        %v5475 = vunpack.c.l.b16 %v5138
        %v5476 = vunpack.c.h.b16 %v5138
        %v5477 = vunpack.c.l.b16 %v5139
        %v5478 = vunpack.c.h.b16 %v5139
        %v5479 = vunpack.c.l.b16 %v5140
        %v5480 = vunpack.c.h.b16 %v5140
        %v5481 = vunpack.c.l.b16 %v5141
        %v5482 = vunpack.c.h.b16 %v5141
        %v5483 = vunpack.c.l.b16 %v5142
        %v5484 = vunpack.c.h.b16 %v5142
        %v5485 = vunpack.c.l.b16 %v5143
        %v5486 = vunpack.c.h.b16 %v5143
        %v5487 = vunpack.c.l.b16 %v5144
        %v5488 = vunpack.c.h.b16 %v5144
        %v5489 = vunpack.c.l.b16 %v5145
        %v5490 = vunpack.c.h.b16 %v5145
        %v5491 = vunpack.c.l.b16 %v5146
        %v5492 = vunpack.c.h.b16 %v5146
        %v5493 = vunpack.c.l.b16 %v5147
        %v5494 = vunpack.c.h.b16 %v5147
        %v5495 = vunpack.c.l.b16 %v5148
        %v5496 = vunpack.c.h.b16 %v5148
        %v5497 = vunpack.c.l.b16 %v5149
        %v5498 = vunpack.c.h.b16 %v5149
        %v5499 = vunpack.c.l.b16 %v5150
        %v5500 = vunpack.c.h.b16 %v5150
        %v5501 = vunpack.c.l.b16 %v5151
        %v5502 = vunpack.c.h.b16 %v5151
        %v5503 = vunpack.c.l.b16 %v5152
        %v5504 = vunpack.c.h.b16 %v5152
        %v5505 = vunpack.c.l.b16 %v5153
        %v5506 = vunpack.c.h.b16 %v5153
        %v5507 = vunpack.c.l.b16 %v5154
        %v5508 = vunpack.c.h.b16 %v5154
        %v5509 = vunpack.c.l.b16 %v5155
        %v5510 = vunpack.c.h.b16 %v5155
        %v5511 = vunpack.c.l.b16 %v5156
        %v5512 = vunpack.c.h.b16 %v5156
        %v5513 = vunpack.c.l.b16 %v5157
        %v5514 = vunpack.c.h.b16 %v5157
        %v5515 = vunpack.c.l.b16 %v5158
        %v5516 = vunpack.c.h.b16 %v5158
        %v5517 = vunpack.c.l.b16 %v5159
        %v5518 = vunpack.c.h.b16 %v5159
        %v5519 = vunpack.c.l.b16 %v5160
        %v5520 = vunpack.c.h.b16 %v5160
        %v5521 = vunpack.c.l.b16 %v5161
        %v5522 = vunpack.c.h.b16 %v5161
        %v5523 = vunpack.c.l.b16 %v5162
        %v5524 = vunpack.c.h.b16 %v5162
        %v5525 = vunpack.c.l.b16 %v5163
        %v5526 = vunpack.c.h.b16 %v5163
        %v5527 = vunpack.c.l.b16 %v5164
        %v5528 = vunpack.c.h.b16 %v5164
        %v5529 = vunpack.c.l.b16 %v5165
        %v5530 = vunpack.c.h.b16 %v5165
        %v5531 = vunpack.c.l.b16 %v5166
        %v5532 = vunpack.c.h.b16 %v5166
        %v5533 = vunpack.c.l.b16 %v5167
        %v5534 = vunpack.c.h.b16 %v5167
        %v5535 = vunpack.c.l.b16 %v5168
        %v5536 = vunpack.c.h.b16 %v5168
        %v5537 = vunpack.c.l.b16 %v5169
        %v5538 = vunpack.c.h.b16 %v5169
        %v5539 = vunpack.c.l.b16 %v5170
        %v5540 = vunpack.c.h.b16 %v5170
        %v5541 = vunpack.c.l.b16 %v5171
        %v5542 = vunpack.c.h.b16 %v5171
        %v5543 = vunpack.c.l.b16 %v5172
        %v5544 = vunpack.c.h.b16 %v5172
        %v5545 = vunpack.c.l.b16 %v5173
        %v5546 = vunpack.c.h.b16 %v5173
        %v5547 = vunpack.c.l.b16 %v5174
        %v5548 = vunpack.c.h.b16 %v5174
        %v5549 = vunpack.c.l.b16 %v5175
        %v5550 = vunpack.c.h.b16 %v5175
        %v5551 = vunpack.c.l.b16 %v5176
        %v5552 = vunpack.c.h.b16 %v5176
        %v5553 = vunpack.c.l.b16 %v5177
        %v5554 = vunpack.c.h.b16 %v5177
        %v5555 = vunpack.c.l.b16 %v5178
        %v5556 = vunpack.c.h.b16 %v5178
        %v5557 = vunpack.c.l.b16 %v5179
        %v5558 = vunpack.c.h.b16 %v5179
        %v5559 = vunpack.c.l.b16 %v5180
        %v5560 = vunpack.c.h.b16 %v5180
        %v5561 = vunpack.c.l.b16 %v5181
        %v5562 = vunpack.c.h.b16 %v5181
        %v5563 = vunpack.c.l.b16 %v5182
        %v5564 = vunpack.c.h.b16 %v5182
        %v5565 = vunpack.c.l.b16 %v5183
        %v5566 = vunpack.c.h.b16 %v5183
        %v5567 = vunpack.c.l.b16 %v5184
        %v5568 = vunpack.c.h.b16 %v5184
        %v5569 = vunpack.c.l.b16 %v5185
        %v5570 = vunpack.c.h.b16 %v5185
        %v5571 = vunpack.c.l.b16 %v5186
        %v5572 = vunpack.c.h.b16 %v5186
        %v5573 = vunpack.c.l.b16 %v5187
        %v5574 = vunpack.c.h.b16 %v5187
        %v5575 = vunpack.c.l.b16 %v5188
        %v5576 = vunpack.c.h.b16 %v5188
        %v5577 = vunpack.c.l.b16 %v5189
        %v5578 = vunpack.c.h.b16 %v5189
        %v5579 = vunpack.c.l.b16 %v5190
        %v5580 = vunpack.c.h.b16 %v5190
        %v5581 = vunpack.c.l.b16 %v5191
        %v5582 = vunpack.c.h.b16 %v5191
        %v5583 = vunpack.c.l.b16 %v5192
        %v5584 = vunpack.c.h.b16 %v5192
        %v5585 = vunpack.c.l.b16 %v5193
        %v5586 = vunpack.c.h.b16 %v5193
        %v5587 = vunpack.c.l.b16 %v5194
        %v5588 = vunpack.c.h.b16 %v5194
        %v5589 = vunpack.c.l.b16 %v5195
        %v5590 = vunpack.c.h.b16 %v5195
        %v5591 = vunpack.c.l.b16 %v5196
        %v5592 = vunpack.c.h.b16 %v5196
        %v5593 = vpack.c.b16 %v5339, %v5337
        %v5594 = vpack.c.b16 %v5340, %v5338
        %v5595 = vpack.c.b16 %v5343, %v5341
        %v5596 = vpack.c.b16 %v5344, %v5342
        %v5597 = vpack.c.b16 %v5347, %v5345
        %v5598 = vpack.c.b16 %v5348, %v5346
        %v5599 = vpack.c.b16 %v5351, %v5349
        %v5600 = vpack.c.b16 %v5352, %v5350
        %v5601 = vpack.c.b16 %v5355, %v5353
        %v5602 = vpack.c.b16 %v5356, %v5354
        %v5603 = vpack.c.b16 %v5359, %v5357
        %v5604 = vpack.c.b16 %v5360, %v5358
        %v5605 = vpack.c.b16 %v5363, %v5361
        %v5606 = vpack.c.b16 %v5364, %v5362
        %v5607 = vpack.c.b16 %v5367, %v5365
        %v5608 = vpack.c.b16 %v5368, %v5366
        %v5609 = vpack.c.b16 %v5371, %v5369
        %v5610 = vpack.c.b16 %v5372, %v5370
        %v5611 = vpack.c.b16 %v5375, %v5373
        %v5612 = vpack.c.b16 %v5376, %v5374
        %v5613 = vpack.c.b16 %v5379, %v5377
        %v5614 = vpack.c.b16 %v5380, %v5378
        %v5615 = vpack.c.b16 %v5383, %v5381
        %v5616 = vpack.c.b16 %v5384, %v5382
        %v5617 = vpack.c.b16 %v5387, %v5385
        %v5618 = vpack.c.b16 %v5388, %v5386
        %v5619 = vpack.c.b16 %v5391, %v5389
        %v5620 = vpack.c.b16 %v5392, %v5390
        %v5621 = vpack.c.b16 %v5395, %v5393
        %v5622 = vpack.c.b16 %v5396, %v5394
        %v5623 = vpack.c.b16 %v5399, %v5397
        %v5624 = vpack.c.b16 %v5400, %v5398
        %v5625 = vpack.c.b16 %v5403, %v5401
        %v5626 = vpack.c.b16 %v5404, %v5402
        %v5627 = vpack.c.b16 %v5407, %v5405
        %v5628 = vpack.c.b16 %v5408, %v5406
        %v5629 = vpack.c.b16 %v5411, %v5409
        %v5630 = vpack.c.b16 %v5412, %v5410
        %v5631 = vpack.c.b16 %v5415, %v5413
        %v5632 = vpack.c.b16 %v5416, %v5414
        %v5633 = vpack.c.b16 %v5419, %v5417
        %v5634 = vpack.c.b16 %v5420, %v5418
        %v5635 = vpack.c.b16 %v5423, %v5421
        %v5636 = vpack.c.b16 %v5424, %v5422
        %v5637 = vpack.c.b16 %v5427, %v5425
        %v5638 = vpack.c.b16 %v5428, %v5426
        %v5639 = vpack.c.b16 %v5431, %v5429
        %v5640 = vpack.c.b16 %v5432, %v5430
        %v5641 = vpack.c.b16 %v5435, %v5433
        %v5642 = vpack.c.b16 %v5436, %v5434
        %v5643 = vpack.c.b16 %v5439, %v5437
        %v5644 = vpack.c.b16 %v5440, %v5438
        %v5645 = vpack.c.b16 %v5443, %v5441
        %v5646 = vpack.c.b16 %v5444, %v5442
        %v5647 = vpack.c.b16 %v5447, %v5445
        %v5648 = vpack.c.b16 %v5448, %v5446
        %v5649 = vpack.c.b16 %v5451, %v5449
        %v5650 = vpack.c.b16 %v5452, %v5450
        %v5651 = vpack.c.b16 %v5455, %v5453
        %v5652 = vpack.c.b16 %v5456, %v5454
        %v5653 = vpack.c.b16 %v5459, %v5457
        %v5654 = vpack.c.b16 %v5460, %v5458
        %v5655 = vpack.c.b16 %v5463, %v5461
        %v5656 = vpack.c.b16 %v5464, %v5462
        %v5657 = vpack.c.b16 %v5467, %v5465
        %v5658 = vpack.c.b16 %v5468, %v5466
        %v5659 = vpack.c.b16 %v5471, %v5469
        %v5660 = vpack.c.b16 %v5472, %v5470
        %v5661 = vpack.c.b16 %v5475, %v5473
        %v5662 = vpack.c.b16 %v5476, %v5474
        %v5663 = vpack.c.b16 %v5479, %v5477
        %v5664 = vpack.c.b16 %v5480, %v5478
        %v5665 = vpack.c.b16 %v5483, %v5481
        %v5666 = vpack.c.b16 %v5484, %v5482
        %v5667 = vpack.c.b16 %v5487, %v5485
        %v5668 = vpack.c.b16 %v5488, %v5486
        %v5669 = vpack.c.b16 %v5491, %v5489
        %v5670 = vpack.c.b16 %v5492, %v5490
        %v5671 = vpack.c.b16 %v5495, %v5493
        %v5672 = vpack.c.b16 %v5496, %v5494
        %v5673 = vpack.c.b16 %v5499, %v5497
        %v5674 = vpack.c.b16 %v5500, %v5498
        %v5675 = vpack.c.b16 %v5503, %v5501
        %v5676 = vpack.c.b16 %v5504, %v5502
        %v5677 = vpack.c.b16 %v5507, %v5505
        %v5678 = vpack.c.b16 %v5508, %v5506
        %v5679 = vpack.c.b16 %v5511, %v5509
        %v5680 = vpack.c.b16 %v5512, %v5510
        %v5681 = vpack.c.b16 %v5515, %v5513
        %v5682 = vpack.c.b16 %v5516, %v5514
        %v5683 = vpack.c.b16 %v5519, %v5517
        %v5684 = vpack.c.b16 %v5520, %v5518
        %v5685 = vpack.c.b16 %v5523, %v5521
        %v5686 = vpack.c.b16 %v5524, %v5522
        %v5687 = vpack.c.b16 %v5527, %v5525
        %v5688 = vpack.c.b16 %v5528, %v5526
        %v5689 = vpack.c.b16 %v5531, %v5529
        %v5690 = vpack.c.b16 %v5532, %v5530
        %v5691 = vpack.c.b16 %v5535, %v5533
        %v5692 = vpack.c.b16 %v5536, %v5534
        %v5693 = vpack.c.b16 %v5539, %v5537
        %v5694 = vpack.c.b16 %v5540, %v5538
        %v5695 = vpack.c.b16 %v5543, %v5541
        %v5696 = vpack.c.b16 %v5544, %v5542
        %v5697 = vpack.c.b16 %v5547, %v5545
        %v5698 = vpack.c.b16 %v5548, %v5546
        %v5699 = vpack.c.b16 %v5551, %v5549
        %v5700 = vpack.c.b16 %v5552, %v5550
        %v5701 = vpack.c.b16 %v5555, %v5553
        %v5702 = vpack.c.b16 %v5556, %v5554
        %v5703 = vpack.c.b16 %v5559, %v5557
        %v5704 = vpack.c.b16 %v5560, %v5558
        %v5705 = vpack.c.b16 %v5563, %v5561
        %v5706 = vpack.c.b16 %v5564, %v5562
        %v5707 = vpack.c.b16 %v5567, %v5565
        %v5708 = vpack.c.b16 %v5568, %v5566
        %v5709 = vpack.c.b16 %v5571, %v5569
        %v5710 = vpack.c.b16 %v5572, %v5570
        %v5711 = vpack.c.b16 %v5575, %v5573
        %v5712 = vpack.c.b16 %v5576, %v5574
        %v5713 = vpack.c.b16 %v5579, %v5577
        %v5714 = vpack.c.b16 %v5580, %v5578
        %v5715 = vpack.c.b16 %v5583, %v5581
        %v5716 = vpack.c.b16 %v5584, %v5582
        %v5717 = vpack.c.b16 %v5587, %v5585
        %v5718 = vpack.c.b16 %v5588, %v5586
        %v5719 = vpack.c.b16 %v5591, %v5589
        %v5720 = vpack.c.b16 %v5592, %v5590
        %5849 = vmatprep.subr.bf16.mxu0 %v5594
        %5850 = vmatpush1.bf16.msra.mxu0 %v5593
        %5851 = vmatprep.subr.bf16.mxu0 %v5596
        %5852 = vmatpush1.bf16.msra.mxu0 %v5595
        %5853 = vmatprep.subr.bf16.mxu0 %v5598
        %5854 = vmatpush1.bf16.msra.mxu0 %v5597
        %5855 = vmatprep.subr.bf16.mxu0 %v5600
        %5856 = vmatpush1.bf16.msra.mxu0 %v5599
        %5857 = vmatprep.subr.bf16.mxu0 %v5602
        %5858 = vmatpush1.bf16.msra.mxu0 %v5601
        %5859 = vmatprep.subr.bf16.mxu0 %v5604
        %5860 = vmatpush1.bf16.msra.mxu0 %v5603
        %5861 = vmatprep.subr.bf16.mxu0 %v5606
        %5862 = vmatpush1.bf16.msra.mxu0 %v5605
        %5863 = vmatprep.subr.bf16.mxu0 %v5608
        %5864 = vmatpush1.bf16.msra.mxu0 %v5607
        %5865 = vmatprep.subr.bf16.mxu0 %v5610
        %5866 = vmatpush1.bf16.msra.mxu0 %v5609
        %5867 = vmatprep.subr.bf16.mxu0 %v5612
        %5868 = vmatpush1.bf16.msra.mxu0 %v5611
        %5869 = vmatprep.subr.bf16.mxu0 %v5614
        %5870 = vmatpush1.bf16.msra.mxu0 %v5613
        %5871 = vmatprep.subr.bf16.mxu0 %v5616
        %5872 = vmatpush1.bf16.msra.mxu0 %v5615
        %5873 = vmatprep.subr.bf16.mxu0 %v5618
        %5874 = vmatpush1.bf16.msra.mxu0 %v5617
        %5875 = vmatprep.subr.bf16.mxu0 %v5620
        %5876 = vmatpush1.bf16.msra.mxu0 %v5619
        %5877 = vmatprep.subr.bf16.mxu0 %v5622
        %5878 = vmatpush1.bf16.msra.mxu0 %v5621
        %5879 = vmatprep.subr.bf16.mxu0 %v5624
        %5880 = vmatpush1.bf16.msra.mxu0 %v5623
        %5881 = vmatprep.mubr.bf16.mxu0 %v5054
        %5882 = vmatmul.mubr.bf16.gmra.mrb[0].mxu0 %v5053
        %v5883 = vpop.f32.mrb[0].mxu0
        %v5884 = vadd.f32 %v5202, %v5883
        %v5885 = vpop.f32.mrb[0].mxu0
        %v5886 = vadd.f32 %v5206, %v5885
        %v5887 = vpop.f32.mrb[0].mxu0
        %v5888 = vadd.f32 %v5202, %v5887
        %v5889 = vpop.f32.mrb[0].mxu0
        %v5890 = vadd.f32 %v5206, %v5889
        %5891 = vmatprep.mubr.bf16.mxu0 %v5062
        %5892 = vmatmul.mubr.bf16.gmra.mrb[0].mxu0 %v5061
        %v5893 = vpop.f32.mrb[0].mxu0
        %v5894 = vadd.f32 %v5202, %v5893
        %v5895 = vpop.f32.mrb[0].mxu0
        %v5896 = vadd.f32 %v5206, %v5895
        %v5897 = vpop.f32.mrb[0].mxu0
        %v5898 = vpop.f32.mrb[0].mxu0
        %5899 = vdwg.mxu0
        %5900 = vmatprep.subr.bf16.mxu0 %v5626
        %5901 = vmatpush1.bf16.msra.mxu0 %v5625
        %5902 = vmatprep.subr.bf16.mxu0 %v5628
        %5903 = vmatpush1.bf16.msra.mxu0 %v5627
        %5904 = vmatprep.subr.bf16.mxu0 %v5630
        %5905 = vmatpush1.bf16.msra.mxu0 %v5629
        %5906 = vmatprep.subr.bf16.mxu0 %v5632
        %5907 = vmatpush1.bf16.msra.mxu0 %v5631
        %5908 = vmatprep.subr.bf16.mxu0 %v5634
        %5909 = vmatpush1.bf16.msra.mxu0 %v5633
        %5910 = vmatprep.subr.bf16.mxu0 %v5636
        %5911 = vmatpush1.bf16.msra.mxu0 %v5635
        %5912 = vmatprep.subr.bf16.mxu0 %v5638
        %5913 = vmatpush1.bf16.msra.mxu0 %v5637
        %5914 = vmatprep.subr.bf16.mxu0 %v5640
        %5915 = vmatpush1.bf16.msra.mxu0 %v5639
        %5916 = vmatprep.subr.bf16.mxu0 %v5642
        %5917 = vmatpush1.bf16.msra.mxu0 %v5641
        %5918 = vmatprep.subr.bf16.mxu0 %v5644
        %5919 = vmatpush1.bf16.msra.mxu0 %v5643
        %5920 = vmatprep.subr.bf16.mxu0 %v5646
        %5921 = vmatpush1.bf16.msra.mxu0 %v5645
        %5922 = vmatprep.subr.bf16.mxu0 %v5648
        %5923 = vmatpush1.bf16.msra.mxu0 %v5647
        %5924 = vmatprep.subr.bf16.mxu0 %v5650
        %5925 = vmatpush1.bf16.msra.mxu0 %v5649
        %5926 = vmatprep.subr.bf16.mxu0 %v5652
        %5927 = vmatpush1.bf16.msra.mxu0 %v5651
        %5928 = vmatprep.subr.bf16.mxu0 %v5654
        %5929 = vmatpush1.bf16.msra.mxu0 %v5653
        %5930 = vmatprep.subr.bf16.mxu0 %v5656
        %5931 = vmatpush1.bf16.msra.mxu0 %v5655
        %5932 = vmatprep.mubr.bf16.mxu0 %v5056
        %5933 = vmatmul.mubr.bf16.gmra.mrb[0].mxu0 %v5055
        %v5934 = vpop.f32.mrb[0].mxu0
        %v5935 = vadd.f32 %v5884, %v5934
        %v5936 = vpop.f32.mrb[0].mxu0
        %v5937 = vadd.f32 %v5886, %v5936
        %v5938 = vpop.f32.mrb[0].mxu0
        %v5939 = vadd.f32 %v5888, %v5938
        %v5940 = vpop.f32.mrb[0].mxu0
        %v5941 = vadd.f32 %v5890, %v5940
        %5942 = vmatprep.mubr.bf16.mxu0 %v5064
        %5943 = vmatmul.mubr.bf16.gmra.mrb[0].mxu0 %v5063
        %v5944 = vpop.f32.mrb[0].mxu0
        %v5945 = vadd.f32 %v5894, %v5944
        %v5946 = vpop.f32.mrb[0].mxu0
        %v5947 = vadd.f32 %v5896, %v5946
        %v5948 = vpop.f32.mrb[0].mxu0
        %v5949 = vpop.f32.mrb[0].mxu0
        %5950 = vdwg.mxu0
        %5951 = vmatprep.subr.bf16.mxu0 %v5658
        %5952 = vmatpush1.bf16.msra.mxu0 %v5657
        %5953 = vmatprep.subr.bf16.mxu0 %v5660
        %5954 = vmatpush1.bf16.msra.mxu0 %v5659
        %5955 = vmatprep.subr.bf16.mxu0 %v5662
        %5956 = vmatpush1.bf16.msra.mxu0 %v5661
        %5957 = vmatprep.subr.bf16.mxu0 %v5664
        %5958 = vmatpush1.bf16.msra.mxu0 %v5663
        %5959 = vmatprep.subr.bf16.mxu0 %v5666
        %5960 = vmatpush1.bf16.msra.mxu0 %v5665
        %5961 = vmatprep.subr.bf16.mxu0 %v5668
        %5962 = vmatpush1.bf16.msra.mxu0 %v5667
        %5963 = vmatprep.subr.bf16.mxu0 %v5670
        %5964 = vmatpush1.bf16.msra.mxu0 %v5669
        %5965 = vmatprep.subr.bf16.mxu0 %v5672
        %5966 = vmatpush1.bf16.msra.mxu0 %v5671
        %5967 = vmatprep.subr.bf16.mxu0 %v5674
        %5968 = vmatpush1.bf16.msra.mxu0 %v5673
        %5969 = vmatprep.subr.bf16.mxu0 %v5676
        %5970 = vmatpush1.bf16.msra.mxu0 %v5675
        %5971 = vmatprep.subr.bf16.mxu0 %v5678
        %5972 = vmatpush1.bf16.msra.mxu0 %v5677
        %5973 = vmatprep.subr.bf16.mxu0 %v5680
        %5974 = vmatpush1.bf16.msra.mxu0 %v5679
        %5975 = vmatprep.subr.bf16.mxu0 %v5682
        %5976 = vmatpush1.bf16.msra.mxu0 %v5681
        %5977 = vmatprep.subr.bf16.mxu0 %v5684
        %5978 = vmatpush1.bf16.msra.mxu0 %v5683
        %5979 = vmatprep.subr.bf16.mxu0 %v5686
        %5980 = vmatpush1.bf16.msra.mxu0 %v5685
        %5981 = vmatprep.subr.bf16.mxu0 %v5688
        %5982 = vmatpush1.bf16.msra.mxu0 %v5687
        %5983 = vmatprep.mubr.bf16.mxu0 %v5058
        %5984 = vmatmul.mubr.bf16.gmra.mrb[0].mxu0 %v5057
        %v5985 = vpop.f32.mrb[0].mxu0
        %v5986 = vadd.f32 %v5935, %v5985
        %v5987 = vpop.f32.mrb[0].mxu0
        %v5988 = vadd.f32 %v5937, %v5987
        %v5989 = vpop.f32.mrb[0].mxu0
        %v5990 = vadd.f32 %v5939, %v5989
        %v5991 = vpop.f32.mrb[0].mxu0
        %v5992 = vadd.f32 %v5941, %v5991
        %5993 = vmatprep.mubr.bf16.mxu0 %v5066
        %5994 = vmatmul.mubr.bf16.gmra.mrb[0].mxu0 %v5065
        %v5995 = vpop.f32.mrb[0].mxu0
        %v5996 = vadd.f32 %v5945, %v5995
        %v5997 = vpop.f32.mrb[0].mxu0
        %v5998 = vadd.f32 %v5947, %v5997
        %v5999 = vpop.f32.mrb[0].mxu0
        %v6000 = vpop.f32.mrb[0].mxu0
        %6001 = vdwg.mxu0
        %6002 = vmatprep.subr.bf16.mxu0 %v5690
        %6003 = vmatpush1.bf16.msra.mxu0 %v5689
        %6004 = vmatprep.subr.bf16.mxu0 %v5692
        %6005 = vmatpush1.bf16.msra.mxu0 %v5691
        %6006 = vmatprep.subr.bf16.mxu0 %v5694
        %6007 = vmatpush1.bf16.msra.mxu0 %v5693
        %6008 = vmatprep.subr.bf16.mxu0 %v5696
        %6009 = vmatpush1.bf16.msra.mxu0 %v5695
        %6010 = vmatprep.subr.bf16.mxu0 %v5698
        %6011 = vmatpush1.bf16.msra.mxu0 %v5697
        %6012 = vmatprep.subr.bf16.mxu0 %v5700
        %6013 = vmatpush1.bf16.msra.mxu0 %v5699
        %6014 = vmatprep.subr.bf16.mxu0 %v5702
        %6015 = vmatpush1.bf16.msra.mxu0 %v5701
        %6016 = vmatprep.subr.bf16.mxu0 %v5704
        %6017 = vmatpush1.bf16.msra.mxu0 %v5703
        %6018 = vmatprep.subr.bf16.mxu0 %v5706
        %6019 = vmatpush1.bf16.msra.mxu0 %v5705
        %6020 = vmatprep.subr.bf16.mxu0 %v5708
        %6021 = vmatpush1.bf16.msra.mxu0 %v5707
        %6022 = vmatprep.subr.bf16.mxu0 %v5710
        %6023 = vmatpush1.bf16.msra.mxu0 %v5709
        %6024 = vmatprep.subr.bf16.mxu0 %v5712
        %6025 = vmatpush1.bf16.msra.mxu0 %v5711
        %6026 = vmatprep.subr.bf16.mxu0 %v5714
        %6027 = vmatpush1.bf16.msra.mxu0 %v5713
        %6028 = vmatprep.subr.bf16.mxu0 %v5716
        %6029 = vmatpush1.bf16.msra.mxu0 %v5715
        %6030 = vmatprep.subr.bf16.mxu0 %v5718
        %6031 = vmatpush1.bf16.msra.mxu0 %v5717
        %6032 = vmatprep.subr.bf16.mxu0 %v5720
        %6033 = vmatpush1.bf16.msra.mxu0 %v5719
        %6034 = vmatprep.mubr.bf16.mxu0 %v5060
        %6035 = vmatmul.mubr.bf16.gmra.mrb[0].mxu0 %v5059
        %v6036 = vpop.f32.mrb[0].mxu0
        %v6037 = vadd.f32 %v5986, %v6036
        %v6038 = vpop.f32.mrb[0].mxu0
        %v6039 = vadd.f32 %v5988, %v6038
        %v6040 = vpop.f32.mrb[0].mxu0
        %v6041 = vadd.f32 %v5990, %v6040
        %v6042 = vpop.f32.mrb[0].mxu0
        %v6043 = vadd.f32 %v5992, %v6042
        %6044 = vmatprep.mubr.bf16.mxu0 %v5068
        %6045 = vmatmul.mubr.bf16.gmra.mrb[0].mxu0 %v5067
        %v6046 = vpop.f32.mrb[0].mxu0
        %v6047 = vadd.f32 %v5996, %v6046
        %v6048 = vpop.f32.mrb[0].mxu0
        %v6049 = vadd.f32 %v5998, %v6048
        %v6050 = vpop.f32.mrb[0].mxu0
        %v6051 = vpop.f32.mrb[0].mxu0
        %6052 = vdwg.mxu0
        %v6053 = vadd.f32 %v3725, %v6037
        %v6054 = vadd.f32 %v3726, %v6039
        %v6055 = vadd.f32 %v3727, %v6041
        %v6056 = vadd.f32 %v3728, %v6043
        %v6057 = vadd.f32 %v3729, %v6047
        %v6058 = vadd.f32 %v3730, %v6049
        %6059 = vst [vmem:[#allocation2] sm:$0xff] %v6053
        %6060 = vst [vmem:[#allocation2 + $0x8] sm:$0xff] %v6054
        %6061 = vst [vmem:[#allocation2 + $0x10] sm:$0xff] %v6055
        %6062 = vst [vmem:[#allocation2 + $0x18] sm:$0xff] %v6056
        %6063 = vst [vmem:[#allocation2 + $0x20] sm:$0x1] %v6057
        %6064 = vst [vmem:[#allocation2 + $0x28] sm:$0x1] %v6058
        %p6065 = scmp.eq.s32.totalorder %s39, 1
        // Predicated region
        $region157: #{vit_forward.1} parent=103 // pred_check
          %p6066 = pneg %p6065
        $region158: #{vit_forward.1} parent=103 // pred_check_branch
          %6068 = sbr.rel (%p6066) target = $region160
        $region159: #{vit_forward.1} parent=103 // pred_region
          %v6069 = vld [vmem:[%s17] sm:$0x3]
          %v6070 = vld [vmem:[%s18] sm:$0x3]
          %vm6071 = vcmask 1047553
          %v6072 = vsel %vm6071, %v6053, 0.0
          %v6073 = vsel %vm6071, %v6054, 0.0
          %v6074 = vadd.f32 %v6072, %v6073
          %6075 = vadd.xlane.f32.xlu0 %v6074
          %v6076 = vpop.xlane.xlu0 %6075
          %v6077 = vadd.f32 %v6055, %v6056
          %6078 = vadd.xlane.f32.xlu0 %v6077
          %v6079 = vpop.xlane.xlu0 %6078
          %v6080 = vsel %vm1274, %v6057, 0.0
          %v6081 = vsel %vm1274, %v6058, 0.0
          %v6082 = vadd.f32 %v6080, %v6081
          %6083 = vadd.xlane.f32.xlu0 %v6082
          %v6084 = vpop.xlane.xlu0 %6083
          %v6085 = vmul.f32 %v6076, %v1280
          %v6086 = vmul.f32 %v6079, %v1280
          %v6087 = vmul.f32 %v6084, %v1280
          %v6088 = vsub.f32 %v6053, %v6085
          %v6089 = vsub.f32 %v6054, %v6085
          %v6090 = vsub.f32 %v6055, %v6086
          %v6091 = vsub.f32 %v6056, %v6086
          %v6092 = vsub.f32 %v6057, %v6087
          %v6093 = vsub.f32 %v6058, %v6087
          %v6094 = vmul.f32 %v6088, %v6088
          %v6095 = vmul.f32 %v6089, %v6089
          %v6096 = vmul.f32 %v6090, %v6090
          %v6097 = vmul.f32 %v6091, %v6091
          %v6098 = vmul.f32 %v6092, %v6092
          %v6099 = vmul.f32 %v6093, %v6093
          %v6100 = vsel %vm6071, %v6094, 0.0
          %v6101 = vsel %vm6071, %v6095, 0.0
          %v6102 = vadd.f32 %v6100, %v6101
          %6103 = vadd.xlane.f32.xlu0 %v6102
          %v6104 = vpop.xlane.xlu0 %6103
          %v6105 = vadd.f32 %v6096, %v6097
          %6106 = vadd.xlane.f32.xlu0 %v6105
          %v6107 = vpop.xlane.xlu0 %6106
          %v6108 = vsel %vm1274, %v6098, 0.0
          %v6109 = vsel %vm1274, %v6099, 0.0
          %v6110 = vadd.f32 %v6108, %v6109
          %6111 = vadd.xlane.f32.xlu0 %v6110
          %v6112 = vpop.xlane.xlu0 %6111
          %v6113 = vmul.f32 %v6104, %v1280
          %v6114 = vmul.f32 %v6107, %v1280
          %v6115 = vmul.f32 %v6112, %v1280
          %v6116 = vadd.f32 %v6113, 1e-05
          %v6117 = vadd.f32 %v6114, 1e-05
          %v6118 = vadd.f32 %v6115, 1e-05
          %v6119 = vrsqrt.pop %v6116
          %v6120 = vrsqrt.pop %v6117
          %v6121 = vrsqrt.pop %v6118
          %v6122 = vmul.f32 %v6088, %v6119
          %v6123 = vmul.f32 %v6089, %v6119
          %v6124 = vmul.f32 %v6090, %v6120
          %v6125 = vmul.f32 %v6091, %v6120
          %v6126 = vmul.f32 %v6092, %v6121
          %v6127 = vmul.f32 %v6093, %v6121
          %v6129 = vlaneseq
          %v6130 = vshrl.u32 %v6129, 7
          %v6131 = vsub.s32 0, %v6130
          %v6132 = vrot.slane %v6069, %v6131
          %v6133 = vlaneseq
          %v6134 = vshrl.u32 %v6133, 7
          %v6135 = vsub.s32 1, %v6134
          %v6136 = vrot.slane %v6069, %v6135
          %v6139 = vmul.f32 %v6122, %v6132
          %v6140 = vmul.f32 %v6123, %v6136
          %v6141 = vmul.f32 %v6124, %v6132
          %v6142 = vmul.f32 %v6125, %v6136
          %v6143 = vmul.f32 %v6126, %v6132
          %v6144 = vmul.f32 %v6127, %v6136
          %v6146 = vlaneseq
          %v6147 = vshrl.u32 %v6146, 7
          %v6148 = vsub.s32 0, %v6147
          %v6149 = vrot.slane %v6070, %v6148
          %v6150 = vlaneseq
          %v6151 = vshrl.u32 %v6150, 7
          %v6152 = vsub.s32 1, %v6151
          %v6153 = vrot.slane %v6070, %v6152
          %v6156 = vadd.f32 %v6139, %v6149
          %v6157 = vadd.f32 %v6140, %v6153
          %v6158 = vadd.f32 %v6141, %v6149
          %v6159 = vadd.f32 %v6142, %v6153
          %v6160 = vadd.f32 %v6143, %v6149
          %v6161 = vadd.f32 %v6144, %v6153
          %v6162 = vpack.c.bf16 %v6158, %v6156
          %v6163 = vpack.c.bf16 %v6159, %v6157
          %v6164 = vpack.c.bf16 %v6160, %v6160
          %v6165 = vpack.c.bf16 %v6161, %v6161
          %v6166 = vld [vmem:[%s19] sm:$0xf]
          %v6167 = vld [vmem:[%s19 + $0x4] sm:$0xf]
          %v6168 = vld [vmem:[%s19 + $0x8] sm:$0xf]
          %v6169 = vld [vmem:[%s19 + $0xc] sm:$0xf]
          %v6170 = vld [vmem:[%s19 + $0x10] sm:$0xf]
          %v6171 = vld [vmem:[%s19 + $0x14] sm:$0xf]
          %v6172 = vld [vmem:[%s19 + $0x18] sm:$0xf]
          %v6173 = vld [vmem:[%s19 + $0x1c] sm:$0xf]
          %v6174 = vld [vmem:[%s19 + $0x20] sm:$0xf]
          %v6175 = vld [vmem:[%s19 + $0x24] sm:$0xf]
          %v6176 = vld [vmem:[%s19 + $0x28] sm:$0xf]
          %v6177 = vld [vmem:[%s19 + $0x2c] sm:$0xf]
          %v6178 = vld [vmem:[%s19 + $0x30] sm:$0xf]
          %v6179 = vld [vmem:[%s19 + $0x34] sm:$0xf]
          %v6180 = vld [vmem:[%s19 + $0x38] sm:$0xf]
          %v6181 = vld [vmem:[%s19 + $0x3c] sm:$0xf]
          %v6182 = vld [vmem:[%s19 + $0x40] sm:$0xf]
          %v6183 = vld [vmem:[%s19 + $0x44] sm:$0xf]
          %v6184 = vld [vmem:[%s19 + $0x48] sm:$0xf]
          %v6185 = vld [vmem:[%s19 + $0x4c] sm:$0xf]
          %v6186 = vld [vmem:[%s19 + $0x50] sm:$0xf]
          %v6187 = vld [vmem:[%s19 + $0x54] sm:$0xf]
          %v6188 = vld [vmem:[%s19 + $0x58] sm:$0xf]
          %v6189 = vld [vmem:[%s19 + $0x5c] sm:$0xf]
          %v6190 = vld [vmem:[%s19 + $0x60] sm:$0xf]
          %v6191 = vld [vmem:[%s19 + $0x64] sm:$0xf]
          %v6192 = vld [vmem:[%s19 + $0x68] sm:$0xf]
          %v6193 = vld [vmem:[%s19 + $0x6c] sm:$0xf]
          %v6194 = vld [vmem:[%s19 + $0x70] sm:$0xf]
          %v6195 = vld [vmem:[%s19 + $0x74] sm:$0xf]
          %v6196 = vld [vmem:[%s19 + $0x78] sm:$0xf]
          %v6197 = vld [vmem:[%s19 + $0x7c] sm:$0xf]
          %v6198 = vld [vmem:[%s20] sm:$0x1]
          %v6200 = vlaneseq
          %v6201 = vshrl.u32 %v6200, 7
          %v6202 = vsub.s32 0, %v6201
          %v6203 = vrot.slane %v6198, %v6202
          %vm6205 = vsmask.f32 7424
          %v6207 = vshrl.u32 %v6162, 16
          %v6209 = vshll.u32 %v6162, 16
          %v6211 = vrot.slane %v6209, 1
          %v6212 = vor.u32 %v6207, %v6211
          %v6214 = vshll.u32 %v6164, 16
          %v6216 = vrot.slane %v6214, 1
          %v6217 = vsel %vm6205, %v6212, %v6216
          %v6219 = vshrl.u32 %v6163, 16
          %v6221 = vshll.u32 %v6163, 16
          %v6223 = vrot.slane %v6221, 1
          %v6224 = vor.u32 %v6219, %v6223
          %v6226 = vshll.u32 %v6165, 16
          %v6228 = vrot.slane %v6226, 1
          %v6229 = vsel %vm6205, %v6224, %v6228
          %v6264 = vunpack.c.l.b16 %v6166
          %v6265 = vunpack.c.l.b16 %v6167
          %v6266 = vunpack.c.l.b16 %v6168
          %v6267 = vunpack.c.l.b16 %v6169
          %v6268 = vunpack.c.l.b16 %v6170
          %v6269 = vunpack.c.l.b16 %v6171
          %v6270 = vunpack.c.l.b16 %v6172
          %v6271 = vunpack.c.l.b16 %v6173
          %v6272 = vunpack.c.l.b16 %v6174
          %v6273 = vunpack.c.l.b16 %v6175
          %v6274 = vunpack.c.l.b16 %v6176
          %v6275 = vunpack.c.l.b16 %v6177
          %v6276 = vunpack.c.l.b16 %v6178
          %v6277 = vunpack.c.l.b16 %v6179
          %v6278 = vunpack.c.l.b16 %v6180
          %v6279 = vunpack.c.l.b16 %v6181
          %v6280 = vunpack.c.l.b16 %v6182
          %v6281 = vunpack.c.l.b16 %v6183
          %v6282 = vunpack.c.l.b16 %v6184
          %v6283 = vunpack.c.l.b16 %v6185
          %v6284 = vunpack.c.l.b16 %v6186
          %v6285 = vunpack.c.l.b16 %v6187
          %v6286 = vunpack.c.l.b16 %v6188
          %v6287 = vunpack.c.l.b16 %v6189
          %v6288 = vunpack.c.l.b16 %v6190
          %v6289 = vunpack.c.l.b16 %v6191
          %v6290 = vunpack.c.l.b16 %v6192
          %v6291 = vunpack.c.l.b16 %v6193
          %v6292 = vunpack.c.l.b16 %v6194
          %v6293 = vunpack.c.l.b16 %v6195
          %v6294 = vunpack.c.l.b16 %v6196
          %v6295 = vunpack.c.l.b16 %v6197
          %v6296 = vpack.c.b16 %v6265, %v6264
          %v6297 = vpack.c.b16 %v6267, %v6266
          %v6298 = vpack.c.b16 %v6269, %v6268
          %v6299 = vpack.c.b16 %v6271, %v6270
          %v6300 = vpack.c.b16 %v6273, %v6272
          %v6301 = vpack.c.b16 %v6275, %v6274
          %v6302 = vpack.c.b16 %v6277, %v6276
          %v6303 = vpack.c.b16 %v6279, %v6278
          %v6304 = vpack.c.b16 %v6281, %v6280
          %v6305 = vpack.c.b16 %v6283, %v6282
          %v6306 = vpack.c.b16 %v6285, %v6284
          %v6307 = vpack.c.b16 %v6287, %v6286
          %v6308 = vpack.c.b16 %v6289, %v6288
          %v6309 = vpack.c.b16 %v6291, %v6290
          %v6310 = vpack.c.b16 %v6293, %v6292
          %v6311 = vpack.c.b16 %v6295, %v6294
          %6328 = vmatprep.subr.bf16.mxu0 0
          %6329 = vmatpush1.bf16.msra.mxu0 %v6296
          %6330 = vmatprep.subr.bf16.mxu0 0
          %6331 = vmatpush1.bf16.msra.mxu0 %v6297
          %6332 = vmatprep.subr.bf16.mxu0 0
          %6333 = vmatpush1.bf16.msra.mxu0 %v6298
          %6334 = vmatprep.subr.bf16.mxu0 0
          %6335 = vmatpush1.bf16.msra.mxu0 %v6299
          %6336 = vmatprep.subr.bf16.mxu0 0
          %6337 = vmatpush1.bf16.msra.mxu0 %v6300
          %6338 = vmatprep.subr.bf16.mxu0 0
          %6339 = vmatpush1.bf16.msra.mxu0 %v6301
          %6340 = vmatprep.subr.bf16.mxu0 0
          %6341 = vmatpush1.bf16.msra.mxu0 %v6302
          %6342 = vmatprep.subr.bf16.mxu0 0
          %6343 = vmatpush1.bf16.msra.mxu0 %v6303
          %6344 = vmatprep.subr.bf16.mxu0 0
          %6345 = vmatpush1.bf16.msra.mxu0 %v6304
          %6346 = vmatprep.subr.bf16.mxu0 0
          %6347 = vmatpush1.bf16.msra.mxu0 %v6305
          %6348 = vmatprep.subr.bf16.mxu0 0
          %6349 = vmatpush1.bf16.msra.mxu0 %v6306
          %6350 = vmatprep.subr.bf16.mxu0 0
          %6351 = vmatpush1.bf16.msra.mxu0 %v6307
          %6352 = vmatprep.subr.bf16.mxu0 0
          %6353 = vmatpush1.bf16.msra.mxu0 %v6308
          %6354 = vmatprep.subr.bf16.mxu0 0
          %6355 = vmatpush1.bf16.msra.mxu0 %v6309
          %6356 = vmatprep.subr.bf16.mxu0 0
          %6357 = vmatpush1.bf16.msra.mxu0 %v6310
          %6358 = vmatprep.subr.bf16.mxu0 0
          %6359 = vmatpush1.bf16.msra.mxu0 %v6311
          %6360 = vmatprep.mubr.bf16.mxu0 %v6229
          %6361 = vmatmul.mubr.bf16.gmra.mrb[0].mxu0 %v6217
          %v6362 = vpop.f32.mrb[0].mxu0
          %v6363 = vadd.f32 %v6203, %v6362
          %v6364 = vpop.f32.mrb[0].mxu0
          %v6365 = vpop.f32.mrb[0].mxu0
          %v6366 = vadd.f32 %v6203, %v6365
          %v6367 = vpop.f32.mrb[0].mxu0
          %6368 = vdwg.mxu0
          %6369 = vst [vmem:[%s1089] sm:$0xff] %v6363
          %6370 = vst [vmem:[%s1089 + $0x8] sm:$0xff] %v6366
        $region160: #{vit_forward.1} parent=103 // pred_fallthru
          _
        %p6371 = scmp.lt.s32.totalorder %s38, 1
        %s6372 = scalar_select %p6371, %s38, 1
        %s6373 = smul.addr %s6372, 2
        %s6374 = smul.addr %s6373, 8
        %s6375 = scalar_lea.vmem %s21, %s6374
        // Predicated region
        $region161: #{vit_forward.1} parent=103 // pred_check
          %p6376 = pneg %p570
        $region162: #{vit_forward.1} parent=103 // pred_check_branch
          %6378 = sbr.rel (%p6376) target = $region164
        $region163: #{vit_forward.1} parent=103 // pred_region
          _
        $region164: #{vit_forward.1} parent=103 // pred_fallthru
          _
      $region104: #{vit_forward.1} parent=5 // pred_fallthru
        _
      %p6379 = scmp.le.s32.totalorder 2, %s29
      // Predicated region
      $region165: #{vit_forward.1} parent=5 // pred_check
        %p6380 = pneg %p6379
      $region166: #{vit_forward.1} parent=5 // pred_check_branch
        %6382 = sbr.rel (%p6380) target = $region168
      $region167: #{vit_forward.1} parent=5 // pred_region
        %s6383 = ssub.s32 %s29, 2
        // Predicated region
        $region169: #{vit_forward.1} parent=167 // pred_check
          %p6384 = pneg %p576
        $region170: #{vit_forward.1} parent=167 // pred_check_branch
          %6386 = sbr.rel (%p6384) target = $region172
        $region171: #{vit_forward.1} parent=167 // pred_region
          %p6387 = scmp.lt.s32.totalorder %s40, 1
          %s6388 = scalar_select %p6387, %s40, 1
          %s6389 = smul.addr %s6388, 2
          %s6390 = smul.addr %s6389, 8
          %s6391 = scalar_lea.vmem %s21, %s6390
        $region172: #{vit_forward.1} parent=167 // pred_fallthru
          _
      $region168: #{vit_forward.1} parent=5 // pred_fallthru
        _
    $region6: #{vit_forward.1} parent=1 // loop_footer
      %s33 = sadd.s32 1, %s29
    $region7: #{vit_forward.1} parent=1 // loop_footer_branch
      %28 = sbr.rel target = $region3
    $region8: #{vit_forward.1} parent=1 // loop_exit
      _
    %6392 = vsyncpa [#allocation4], 1
    %s6393 = scalar_lea.sflag [#allocation4], 1
    %6394 = vsyncpa %s6393, 1
    %6395 = vsyncpa [#allocation6], 1

</llo_original>
